<compile_context>
chip_gen: v5e
topology: v5e:2x2
jax: 0.10.0
libtpu: 0.0.40
codegen_flags: <defaults>
</compile_context>

<pallas_src>
import functools

import jax
import jax.numpy as jnp
from jax.experimental import pallas as pl
from jax.experimental.pallas import tpu as pltpu


def _mpnn_kernel(
    n_feat_ref, e_feat_ref, src_oh_ref, dst_oh_t_ref,
    lin0_w_ref, lin0_b_ref, e1_w_ref, e1_b_ref, e2_w_ref, e2_b_ref,
    conv_b_ref, lin1_w_ref, lin1_b_ref, head_w_ref, head_b_ref,
    y_ref, *, num_steps: int):
  f32 = jnp.float32
  bf16 = jnp.bfloat16
  relu = lambda x: jnp.maximum(x, 0.0)
  hidden = lin1_w_ref.shape[0]

  # ---- lin0 + relu (node embedding) ---------------------------------------
  out0 = relu(jnp.dot(n_feat_ref[...], lin0_w_ref[...],
                      preferred_element_type=f32) + lin0_b_ref[...])      # (N, H)
  h0 = out0

  # ---- edge network (step-invariant: computed once, not per step) ---------
  eh = relu(jnp.dot(e_feat_ref[...], e1_w_ref[...],
                    preferred_element_type=f32) + e1_b_ref[...])          # (E, K)
  # we[e, h*H + o] = W_e[e][h, o] (PyTorch-native flat layout).  Stored bf16:
  # this is the only (E, H*H) tensor live across the whole step loop, so bf16
  # halves its persistent VMEM footprint (v7x has 64 MiB); it is upcast 32
  # lanes at a time at the point of use.
  we = (jnp.dot(eh, e2_w_ref[...], preferred_element_type=f32)
        + e2_b_ref[...]).astype(bf16)                                     # (E, H*H)
  # TODO(synk): Dropout layers (edge_dp / gconv_dp / nn_dp1) are eval-mode
  # identities here (no RNG masking).

  # ---- hoisted step-invariant operands (incidence matrices stay bf16) -----
  src_oh = src_oh_ref[...]                    # (E, N) bf16 one-hot (0/1 exact)
  dst_oh_t = dst_oh_t_ref[...]                # (N, E) bf16
  conv_b = conv_b_ref[...]
  lin1_w = lin1_w_ref[...]
  lin1_b = lin1_b_ref[...]

  alpha = 0.1
  beta = 1.0 / num_steps          # forward() resets self.beta this way

  def step(_, out):
    # Gather source-node features per edge: bf16 x bf16 MXU dot with f32
    # accumulation (one-hot rows are exact, so this selects bf16-rounded
    # features; no persistent f32 incidence copy).
    src_feats = jnp.dot(src_oh, out.astype(bf16),
                        preferred_element_type=f32)                       # (E, H)
    # NNConv message: msg[e, o] = sum_h src_feats[e, h] * W_e[e, h, o],
    # done as H broadcast-multiply-accumulate passes over 32-lane slices of
    # `we` -- all VPU/XLU work (lane slice + lane broadcast + FMA), no rep/red
    # matmuls and no H x MXU-flop inflation.
    msg = jnp.zeros_like(src_feats)                                       # (E, H)
    for h in range(hidden):
      msg = msg + src_feats[:, h:h + 1] * we[:, h * hidden:(h + 1) * hidden]
    # aggregator_type = 'sum': scatter-add over destination nodes (bf16 MXU).
    agg = jnp.dot(dst_oh_t, msg.astype(bf16),
                  preferred_element_type=f32)                             # (N, H)
    conv = agg + out + conv_b     # residual (identity, in==out) + NNConv bias
    temp = alpha * conv + (1.0 - alpha) * h0
    lin1 = jnp.dot(temp, lin1_w, preferred_element_type=f32) + lin1_b
    return relu(beta * lin1 + (1.0 - beta) * temp)

  # Visible loop (bounds live ranges) instead of a bare Python for-loop.
  out = jax.lax.fori_loop(0, num_steps, step, out0, unroll=True)

  # ---- fused output heads (eval-mode BatchNorm folded into head_w/head_b) --
  y = jnp.dot(out, head_w_ref[...], preferred_element_type=f32) + head_b_ref[...]
  y_ref[...] = jax.nn.sigmoid(y)               # single (N, 4) store


@functools.partial(jax.jit, static_argnames=("num_steps",))
def mpnn_forward(n_feat, e_feat, src_idx, dst_idx, params, *, num_steps):
  (lin0_w, lin0_b, e1_w, e1_b, e2_w, e2_b, conv_b,
   lin1_w, lin1_b, bn_g, bn_b, bn_m, bn_v,
   y1_w, y1_b, y2_w, y2_b) = params
  n = n_feat.shape[0]
  hidden = lin1_w.shape[0]

  # Incidence matrices as bf16 one-hots (0/1 exact): halves their DMA bytes /
  # VMEM residency; consumed directly by bf16 x bf16 MXU dots in the kernel.
  src_oh = jax.nn.one_hot(src_idx, n, dtype=jnp.bfloat16)               # (E, N)
  dst_oh_t = jax.nn.one_hot(dst_idx, n, dtype=jnp.bfloat16, axis=0)     # (N, E)
  # TODO(synk): for non-toy graphs replace the dense O(E*N) one-hots with a
  # PrefetchScalarGridSpec(num_scalar_prefetch=2) edge-tile grid (src/dst idx
  # in SMEM, resident (N,H) f32 accumulator scratch, pl.when init/finalize per
  # step), recompute the edge-net weights per edge tile, and add a 'parallel'
  # node-tile / graph-batch axis so v7x's second TensorCore is used.

  # Fold eval-mode BatchNorm into the two output heads and fuse the heads.
  scale = bn_g * jax.lax.rsqrt(bn_v + 1e-5)          # (1, H)
  shift = bn_b - bn_m * scale                        # (1, H)
  yw = jnp.concatenate([y1_w, y2_w], axis=1)         # (H, 4)
  yb = jnp.concatenate([y1_b, y2_b], axis=1)         # (1, 4)
  head_w = scale.reshape(hidden, 1) * yw             # (H, 4)
  head_b = yb + shift @ yw                           # (1, 4)

  inputs = (n_feat, e_feat, src_oh, dst_oh_t,
            lin0_w, lin0_b, e1_w, e1_b, e2_w, e2_b, conv_b,
            lin1_w, lin1_b, head_w, head_b)
  vmem = pl.BlockSpec(memory_space=pltpu.MemorySpace.VMEM)
  y = pl.pallas_call(
      functools.partial(_mpnn_kernel, num_steps=num_steps),
      out_shape=jax.ShapeDtypeStruct((n, 4), jnp.float32),
      in_specs=[vmem] * len(inputs),
      out_specs=vmem,
      compiler_params=pltpu.CompilerParams(
          # Raise the scoped VMEM limit (v5e default is 16 MiB).  At real
          # graph sizes this must be sized per generation (v7x: 64 MiB total).
          vmem_limit_bytes=32 * 1024 * 1024),
  )(*inputs)
  return y[:, :2], y[:, 2:]


def init_params(key, node_in, hidden, edge_in, edge_hidden):
  """Deterministic synthetic parameters (shapes follow MPNN.__init__)."""
  def linear(k, fan_in, fan_out):
    kw, kb = jax.random.split(k)
    bound = 1.0 / (fan_in ** 0.5)
    w = jax.random.uniform(kw, (fan_in, fan_out), jnp.float32, -bound, bound)
    b = jax.random.uniform(kb, (1, fan_out), jnp.float32, -bound, bound)
    return w, b

  ks = jax.random.split(key, 8)
  lin0_w, lin0_b = linear(ks[0], node_in, hidden)
  e1_w, e1_b = linear(ks[1], edge_in, edge_hidden)
  e2_w, e2_b = linear(ks[2], edge_hidden, hidden * hidden)   # flat (K, H*H)
  conv_b = jnp.zeros((1, hidden), jnp.float32)      # DGL NNConv bias init = 0
  lin1_w, lin1_b = linear(ks[3], hidden, hidden)
  bn_g = jnp.ones((1, hidden), jnp.float32)
  bn_b = jnp.zeros((1, hidden), jnp.float32)
  bn_m = 0.1 * jax.random.normal(ks[4], (1, hidden), jnp.float32)
  bn_v = 1.0 + 0.1 * jax.random.uniform(ks[5], (1, hidden), jnp.float32)
  y1_w, y1_b = linear(ks[6], hidden, 2)
  y2_w, y2_b = linear(ks[7], hidden, 2)
  return (lin0_w, lin0_b, e1_w, e1_b, e2_w, e2_b, conv_b,
          lin1_w, lin1_b, bn_g, bn_b, bn_m, bn_v,
          y1_w, y1_b, y2_w, y2_b)


def mpnn_reference(n_feat, e_feat, src_idx, dst_idx, params, *, num_steps):
  """Pure-JAX f32 reference of the PyTorch forward (for a sanity check)."""
  (lin0_w, lin0_b, e1_w, e1_b, e2_w, e2_b, conv_b,
   lin1_w, lin1_b, bn_g, bn_b, bn_m, bn_v,
   y1_w, y1_b, y2_w, y2_b) = params
  relu = lambda x: jnp.maximum(x, 0.0)
  n, hidden = n_feat.shape[0], lin1_w.shape[0]
  out = relu(n_feat @ lin0_w + lin0_b)
  h0 = out
  eh = relu(e_feat @ e1_w + e1_b)
  w2r = e2_w.reshape(-1, hidden, hidden)
  b2r = e2_b.reshape(hidden, hidden)
  w_e = jnp.einsum('ek,kho->eho', eh, w2r) + b2r[None]            # (E, H, H)
  alpha, beta = 0.1, 1.0 / num_steps
  for _ in range(num_steps):
    src_feats = out[src_idx]
    msg = jnp.einsum('eh,eho->eo', src_feats, w_e)
    agg = jnp.zeros((n, hidden), jnp.float32).at[dst_idx].add(msg)
    conv = agg + out + conv_b
    temp = alpha * conv + (1.0 - alpha) * h0
    out = relu(beta * (temp @ lin1_w + lin1_b) + (1.0 - beta) * temp)
  y_bn = (out - bn_m) * jax.lax.rsqrt(bn_v + 1e-5) * bn_g + bn_b
  return (jax.nn.sigmoid(y_bn @ y1_w + y1_b),
          jax.nn.sigmoid(y_bn @ y2_w + y2_b))


if __name__ == "__main__":
  N, E = 8, 16                   # nodes, edges
  NODE_IN, HIDDEN = 16, 32       # node_in_feats, node_hidden_dim
  EDGE_IN, EDGE_HIDDEN = 8, 16   # edge_input_dim, edge_hidden_dim
  STEPS = 3                      # num_step_message_passing

  key = jax.random.PRNGKey(0)
  k_n, k_e, k_s, k_d, k_p = jax.random.split(key, 5)
  n_feat = jax.random.normal(k_n, (N, NODE_IN), jnp.float32)
  e_feat = jax.random.normal(k_e, (E, EDGE_IN), jnp.float32)
  src_idx = jax.random.randint(k_s, (E,), 0, N)
  dst_idx = jax.random.randint(k_d, (E,), 0, N)
  params = init_params(k_p, NODE_IN, HIDDEN, EDGE_IN, EDGE_HIDDEN)

  y1, y2 = mpnn_forward(n_feat, e_feat, src_idx, dst_idx, params,
                        num_steps=STEPS)
  jax.block_until_ready((y1, y2))

  r1, r2 = mpnn_reference(n_feat, e_feat, src_idx, dst_idx, params,
                          num_steps=STEPS)
  assert y1.shape == (N, 2) and y2.shape == (N, 2)
  # Tolerance covers bf16 rounding of the gather/scatter operands and of the
  # per-edge weight tensor (f32 reference path).
  assert jnp.allclose(y1, r1, atol=2e-3, rtol=2e-3)
  assert jnp.allclose(y2, r2, atol=2e-3, rtol=2e-3)
  print("KERNEL_OK")
</pallas_src>

<mosaic_0001>
module attributes {stable_mosaic.version = 11 : i64} {
  func.func @_mpnn_kernel(%arg0: memref<8x16xf32, #tpu.memory_space<vmem>>, %arg1: memref<16x8xf32, #tpu.memory_space<vmem>>, %arg2: memref<16x8xbf16, #tpu.memory_space<vmem>>, %arg3: memref<8x16xbf16, #tpu.memory_space<vmem>>, %arg4: memref<16x32xf32, #tpu.memory_space<vmem>>, %arg5: memref<1x32xf32, #tpu.memory_space<vmem>>, %arg6: memref<8x16xf32, #tpu.memory_space<vmem>>, %arg7: memref<1x16xf32, #tpu.memory_space<vmem>>, %arg8: memref<16x1024xf32, #tpu.memory_space<vmem>>, %arg9: memref<1x1024xf32, #tpu.memory_space<vmem>>, %arg10: memref<1x32xf32, #tpu.memory_space<vmem>>, %arg11: memref<32x32xf32, #tpu.memory_space<vmem>>, %arg12: memref<1x32xf32, #tpu.memory_space<vmem>>, %arg13: memref<32x4xf32, #tpu.memory_space<vmem>>, %arg14: memref<1x4xf32, #tpu.memory_space<vmem>>, %arg15: memref<8x4xf32, #tpu.memory_space<vmem>>) attributes {dimension_semantics = [], scalar_prefetch = 0 : i64, scratch_operands = 0 : i64, tpu.core_type = #tpu.core_type<tc>} {
    %c0 = arith.constant 0 : index
    %c0_0 = arith.constant 0 : index
    %0 = vector.load %arg0[%c0, %c0_0] : memref<8x16xf32, #tpu.memory_space<vmem>>, vector<8x16xf32>
    %c0_1 = arith.constant 0 : index
    %c0_2 = arith.constant 0 : index
    %1 = vector.load %arg4[%c0_1, %c0_2] : memref<16x32xf32, #tpu.memory_space<vmem>>, vector<16x32xf32>
    %cst = arith.constant dense<0.000000e+00> : vector<8x32xf32>
    %2 = tpu.matmul %0, %1, %cst {dimension_numbers = #tpu.dot_dimension_numbers<[1], [0], [0], [1], [0, 0, 1, 1], [], []>} : vector<8x16xf32>, vector<16x32xf32>, vector<8x32xf32> -> vector<8x32xf32>
    %c0_3 = arith.constant 0 : index
    %c0_4 = arith.constant 0 : index
    %3 = vector.load %arg5[%c0_3, %c0_4] : memref<1x32xf32, #tpu.memory_space<vmem>>, vector<1x32xf32>
    %4 = vector.broadcast %3 : vector<1x32xf32> to vector<8x32xf32>
    %5 = arith.addf %2, %4 : vector<8x32xf32>
    %cst_5 = arith.constant 0.000000e+00 : f32
    %6 = vector.broadcast %cst_5 : f32 to vector<8x32xf32>
    %7 = arith.maximumf %5, %6 : vector<8x32xf32>
    %c0_6 = arith.constant 0 : index
    %c0_7 = arith.constant 0 : index
    %8 = vector.load %arg1[%c0_6, %c0_7] : memref<16x8xf32, #tpu.memory_space<vmem>>, vector<16x8xf32>
    %c0_8 = arith.constant 0 : index
    %c0_9 = arith.constant 0 : index
    %9 = vector.load %arg6[%c0_8, %c0_9] : memref<8x16xf32, #tpu.memory_space<vmem>>, vector<8x16xf32>
    %cst_10 = arith.constant dense<0.000000e+00> : vector<16x16xf32>
    %10 = tpu.matmul %8, %9, %cst_10 {dimension_numbers = #tpu.dot_dimension_numbers<[1], [0], [0], [1], [0, 0, 1, 1], [], []>} : vector<16x8xf32>, vector<8x16xf32>, vector<16x16xf32> -> vector<16x16xf32>
    %c0_11 = arith.constant 0 : index
    %c0_12 = arith.constant 0 : index
    %11 = vector.load %arg7[%c0_11, %c0_12] : memref<1x16xf32, #tpu.memory_space<vmem>>, vector<1x16xf32>
    %12 = vector.broadcast %11 : vector<1x16xf32> to vector<16x16xf32>
    %13 = arith.addf %10, %12 : vector<16x16xf32>
    %cst_13 = arith.constant 0.000000e+00 : f32
    %14 = vector.broadcast %cst_13 : f32 to vector<16x16xf32>
    %15 = arith.maximumf %13, %14 : vector<16x16xf32>
    %c0_14 = arith.constant 0 : index
    %c0_15 = arith.constant 0 : index
    %16 = vector.load %arg8[%c0_14, %c0_15] : memref<16x1024xf32, #tpu.memory_space<vmem>>, vector<16x1024xf32>
    %cst_16 = arith.constant dense<0.000000e+00> : vector<16x1024xf32>
    %17 = tpu.matmul %15, %16, %cst_16 {dimension_numbers = #tpu.dot_dimension_numbers<[1], [0], [0], [1], [0, 0, 1, 1], [], []>} : vector<16x16xf32>, vector<16x1024xf32>, vector<16x1024xf32> -> vector<16x1024xf32>
    %c0_17 = arith.constant 0 : index
    %c0_18 = arith.constant 0 : index
    %18 = vector.load %arg9[%c0_17, %c0_18] : memref<1x1024xf32, #tpu.memory_space<vmem>>, vector<1x1024xf32>
    %19 = vector.broadcast %18 : vector<1x1024xf32> to vector<16x1024xf32>
    %20 = arith.addf %17, %19 : vector<16x1024xf32>
    %21 = arith.truncf %20 : vector<16x1024xf32> to vector<16x1024xbf16>
    %c0_19 = arith.constant 0 : index
    %c0_20 = arith.constant 0 : index
    %22 = vector.load %arg2[%c0_19, %c0_20] : memref<16x8xbf16, #tpu.memory_space<vmem>>, vector<16x8xbf16>
    %c0_21 = arith.constant 0 : index
    %c0_22 = arith.constant 0 : index
    %23 = vector.load %arg3[%c0_21, %c0_22] : memref<8x16xbf16, #tpu.memory_space<vmem>>, vector<8x16xbf16>
    %c0_23 = arith.constant 0 : index
    %c0_24 = arith.constant 0 : index
    %24 = vector.load %arg10[%c0_23, %c0_24] : memref<1x32xf32, #tpu.memory_space<vmem>>, vector<1x32xf32>
    %c0_25 = arith.constant 0 : index
    %c0_26 = arith.constant 0 : index
    %25 = vector.load %arg11[%c0_25, %c0_26] : memref<32x32xf32, #tpu.memory_space<vmem>>, vector<32x32xf32>
    %c0_27 = arith.constant 0 : index
    %c0_28 = arith.constant 0 : index
    %26 = vector.load %arg12[%c0_27, %c0_28] : memref<1x32xf32, #tpu.memory_space<vmem>>, vector<1x32xf32>
    %c0_i32 = arith.constant 0 : i32
    %27 = arith.truncf %7 : vector<8x32xf32> to vector<8x32xbf16>
    %cst_29 = arith.constant dense<0.000000e+00> : vector<16x32xf32>
    %28 = tpu.matmul %22, %27, %cst_29 {dimension_numbers = #tpu.dot_dimension_numbers<[1], [0], [0], [1], [0, 0, 1, 1], [], []>} : vector<16x8xbf16>, vector<8x32xbf16>, vector<16x32xf32> -> vector<16x32xf32>
    %cst_30 = arith.constant 0.000000e+00 : f32
    %29 = vector.broadcast %cst_30 : f32 to vector<16x32xf32>
    %30 = vector.extract_strided_slice %28 {offsets = [0, 0], sizes = [16, 1], strides = [1, 1]} : vector<16x32xf32> to vector<16x1xf32>
    %31 = vector.extract_strided_slice %21 {offsets = [0, 0], sizes = [16, 32], strides = [1, 1]} : vector<16x1024xbf16> to vector<16x32xbf16>
    %32 = arith.extf %31 : vector<16x32xbf16> to vector<16x32xf32>
    %33 = vector.broadcast %30 : vector<16x1xf32> to vector<16x32xf32>
    %34 = arith.mulf %33, %32 : vector<16x32xf32>
    %35 = arith.addf %29, %34 : vector<16x32xf32>
    %36 = vector.extract_strided_slice %28 {offsets = [0, 1], sizes = [16, 1], strides = [1, 1]} : vector<16x32xf32> to vector<16x1xf32>
    %37 = vector.extract_strided_slice %21 {offsets = [0, 32], sizes = [16, 32], strides = [1, 1]} : vector<16x1024xbf16> to vector<16x32xbf16>
    %38 = arith.extf %37 : vector<16x32xbf16> to vector<16x32xf32>
    %39 = vector.broadcast %36 : vector<16x1xf32> to vector<16x32xf32>
    %40 = arith.mulf %39, %38 : vector<16x32xf32>
    %41 = arith.addf %35, %40 : vector<16x32xf32>
    %42 = vector.extract_strided_slice %28 {offsets = [0, 2], sizes = [16, 1], strides = [1, 1]} : vector<16x32xf32> to vector<16x1xf32>
    %43 = vector.extract_strided_slice %21 {offsets = [0, 64], sizes = [16, 32], strides = [1, 1]} : vector<16x1024xbf16> to vector<16x32xbf16>
    %44 = arith.extf %43 : vector<16x32xbf16> to vector<16x32xf32>
    %45 = vector.broadcast %42 : vector<16x1xf32> to vector<16x32xf32>
    %46 = arith.mulf %45, %44 : vector<16x32xf32>
    %47 = arith.addf %41, %46 : vector<16x32xf32>
    %48 = vector.extract_strided_slice %28 {offsets = [0, 3], sizes = [16, 1], strides = [1, 1]} : vector<16x32xf32> to vector<16x1xf32>
    %49 = vector.extract_strided_slice %21 {offsets = [0, 96], sizes = [16, 32], strides = [1, 1]} : vector<16x1024xbf16> to vector<16x32xbf16>
    %50 = arith.extf %49 : vector<16x32xbf16> to vector<16x32xf32>
    %51 = vector.broadcast %48 : vector<16x1xf32> to vector<16x32xf32>
    %52 = arith.mulf %51, %50 : vector<16x32xf32>
    %53 = arith.addf %47, %52 : vector<16x32xf32>
    %54 = vector.extract_strided_slice %28 {offsets = [0, 4], sizes = [16, 1], strides = [1, 1]} : vector<16x32xf32> to vector<16x1xf32>
    %55 = vector.extract_strided_slice %21 {offsets = [0, 128], sizes = [16, 32], strides = [1, 1]} : vector<16x1024xbf16> to vector<16x32xbf16>
    %56 = arith.extf %55 : vector<16x32xbf16> to vector<16x32xf32>
    %57 = vector.broadcast %54 : vector<16x1xf32> to vector<16x32xf32>
    %58 = arith.mulf %57, %56 : vector<16x32xf32>
    %59 = arith.addf %53, %58 : vector<16x32xf32>
    %60 = vector.extract_strided_slice %28 {offsets = [0, 5], sizes = [16, 1], strides = [1, 1]} : vector<16x32xf32> to vector<16x1xf32>
    %61 = vector.extract_strided_slice %21 {offsets = [0, 160], sizes = [16, 32], strides = [1, 1]} : vector<16x1024xbf16> to vector<16x32xbf16>
    %62 = arith.extf %61 : vector<16x32xbf16> to vector<16x32xf32>
    %63 = vector.broadcast %60 : vector<16x1xf32> to vector<16x32xf32>
    %64 = arith.mulf %63, %62 : vector<16x32xf32>
    %65 = arith.addf %59, %64 : vector<16x32xf32>
    %66 = vector.extract_strided_slice %28 {offsets = [0, 6], sizes = [16, 1], strides = [1, 1]} : vector<16x32xf32> to vector<16x1xf32>
    %67 = vector.extract_strided_slice %21 {offsets = [0, 192], sizes = [16, 32], strides = [1, 1]} : vector<16x1024xbf16> to vector<16x32xbf16>
    %68 = arith.extf %67 : vector<16x32xbf16> to vector<16x32xf32>
    %69 = vector.broadcast %66 : vector<16x1xf32> to vector<16x32xf32>
    %70 = arith.mulf %69, %68 : vector<16x32xf32>
    %71 = arith.addf %65, %70 : vector<16x32xf32>
    %72 = vector.extract_strided_slice %28 {offsets = [0, 7], sizes = [16, 1], strides = [1, 1]} : vector<16x32xf32> to vector<16x1xf32>
    %73 = vector.extract_strided_slice %21 {offsets = [0, 224], sizes = [16, 32], strides = [1, 1]} : vector<16x1024xbf16> to vector<16x32xbf16>
    %74 = arith.extf %73 : vector<16x32xbf16> to vector<16x32xf32>
    %75 = vector.broadcast %72 : vector<16x1xf32> to vector<16x32xf32>
    %76 = arith.mulf %75, %74 : vector<16x32xf32>
    %77 = arith.addf %71, %76 : vector<16x32xf32>
    %78 = vector.extract_strided_slice %28 {offsets = [0, 8], sizes = [16, 1], strides = [1, 1]} : vector<16x32xf32> to vector<16x1xf32>
    %79 = vector.extract_strided_slice %21 {offsets = [0, 256], sizes = [16, 32], strides = [1, 1]} : vector<16x1024xbf16> to vector<16x32xbf16>
    %80 = arith.extf %79 : vector<16x32xbf16> to vector<16x32xf32>
    %81 = vector.broadcast %78 : vector<16x1xf32> to vector<16x32xf32>
    %82 = arith.mulf %81, %80 : vector<16x32xf32>
    %83 = arith.addf %77, %82 : vector<16x32xf32>
    %84 = vector.extract_strided_slice %28 {offsets = [0, 9], sizes = [16, 1], strides = [1, 1]} : vector<16x32xf32> to vector<16x1xf32>
    %85 = vector.extract_strided_slice %21 {offsets = [0, 288], sizes = [16, 32], strides = [1, 1]} : vector<16x1024xbf16> to vector<16x32xbf16>
    %86 = arith.extf %85 : vector<16x32xbf16> to vector<16x32xf32>
    %87 = vector.broadcast %84 : vector<16x1xf32> to vector<16x32xf32>
    %88 = arith.mulf %87, %86 : vector<16x32xf32>
    %89 = arith.addf %83, %88 : vector<16x32xf32>
    %90 = vector.extract_strided_slice %28 {offsets = [0, 10], sizes = [16, 1], strides = [1, 1]} : vector<16x32xf32> to vector<16x1xf32>
    %91 = vector.extract_strided_slice %21 {offsets = [0, 320], sizes = [16, 32], strides = [1, 1]} : vector<16x1024xbf16> to vector<16x32xbf16>
    %92 = arith.extf %91 : vector<16x32xbf16> to vector<16x32xf32>
    %93 = vector.broadcast %90 : vector<16x1xf32> to vector<16x32xf32>
    %94 = arith.mulf %93, %92 : vector<16x32xf32>
    %95 = arith.addf %89, %94 : vector<16x32xf32>
    %96 = vector.extract_strided_slice %28 {offsets = [0, 11], sizes = [16, 1], strides = [1, 1]} : vector<16x32xf32> to vector<16x1xf32>
    %97 = vector.extract_strided_slice %21 {offsets = [0, 352], sizes = [16, 32], strides = [1, 1]} : vector<16x1024xbf16> to vector<16x32xbf16>
    %98 = arith.extf %97 : vector<16x32xbf16> to vector<16x32xf32>
    %99 = vector.broadcast %96 : vector<16x1xf32> to vector<16x32xf32>
    %100 = arith.mulf %99, %98 : vector<16x32xf32>
    %101 = arith.addf %95, %100 : vector<16x32xf32>
    %102 = vector.extract_strided_slice %28 {offsets = [0, 12], sizes = [16, 1], strides = [1, 1]} : vector<16x32xf32> to vector<16x1xf32>
    %103 = vector.extract_strided_slice %21 {offsets = [0, 384], sizes = [16, 32], strides = [1, 1]} : vector<16x1024xbf16> to vector<16x32xbf16>
    %104 = arith.extf %103 : vector<16x32xbf16> to vector<16x32xf32>
    %105 = vector.broadcast %102 : vector<16x1xf32> to vector<16x32xf32>
    %106 = arith.mulf %105, %104 : vector<16x32xf32>
    %107 = arith.addf %101, %106 : vector<16x32xf32>
    %108 = vector.extract_strided_slice %28 {offsets = [0, 13], sizes = [16, 1], strides = [1, 1]} : vector<16x32xf32> to vector<16x1xf32>
    %109 = vector.extract_strided_slice %21 {offsets = [0, 416], sizes = [16, 32], strides = [1, 1]} : vector<16x1024xbf16> to vector<16x32xbf16>
    %110 = arith.extf %109 : vector<16x32xbf16> to vector<16x32xf32>
    %111 = vector.broadcast %108 : vector<16x1xf32> to vector<16x32xf32>
    %112 = arith.mulf %111, %110 : vector<16x32xf32>
    %113 = arith.addf %107, %112 : vector<16x32xf32>
    %114 = vector.extract_strided_slice %28 {offsets = [0, 14], sizes = [16, 1], strides = [1, 1]} : vector<16x32xf32> to vector<16x1xf32>
    %115 = vector.extract_strided_slice %21 {offsets = [0, 448], sizes = [16, 32], strides = [1, 1]} : vector<16x1024xbf16> to vector<16x32xbf16>
    %116 = arith.extf %115 : vector<16x32xbf16> to vector<16x32xf32>
    %117 = vector.broadcast %114 : vector<16x1xf32> to vector<16x32xf32>
    %118 = arith.mulf %117, %116 : vector<16x32xf32>
    %119 = arith.addf %113, %118 : vector<16x32xf32>
    %120 = vector.extract_strided_slice %28 {offsets = [0, 15], sizes = [16, 1], strides = [1, 1]} : vector<16x32xf32> to vector<16x1xf32>
    %121 = vector.extract_strided_slice %21 {offsets = [0, 480], sizes = [16, 32], strides = [1, 1]} : vector<16x1024xbf16> to vector<16x32xbf16>
    %122 = arith.extf %121 : vector<16x32xbf16> to vector<16x32xf32>
    %123 = vector.broadcast %120 : vector<16x1xf32> to vector<16x32xf32>
    %124 = arith.mulf %123, %122 : vector<16x32xf32>
    %125 = arith.addf %119, %124 : vector<16x32xf32>
    %126 = vector.extract_strided_slice %28 {offsets = [0, 16], sizes = [16, 1], strides = [1, 1]} : vector<16x32xf32> to vector<16x1xf32>
    %127 = vector.extract_strided_slice %21 {offsets = [0, 512], sizes = [16, 32], strides = [1, 1]} : vector<16x1024xbf16> to vector<16x32xbf16>
    %128 = arith.extf %127 : vector<16x32xbf16> to vector<16x32xf32>
    %129 = vector.broadcast %126 : vector<16x1xf32> to vector<16x32xf32>
    %130 = arith.mulf %129, %128 : vector<16x32xf32>
    %131 = arith.addf %125, %130 : vector<16x32xf32>
    %132 = vector.extract_strided_slice %28 {offsets = [0, 17], sizes = [16, 1], strides = [1, 1]} : vector<16x32xf32> to vector<16x1xf32>
    %133 = vector.extract_strided_slice %21 {offsets = [0, 544], sizes = [16, 32], strides = [1, 1]} : vector<16x1024xbf16> to vector<16x32xbf16>
    %134 = arith.extf %133 : vector<16x32xbf16> to vector<16x32xf32>
    %135 = vector.broadcast %132 : vector<16x1xf32> to vector<16x32xf32>
    %136 = arith.mulf %135, %134 : vector<16x32xf32>
    %137 = arith.addf %131, %136 : vector<16x32xf32>
    %138 = vector.extract_strided_slice %28 {offsets = [0, 18], sizes = [16, 1], strides = [1, 1]} : vector<16x32xf32> to vector<16x1xf32>
    %139 = vector.extract_strided_slice %21 {offsets = [0, 576], sizes = [16, 32], strides = [1, 1]} : vector<16x1024xbf16> to vector<16x32xbf16>
    %140 = arith.extf %139 : vector<16x32xbf16> to vector<16x32xf32>
    %141 = vector.broadcast %138 : vector<16x1xf32> to vector<16x32xf32>
    %142 = arith.mulf %141, %140 : vector<16x32xf32>
    %143 = arith.addf %137, %142 : vector<16x32xf32>
    %144 = vector.extract_strided_slice %28 {offsets = [0, 19], sizes = [16, 1], strides = [1, 1]} : vector<16x32xf32> to vector<16x1xf32>
    %145 = vector.extract_strided_slice %21 {offsets = [0, 608], sizes = [16, 32], strides = [1, 1]} : vector<16x1024xbf16> to vector<16x32xbf16>
    %146 = arith.extf %145 : vector<16x32xbf16> to vector<16x32xf32>
    %147 = vector.broadcast %144 : vector<16x1xf32> to vector<16x32xf32>
    %148 = arith.mulf %147, %146 : vector<16x32xf32>
    %149 = arith.addf %143, %148 : vector<16x32xf32>
    %150 = vector.extract_strided_slice %28 {offsets = [0, 20], sizes = [16, 1], strides = [1, 1]} : vector<16x32xf32> to vector<16x1xf32>
    %151 = vector.extract_strided_slice %21 {offsets = [0, 640], sizes = [16, 32], strides = [1, 1]} : vector<16x1024xbf16> to vector<16x32xbf16>
    %152 = arith.extf %151 : vector<16x32xbf16> to vector<16x32xf32>
    %153 = vector.broadcast %150 : vector<16x1xf32> to vector<16x32xf32>
    %154 = arith.mulf %153, %152 : vector<16x32xf32>
    %155 = arith.addf %149, %154 : vector<16x32xf32>
    %156 = vector.extract_strided_slice %28 {offsets = [0, 21], sizes = [16, 1], strides = [1, 1]} : vector<16x32xf32> to vector<16x1xf32>
    %157 = vector.extract_strided_slice %21 {offsets = [0, 672], sizes = [16, 32], strides = [1, 1]} : vector<16x1024xbf16> to vector<16x32xbf16>
    %158 = arith.extf %157 : vector<16x32xbf16> to vector<16x32xf32>
    %159 = vector.broadcast %156 : vector<16x1xf32> to vector<16x32xf32>
    %160 = arith.mulf %159, %158 : vector<16x32xf32>
    %161 = arith.addf %155, %160 : vector<16x32xf32>
    %162 = vector.extract_strided_slice %28 {offsets = [0, 22], sizes = [16, 1], strides = [1, 1]} : vector<16x32xf32> to vector<16x1xf32>
    %163 = vector.extract_strided_slice %21 {offsets = [0, 704], sizes = [16, 32], strides = [1, 1]} : vector<16x1024xbf16> to vector<16x32xbf16>
    %164 = arith.extf %163 : vector<16x32xbf16> to vector<16x32xf32>
    %165 = vector.broadcast %162 : vector<16x1xf32> to vector<16x32xf32>
    %166 = arith.mulf %165, %164 : vector<16x32xf32>
    %167 = arith.addf %161, %166 : vector<16x32xf32>
    %168 = vector.extract_strided_slice %28 {offsets = [0, 23], sizes = [16, 1], strides = [1, 1]} : vector<16x32xf32> to vector<16x1xf32>
    %169 = vector.extract_strided_slice %21 {offsets = [0, 736], sizes = [16, 32], strides = [1, 1]} : vector<16x1024xbf16> to vector<16x32xbf16>
    %170 = arith.extf %169 : vector<16x32xbf16> to vector<16x32xf32>
    %171 = vector.broadcast %168 : vector<16x1xf32> to vector<16x32xf32>
    %172 = arith.mulf %171, %170 : vector<16x32xf32>
    %173 = arith.addf %167, %172 : vector<16x32xf32>
    %174 = vector.extract_strided_slice %28 {offsets = [0, 24], sizes = [16, 1], strides = [1, 1]} : vector<16x32xf32> to vector<16x1xf32>
    %175 = vector.extract_strided_slice %21 {offsets = [0, 768], sizes = [16, 32], strides = [1, 1]} : vector<16x1024xbf16> to vector<16x32xbf16>
    %176 = arith.extf %175 : vector<16x32xbf16> to vector<16x32xf32>
    %177 = vector.broadcast %174 : vector<16x1xf32> to vector<16x32xf32>
    %178 = arith.mulf %177, %176 : vector<16x32xf32>
    %179 = arith.addf %173, %178 : vector<16x32xf32>
    %180 = vector.extract_strided_slice %28 {offsets = [0, 25], sizes = [16, 1], strides = [1, 1]} : vector<16x32xf32> to vector<16x1xf32>
    %181 = vector.extract_strided_slice %21 {offsets = [0, 800], sizes = [16, 32], strides = [1, 1]} : vector<16x1024xbf16> to vector<16x32xbf16>
    %182 = arith.extf %181 : vector<16x32xbf16> to vector<16x32xf32>
    %183 = vector.broadcast %180 : vector<16x1xf32> to vector<16x32xf32>
    %184 = arith.mulf %183, %182 : vector<16x32xf32>
    %185 = arith.addf %179, %184 : vector<16x32xf32>
    %186 = vector.extract_strided_slice %28 {offsets = [0, 26], sizes = [16, 1], strides = [1, 1]} : vector<16x32xf32> to vector<16x1xf32>
    %187 = vector.extract_strided_slice %21 {offsets = [0, 832], sizes = [16, 32], strides = [1, 1]} : vector<16x1024xbf16> to vector<16x32xbf16>
    %188 = arith.extf %187 : vector<16x32xbf16> to vector<16x32xf32>
    %189 = vector.broadcast %186 : vector<16x1xf32> to vector<16x32xf32>
    %190 = arith.mulf %189, %188 : vector<16x32xf32>
    %191 = arith.addf %185, %190 : vector<16x32xf32>
    %192 = vector.extract_strided_slice %28 {offsets = [0, 27], sizes = [16, 1], strides = [1, 1]} : vector<16x32xf32> to vector<16x1xf32>
    %193 = vector.extract_strided_slice %21 {offsets = [0, 864], sizes = [16, 32], strides = [1, 1]} : vector<16x1024xbf16> to vector<16x32xbf16>
    %194 = arith.extf %193 : vector<16x32xbf16> to vector<16x32xf32>
    %195 = vector.broadcast %192 : vector<16x1xf32> to vector<16x32xf32>
    %196 = arith.mulf %195, %194 : vector<16x32xf32>
    %197 = arith.addf %191, %196 : vector<16x32xf32>
    %198 = vector.extract_strided_slice %28 {offsets = [0, 28], sizes = [16, 1], strides = [1, 1]} : vector<16x32xf32> to vector<16x1xf32>
    %199 = vector.extract_strided_slice %21 {offsets = [0, 896], sizes = [16, 32], strides = [1, 1]} : vector<16x1024xbf16> to vector<16x32xbf16>
    %200 = arith.extf %199 : vector<16x32xbf16> to vector<16x32xf32>
    %201 = vector.broadcast %198 : vector<16x1xf32> to vector<16x32xf32>
    %202 = arith.mulf %201, %200 : vector<16x32xf32>
    %203 = arith.addf %197, %202 : vector<16x32xf32>
    %204 = vector.extract_strided_slice %28 {offsets = [0, 29], sizes = [16, 1], strides = [1, 1]} : vector<16x32xf32> to vector<16x1xf32>
    %205 = vector.extract_strided_slice %21 {offsets = [0, 928], sizes = [16, 32], strides = [1, 1]} : vector<16x1024xbf16> to vector<16x32xbf16>
    %206 = arith.extf %205 : vector<16x32xbf16> to vector<16x32xf32>
    %207 = vector.broadcast %204 : vector<16x1xf32> to vector<16x32xf32>
    %208 = arith.mulf %207, %206 : vector<16x32xf32>
    %209 = arith.addf %203, %208 : vector<16x32xf32>
    %210 = vector.extract_strided_slice %28 {offsets = [0, 30], sizes = [16, 1], strides = [1, 1]} : vector<16x32xf32> to vector<16x1xf32>
    %211 = vector.extract_strided_slice %21 {offsets = [0, 960], sizes = [16, 32], strides = [1, 1]} : vector<16x1024xbf16> to vector<16x32xbf16>
    %212 = arith.extf %211 : vector<16x32xbf16> to vector<16x32xf32>
    %213 = vector.broadcast %210 : vector<16x1xf32> to vector<16x32xf32>
    %214 = arith.mulf %213, %212 : vector<16x32xf32>
    %215 = arith.addf %209, %214 : vector<16x32xf32>
    %216 = vector.extract_strided_slice %28 {offsets = [0, 31], sizes = [16, 1], strides = [1, 1]} : vector<16x32xf32> to vector<16x1xf32>
    %217 = vector.extract_strided_slice %21 {offsets = [0, 992], sizes = [16, 32], strides = [1, 1]} : vector<16x1024xbf16> to vector<16x32xbf16>
    %218 = arith.extf %217 : vector<16x32xbf16> to vector<16x32xf32>
    %219 = vector.broadcast %216 : vector<16x1xf32> to vector<16x32xf32>
    %220 = arith.mulf %219, %218 : vector<16x32xf32>
    %221 = arith.addf %215, %220 : vector<16x32xf32>
    %222 = arith.truncf %221 : vector<16x32xf32> to vector<16x32xbf16>
    %cst_31 = arith.constant dense<0.000000e+00> : vector<8x32xf32>
    %223 = tpu.matmul %23, %222, %cst_31 {dimension_numbers = #tpu.dot_dimension_numbers<[1], [0], [0], [1], [0, 0, 1, 1], [], []>} : vector<8x16xbf16>, vector<16x32xbf16>, vector<8x32xf32> -> vector<8x32xf32>
    %224 = arith.addf %223, %7 : vector<8x32xf32>
    %225 = vector.broadcast %24 : vector<1x32xf32> to vector<8x32xf32>
    %226 = arith.addf %224, %225 : vector<8x32xf32>
    %cst_32 = arith.constant 1.000000e-01 : f32
    %227 = vector.broadcast %cst_32 : f32 to vector<8x32xf32>
    %228 = arith.mulf %227, %226 : vector<8x32xf32>
    %cst_33 = arith.constant 0.899999976 : f32
    %229 = vector.broadcast %cst_33 : f32 to vector<8x32xf32>
    %230 = arith.mulf %229, %7 : vector<8x32xf32>
    %231 = arith.addf %228, %230 : vector<8x32xf32>
    %cst_34 = arith.constant dense<0.000000e+00> : vector<8x32xf32>
    %232 = tpu.matmul %231, %25, %cst_34 {dimension_numbers = #tpu.dot_dimension_numbers<[1], [0], [0], [1], [0, 0, 1, 1], [], []>} : vector<8x32xf32>, vector<32x32xf32>, vector<8x32xf32> -> vector<8x32xf32>
    %233 = vector.broadcast %26 : vector<1x32xf32> to vector<8x32xf32>
    %234 = arith.addf %232, %233 : vector<8x32xf32>
    %cst_35 = arith.constant 0.333333343 : f32
    %235 = vector.broadcast %cst_35 : f32 to vector<8x32xf32>
    %236 = arith.mulf %235, %234 : vector<8x32xf32>
    %cst_36 = arith.constant 0.666666686 : f32
    %237 = vector.broadcast %cst_36 : f32 to vector<8x32xf32>
    %238 = arith.mulf %237, %231 : vector<8x32xf32>
    %239 = arith.addf %236, %238 : vector<8x32xf32>
    %cst_37 = arith.constant 0.000000e+00 : f32
    %240 = vector.broadcast %cst_37 : f32 to vector<8x32xf32>
    %241 = arith.maximumf %239, %240 : vector<8x32xf32>
    %c1_i32 = arith.constant 1 : i32
    %242 = arith.truncf %241 : vector<8x32xf32> to vector<8x32xbf16>
    %cst_38 = arith.constant dense<0.000000e+00> : vector<16x32xf32>
    %243 = tpu.matmul %22, %242, %cst_38 {dimension_numbers = #tpu.dot_dimension_numbers<[1], [0], [0], [1], [0, 0, 1, 1], [], []>} : vector<16x8xbf16>, vector<8x32xbf16>, vector<16x32xf32> -> vector<16x32xf32>
    %cst_39 = arith.constant 0.000000e+00 : f32
    %244 = vector.broadcast %cst_39 : f32 to vector<16x32xf32>
    %245 = vector.extract_strided_slice %243 {offsets = [0, 0], sizes = [16, 1], strides = [1, 1]} : vector<16x32xf32> to vector<16x1xf32>
    %246 = vector.extract_strided_slice %21 {offsets = [0, 0], sizes = [16, 32], strides = [1, 1]} : vector<16x1024xbf16> to vector<16x32xbf16>
    %247 = arith.extf %246 : vector<16x32xbf16> to vector<16x32xf32>
    %248 = vector.broadcast %245 : vector<16x1xf32> to vector<16x32xf32>
    %249 = arith.mulf %248, %247 : vector<16x32xf32>
    %250 = arith.addf %244, %249 : vector<16x32xf32>
    %251 = vector.extract_strided_slice %243 {offsets = [0, 1], sizes = [16, 1], strides = [1, 1]} : vector<16x32xf32> to vector<16x1xf32>
    %252 = vector.extract_strided_slice %21 {offsets = [0, 32], sizes = [16, 32], strides = [1, 1]} : vector<16x1024xbf16> to vector<16x32xbf16>
    %253 = arith.extf %252 : vector<16x32xbf16> to vector<16x32xf32>
    %254 = vector.broadcast %251 : vector<16x1xf32> to vector<16x32xf32>
    %255 = arith.mulf %254, %253 : vector<16x32xf32>
    %256 = arith.addf %250, %255 : vector<16x32xf32>
    %257 = vector.extract_strided_slice %243 {offsets = [0, 2], sizes = [16, 1], strides = [1, 1]} : vector<16x32xf32> to vector<16x1xf32>
    %258 = vector.extract_strided_slice %21 {offsets = [0, 64], sizes = [16, 32], strides = [1, 1]} : vector<16x1024xbf16> to vector<16x32xbf16>
    %259 = arith.extf %258 : vector<16x32xbf16> to vector<16x32xf32>
    %260 = vector.broadcast %257 : vector<16x1xf32> to vector<16x32xf32>
    %261 = arith.mulf %260, %259 : vector<16x32xf32>
    %262 = arith.addf %256, %261 : vector<16x32xf32>
    %263 = vector.extract_strided_slice %243 {offsets = [0, 3], sizes = [16, 1], strides = [1, 1]} : vector<16x32xf32> to vector<16x1xf32>
    %264 = vector.extract_strided_slice %21 {offsets = [0, 96], sizes = [16, 32], strides = [1, 1]} : vector<16x1024xbf16> to vector<16x32xbf16>
    %265 = arith.extf %264 : vector<16x32xbf16> to vector<16x32xf32>
    %266 = vector.broadcast %263 : vector<16x1xf32> to vector<16x32xf32>
    %267 = arith.mulf %266, %265 : vector<16x32xf32>
    %268 = arith.addf %262, %267 : vector<16x32xf32>
    %269 = vector.extract_strided_slice %243 {offsets = [0, 4], sizes = [16, 1], strides = [1, 1]} : vector<16x32xf32> to vector<16x1xf32>
    %270 = vector.extract_strided_slice %21 {offsets = [0, 128], sizes = [16, 32], strides = [1, 1]} : vector<16x1024xbf16> to vector<16x32xbf16>
    %271 = arith.extf %270 : vector<16x32xbf16> to vector<16x32xf32>
    %272 = vector.broadcast %269 : vector<16x1xf32> to vector<16x32xf32>
    %273 = arith.mulf %272, %271 : vector<16x32xf32>
    %274 = arith.addf %268, %273 : vector<16x32xf32>
    %275 = vector.extract_strided_slice %243 {offsets = [0, 5], sizes = [16, 1], strides = [1, 1]} : vector<16x32xf32> to vector<16x1xf32>
    %276 = vector.extract_strided_slice %21 {offsets = [0, 160], sizes = [16, 32], strides = [1, 1]} : vector<16x1024xbf16> to vector<16x32xbf16>
    %277 = arith.extf %276 : vector<16x32xbf16> to vector<16x32xf32>
    %278 = vector.broadcast %275 : vector<16x1xf32> to vector<16x32xf32>
    %279 = arith.mulf %278, %277 : vector<16x32xf32>
    %280 = arith.addf %274, %279 : vector<16x32xf32>
    %281 = vector.extract_strided_slice %243 {offsets = [0, 6], sizes = [16, 1], strides = [1, 1]} : vector<16x32xf32> to vector<16x1xf32>
    %282 = vector.extract_strided_slice %21 {offsets = [0, 192], sizes = [16, 32], strides = [1, 1]} : vector<16x1024xbf16> to vector<16x32xbf16>
    %283 = arith.extf %282 : vector<16x32xbf16> to vector<16x32xf32>
    %284 = vector.broadcast %281 : vector<16x1xf32> to vector<16x32xf32>
    %285 = arith.mulf %284, %283 : vector<16x32xf32>
    %286 = arith.addf %280, %285 : vector<16x32xf32>
    %287 = vector.extract_strided_slice %243 {offsets = [0, 7], sizes = [16, 1], strides = [1, 1]} : vector<16x32xf32> to vector<16x1xf32>
    %288 = vector.extract_strided_slice %21 {offsets = [0, 224], sizes = [16, 32], strides = [1, 1]} : vector<16x1024xbf16> to vector<16x32xbf16>
    %289 = arith.extf %288 : vector<16x32xbf16> to vector<16x32xf32>
    %290 = vector.broadcast %287 : vector<16x1xf32> to vector<16x32xf32>
    %291 = arith.mulf %290, %289 : vector<16x32xf32>
    %292 = arith.addf %286, %291 : vector<16x32xf32>
    %293 = vector.extract_strided_slice %243 {offsets = [0, 8], sizes = [16, 1], strides = [1, 1]} : vector<16x32xf32> to vector<16x1xf32>
    %294 = vector.extract_strided_slice %21 {offsets = [0, 256], sizes = [16, 32], strides = [1, 1]} : vector<16x1024xbf16> to vector<16x32xbf16>
    %295 = arith.extf %294 : vector<16x32xbf16> to vector<16x32xf32>
    %296 = vector.broadcast %293 : vector<16x1xf32> to vector<16x32xf32>
    %297 = arith.mulf %296, %295 : vector<16x32xf32>
    %298 = arith.addf %292, %297 : vector<16x32xf32>
    %299 = vector.extract_strided_slice %243 {offsets = [0, 9], sizes = [16, 1], strides = [1, 1]} : vector<16x32xf32> to vector<16x1xf32>
    %300 = vector.extract_strided_slice %21 {offsets = [0, 288], sizes = [16, 32], strides = [1, 1]} : vector<16x1024xbf16> to vector<16x32xbf16>
    %301 = arith.extf %300 : vector<16x32xbf16> to vector<16x32xf32>
    %302 = vector.broadcast %299 : vector<16x1xf32> to vector<16x32xf32>
    %303 = arith.mulf %302, %301 : vector<16x32xf32>
    %304 = arith.addf %298, %303 : vector<16x32xf32>
    %305 = vector.extract_strided_slice %243 {offsets = [0, 10], sizes = [16, 1], strides = [1, 1]} : vector<16x32xf32> to vector<16x1xf32>
    %306 = vector.extract_strided_slice %21 {offsets = [0, 320], sizes = [16, 32], strides = [1, 1]} : vector<16x1024xbf16> to vector<16x32xbf16>
    %307 = arith.extf %306 : vector<16x32xbf16> to vector<16x32xf32>
    %308 = vector.broadcast %305 : vector<16x1xf32> to vector<16x32xf32>
    %309 = arith.mulf %308, %307 : vector<16x32xf32>
    %310 = arith.addf %304, %309 : vector<16x32xf32>
    %311 = vector.extract_strided_slice %243 {offsets = [0, 11], sizes = [16, 1], strides = [1, 1]} : vector<16x32xf32> to vector<16x1xf32>
    %312 = vector.extract_strided_slice %21 {offsets = [0, 352], sizes = [16, 32], strides = [1, 1]} : vector<16x1024xbf16> to vector<16x32xbf16>
    %313 = arith.extf %312 : vector<16x32xbf16> to vector<16x32xf32>
    %314 = vector.broadcast %311 : vector<16x1xf32> to vector<16x32xf32>
    %315 = arith.mulf %314, %313 : vector<16x32xf32>
    %316 = arith.addf %310, %315 : vector<16x32xf32>
    %317 = vector.extract_strided_slice %243 {offsets = [0, 12], sizes = [16, 1], strides = [1, 1]} : vector<16x32xf32> to vector<16x1xf32>
    %318 = vector.extract_strided_slice %21 {offsets = [0, 384], sizes = [16, 32], strides = [1, 1]} : vector<16x1024xbf16> to vector<16x32xbf16>
    %319 = arith.extf %318 : vector<16x32xbf16> to vector<16x32xf32>
    %320 = vector.broadcast %317 : vector<16x1xf32> to vector<16x32xf32>
    %321 = arith.mulf %320, %319 : vector<16x32xf32>
    %322 = arith.addf %316, %321 : vector<16x32xf32>
    %323 = vector.extract_strided_slice %243 {offsets = [0, 13], sizes = [16, 1], strides = [1, 1]} : vector<16x32xf32> to vector<16x1xf32>
    %324 = vector.extract_strided_slice %21 {offsets = [0, 416], sizes = [16, 32], strides = [1, 1]} : vector<16x1024xbf16> to vector<16x32xbf16>
    %325 = arith.extf %324 : vector<16x32xbf16> to vector<16x32xf32>
    %326 = vector.broadcast %323 : vector<16x1xf32> to vector<16x32xf32>
    %327 = arith.mulf %326, %325 : vector<16x32xf32>
    %328 = arith.addf %322, %327 : vector<16x32xf32>
    %329 = vector.extract_strided_slice %243 {offsets = [0, 14], sizes = [16, 1], strides = [1, 1]} : vector<16x32xf32> to vector<16x1xf32>
    %330 = vector.extract_strided_slice %21 {offsets = [0, 448], sizes = [16, 32], strides = [1, 1]} : vector<16x1024xbf16> to vector<16x32xbf16>
    %331 = arith.extf %330 : vector<16x32xbf16> to vector<16x32xf32>
    %332 = vector.broadcast %329 : vector<16x1xf32> to vector<16x32xf32>
    %333 = arith.mulf %332, %331 : vector<16x32xf32>
    %334 = arith.addf %328, %333 : vector<16x32xf32>
    %335 = vector.extract_strided_slice %243 {offsets = [0, 15], sizes = [16, 1], strides = [1, 1]} : vector<16x32xf32> to vector<16x1xf32>
    %336 = vector.extract_strided_slice %21 {offsets = [0, 480], sizes = [16, 32], strides = [1, 1]} : vector<16x1024xbf16> to vector<16x32xbf16>
    %337 = arith.extf %336 : vector<16x32xbf16> to vector<16x32xf32>
    %338 = vector.broadcast %335 : vector<16x1xf32> to vector<16x32xf32>
    %339 = arith.mulf %338, %337 : vector<16x32xf32>
    %340 = arith.addf %334, %339 : vector<16x32xf32>
    %341 = vector.extract_strided_slice %243 {offsets = [0, 16], sizes = [16, 1], strides = [1, 1]} : vector<16x32xf32> to vector<16x1xf32>
    %342 = vector.extract_strided_slice %21 {offsets = [0, 512], sizes = [16, 32], strides = [1, 1]} : vector<16x1024xbf16> to vector<16x32xbf16>
    %343 = arith.extf %342 : vector<16x32xbf16> to vector<16x32xf32>
    %344 = vector.broadcast %341 : vector<16x1xf32> to vector<16x32xf32>
    %345 = arith.mulf %344, %343 : vector<16x32xf32>
    %346 = arith.addf %340, %345 : vector<16x32xf32>
    %347 = vector.extract_strided_slice %243 {offsets = [0, 17], sizes = [16, 1], strides = [1, 1]} : vector<16x32xf32> to vector<16x1xf32>
    %348 = vector.extract_strided_slice %21 {offsets = [0, 544], sizes = [16, 32], strides = [1, 1]} : vector<16x1024xbf16> to vector<16x32xbf16>
    %349 = arith.extf %348 : vector<16x32xbf16> to vector<16x32xf32>
    %350 = vector.broadcast %347 : vector<16x1xf32> to vector<16x32xf32>
    %351 = arith.mulf %350, %349 : vector<16x32xf32>
    %352 = arith.addf %346, %351 : vector<16x32xf32>
    %353 = vector.extract_strided_slice %243 {offsets = [0, 18], sizes = [16, 1], strides = [1, 1]} : vector<16x32xf32> to vector<16x1xf32>
    %354 = vector.extract_strided_slice %21 {offsets = [0, 576], sizes = [16, 32], strides = [1, 1]} : vector<16x1024xbf16> to vector<16x32xbf16>
    %355 = arith.extf %354 : vector<16x32xbf16> to vector<16x32xf32>
    %356 = vector.broadcast %353 : vector<16x1xf32> to vector<16x32xf32>
    %357 = arith.mulf %356, %355 : vector<16x32xf32>
    %358 = arith.addf %352, %357 : vector<16x32xf32>
    %359 = vector.extract_strided_slice %243 {offsets = [0, 19], sizes = [16, 1], strides = [1, 1]} : vector<16x32xf32> to vector<16x1xf32>
    %360 = vector.extract_strided_slice %21 {offsets = [0, 608], sizes = [16, 32], strides = [1, 1]} : vector<16x1024xbf16> to vector<16x32xbf16>
    %361 = arith.extf %360 : vector<16x32xbf16> to vector<16x32xf32>
    %362 = vector.broadcast %359 : vector<16x1xf32> to vector<16x32xf32>
    %363 = arith.mulf %362, %361 : vector<16x32xf32>
    %364 = arith.addf %358, %363 : vector<16x32xf32>
    %365 = vector.extract_strided_slice %243 {offsets = [0, 20], sizes = [16, 1], strides = [1, 1]} : vector<16x32xf32> to vector<16x1xf32>
    %366 = vector.extract_strided_slice %21 {offsets = [0, 640], sizes = [16, 32], strides = [1, 1]} : vector<16x1024xbf16> to vector<16x32xbf16>
    %367 = arith.extf %366 : vector<16x32xbf16> to vector<16x32xf32>
    %368 = vector.broadcast %365 : vector<16x1xf32> to vector<16x32xf32>
    %369 = arith.mulf %368, %367 : vector<16x32xf32>
    %370 = arith.addf %364, %369 : vector<16x32xf32>
    %371 = vector.extract_strided_slice %243 {offsets = [0, 21], sizes = [16, 1], strides = [1, 1]} : vector<16x32xf32> to vector<16x1xf32>
    %372 = vector.extract_strided_slice %21 {offsets = [0, 672], sizes = [16, 32], strides = [1, 1]} : vector<16x1024xbf16> to vector<16x32xbf16>
    %373 = arith.extf %372 : vector<16x32xbf16> to vector<16x32xf32>
    %374 = vector.broadcast %371 : vector<16x1xf32> to vector<16x32xf32>
    %375 = arith.mulf %374, %373 : vector<16x32xf32>
    %376 = arith.addf %370, %375 : vector<16x32xf32>
    %377 = vector.extract_strided_slice %243 {offsets = [0, 22], sizes = [16, 1], strides = [1, 1]} : vector<16x32xf32> to vector<16x1xf32>
    %378 = vector.extract_strided_slice %21 {offsets = [0, 704], sizes = [16, 32], strides = [1, 1]} : vector<16x1024xbf16> to vector<16x32xbf16>
    %379 = arith.extf %378 : vector<16x32xbf16> to vector<16x32xf32>
    %380 = vector.broadcast %377 : vector<16x1xf32> to vector<16x32xf32>
    %381 = arith.mulf %380, %379 : vector<16x32xf32>
    %382 = arith.addf %376, %381 : vector<16x32xf32>
    %383 = vector.extract_strided_slice %243 {offsets = [0, 23], sizes = [16, 1], strides = [1, 1]} : vector<16x32xf32> to vector<16x1xf32>
    %384 = vector.extract_strided_slice %21 {offsets = [0, 736], sizes = [16, 32], strides = [1, 1]} : vector<16x1024xbf16> to vector<16x32xbf16>
    %385 = arith.extf %384 : vector<16x32xbf16> to vector<16x32xf32>
    %386 = vector.broadcast %383 : vector<16x1xf32> to vector<16x32xf32>
    %387 = arith.mulf %386, %385 : vector<16x32xf32>
    %388 = arith.addf %382, %387 : vector<16x32xf32>
    %389 = vector.extract_strided_slice %243 {offsets = [0, 24], sizes = [16, 1], strides = [1, 1]} : vector<16x32xf32> to vector<16x1xf32>
    %390 = vector.extract_strided_slice %21 {offsets = [0, 768], sizes = [16, 32], strides = [1, 1]} : vector<16x1024xbf16> to vector<16x32xbf16>
    %391 = arith.extf %390 : vector<16x32xbf16> to vector<16x32xf32>
    %392 = vector.broadcast %389 : vector<16x1xf32> to vector<16x32xf32>
    %393 = arith.mulf %392, %391 : vector<16x32xf32>
    %394 = arith.addf %388, %393 : vector<16x32xf32>
    %395 = vector.extract_strided_slice %243 {offsets = [0, 25], sizes = [16, 1], strides = [1, 1]} : vector<16x32xf32> to vector<16x1xf32>
    %396 = vector.extract_strided_slice %21 {offsets = [0, 800], sizes = [16, 32], strides = [1, 1]} : vector<16x1024xbf16> to vector<16x32xbf16>
    %397 = arith.extf %396 : vector<16x32xbf16> to vector<16x32xf32>
    %398 = vector.broadcast %395 : vector<16x1xf32> to vector<16x32xf32>
    %399 = arith.mulf %398, %397 : vector<16x32xf32>
    %400 = arith.addf %394, %399 : vector<16x32xf32>
    %401 = vector.extract_strided_slice %243 {offsets = [0, 26], sizes = [16, 1], strides = [1, 1]} : vector<16x32xf32> to vector<16x1xf32>
    %402 = vector.extract_strided_slice %21 {offsets = [0, 832], sizes = [16, 32], strides = [1, 1]} : vector<16x1024xbf16> to vector<16x32xbf16>
    %403 = arith.extf %402 : vector<16x32xbf16> to vector<16x32xf32>
    %404 = vector.broadcast %401 : vector<16x1xf32> to vector<16x32xf32>
    %405 = arith.mulf %404, %403 : vector<16x32xf32>
    %406 = arith.addf %400, %405 : vector<16x32xf32>
    %407 = vector.extract_strided_slice %243 {offsets = [0, 27], sizes = [16, 1], strides = [1, 1]} : vector<16x32xf32> to vector<16x1xf32>
    %408 = vector.extract_strided_slice %21 {offsets = [0, 864], sizes = [16, 32], strides = [1, 1]} : vector<16x1024xbf16> to vector<16x32xbf16>
    %409 = arith.extf %408 : vector<16x32xbf16> to vector<16x32xf32>
    %410 = vector.broadcast %407 : vector<16x1xf32> to vector<16x32xf32>
    %411 = arith.mulf %410, %409 : vector<16x32xf32>
    %412 = arith.addf %406, %411 : vector<16x32xf32>
    %413 = vector.extract_strided_slice %243 {offsets = [0, 28], sizes = [16, 1], strides = [1, 1]} : vector<16x32xf32> to vector<16x1xf32>
    %414 = vector.extract_strided_slice %21 {offsets = [0, 896], sizes = [16, 32], strides = [1, 1]} : vector<16x1024xbf16> to vector<16x32xbf16>
    %415 = arith.extf %414 : vector<16x32xbf16> to vector<16x32xf32>
    %416 = vector.broadcast %413 : vector<16x1xf32> to vector<16x32xf32>
    %417 = arith.mulf %416, %415 : vector<16x32xf32>
    %418 = arith.addf %412, %417 : vector<16x32xf32>
    %419 = vector.extract_strided_slice %243 {offsets = [0, 29], sizes = [16, 1], strides = [1, 1]} : vector<16x32xf32> to vector<16x1xf32>
    %420 = vector.extract_strided_slice %21 {offsets = [0, 928], sizes = [16, 32], strides = [1, 1]} : vector<16x1024xbf16> to vector<16x32xbf16>
    %421 = arith.extf %420 : vector<16x32xbf16> to vector<16x32xf32>
    %422 = vector.broadcast %419 : vector<16x1xf32> to vector<16x32xf32>
    %423 = arith.mulf %422, %421 : vector<16x32xf32>
    %424 = arith.addf %418, %423 : vector<16x32xf32>
    %425 = vector.extract_strided_slice %243 {offsets = [0, 30], sizes = [16, 1], strides = [1, 1]} : vector<16x32xf32> to vector<16x1xf32>
    %426 = vector.extract_strided_slice %21 {offsets = [0, 960], sizes = [16, 32], strides = [1, 1]} : vector<16x1024xbf16> to vector<16x32xbf16>
    %427 = arith.extf %426 : vector<16x32xbf16> to vector<16x32xf32>
    %428 = vector.broadcast %425 : vector<16x1xf32> to vector<16x32xf32>
    %429 = arith.mulf %428, %427 : vector<16x32xf32>
    %430 = arith.addf %424, %429 : vector<16x32xf32>
    %431 = vector.extract_strided_slice %243 {offsets = [0, 31], sizes = [16, 1], strides = [1, 1]} : vector<16x32xf32> to vector<16x1xf32>
    %432 = vector.extract_strided_slice %21 {offsets = [0, 992], sizes = [16, 32], strides = [1, 1]} : vector<16x1024xbf16> to vector<16x32xbf16>
    %433 = arith.extf %432 : vector<16x32xbf16> to vector<16x32xf32>
    %434 = vector.broadcast %431 : vector<16x1xf32> to vector<16x32xf32>
    %435 = arith.mulf %434, %433 : vector<16x32xf32>
    %436 = arith.addf %430, %435 : vector<16x32xf32>
    %437 = arith.truncf %436 : vector<16x32xf32> to vector<16x32xbf16>
    %cst_40 = arith.constant dense<0.000000e+00> : vector<8x32xf32>
    %438 = tpu.matmul %23, %437, %cst_40 {dimension_numbers = #tpu.dot_dimension_numbers<[1], [0], [0], [1], [0, 0, 1, 1], [], []>} : vector<8x16xbf16>, vector<16x32xbf16>, vector<8x32xf32> -> vector<8x32xf32>
    %439 = arith.addf %438, %241 : vector<8x32xf32>
    %440 = vector.broadcast %24 : vector<1x32xf32> to vector<8x32xf32>
    %441 = arith.addf %439, %440 : vector<8x32xf32>
    %cst_41 = arith.constant 1.000000e-01 : f32
    %442 = vector.broadcast %cst_41 : f32 to vector<8x32xf32>
    %443 = arith.mulf %442, %441 : vector<8x32xf32>
    %cst_42 = arith.constant 0.899999976 : f32
    %444 = vector.broadcast %cst_42 : f32 to vector<8x32xf32>
    %445 = arith.mulf %444, %7 : vector<8x32xf32>
    %446 = arith.addf %443, %445 : vector<8x32xf32>
    %cst_43 = arith.constant dense<0.000000e+00> : vector<8x32xf32>
    %447 = tpu.matmul %446, %25, %cst_43 {dimension_numbers = #tpu.dot_dimension_numbers<[1], [0], [0], [1], [0, 0, 1, 1], [], []>} : vector<8x32xf32>, vector<32x32xf32>, vector<8x32xf32> -> vector<8x32xf32>
    %448 = vector.broadcast %26 : vector<1x32xf32> to vector<8x32xf32>
    %449 = arith.addf %447, %448 : vector<8x32xf32>
    %cst_44 = arith.constant 0.333333343 : f32
    %450 = vector.broadcast %cst_44 : f32 to vector<8x32xf32>
    %451 = arith.mulf %450, %449 : vector<8x32xf32>
    %cst_45 = arith.constant 0.666666686 : f32
    %452 = vector.broadcast %cst_45 : f32 to vector<8x32xf32>
    %453 = arith.mulf %452, %446 : vector<8x32xf32>
    %454 = arith.addf %451, %453 : vector<8x32xf32>
    %cst_46 = arith.constant 0.000000e+00 : f32
    %455 = vector.broadcast %cst_46 : f32 to vector<8x32xf32>
    %456 = arith.maximumf %454, %455 : vector<8x32xf32>
    %c2_i32 = arith.constant 2 : i32
    %457 = arith.truncf %456 : vector<8x32xf32> to vector<8x32xbf16>
    %cst_47 = arith.constant dense<0.000000e+00> : vector<16x32xf32>
    %458 = tpu.matmul %22, %457, %cst_47 {dimension_numbers = #tpu.dot_dimension_numbers<[1], [0], [0], [1], [0, 0, 1, 1], [], []>} : vector<16x8xbf16>, vector<8x32xbf16>, vector<16x32xf32> -> vector<16x32xf32>
    %cst_48 = arith.constant 0.000000e+00 : f32
    %459 = vector.broadcast %cst_48 : f32 to vector<16x32xf32>
    %460 = vector.extract_strided_slice %458 {offsets = [0, 0], sizes = [16, 1], strides = [1, 1]} : vector<16x32xf32> to vector<16x1xf32>
    %461 = vector.extract_strided_slice %21 {offsets = [0, 0], sizes = [16, 32], strides = [1, 1]} : vector<16x1024xbf16> to vector<16x32xbf16>
    %462 = arith.extf %461 : vector<16x32xbf16> to vector<16x32xf32>
    %463 = vector.broadcast %460 : vector<16x1xf32> to vector<16x32xf32>
    %464 = arith.mulf %463, %462 : vector<16x32xf32>
    %465 = arith.addf %459, %464 : vector<16x32xf32>
    %466 = vector.extract_strided_slice %458 {offsets = [0, 1], sizes = [16, 1], strides = [1, 1]} : vector<16x32xf32> to vector<16x1xf32>
    %467 = vector.extract_strided_slice %21 {offsets = [0, 32], sizes = [16, 32], strides = [1, 1]} : vector<16x1024xbf16> to vector<16x32xbf16>
    %468 = arith.extf %467 : vector<16x32xbf16> to vector<16x32xf32>
    %469 = vector.broadcast %466 : vector<16x1xf32> to vector<16x32xf32>
    %470 = arith.mulf %469, %468 : vector<16x32xf32>
    %471 = arith.addf %465, %470 : vector<16x32xf32>
    %472 = vector.extract_strided_slice %458 {offsets = [0, 2], sizes = [16, 1], strides = [1, 1]} : vector<16x32xf32> to vector<16x1xf32>
    %473 = vector.extract_strided_slice %21 {offsets = [0, 64], sizes = [16, 32], strides = [1, 1]} : vector<16x1024xbf16> to vector<16x32xbf16>
    %474 = arith.extf %473 : vector<16x32xbf16> to vector<16x32xf32>
    %475 = vector.broadcast %472 : vector<16x1xf32> to vector<16x32xf32>
    %476 = arith.mulf %475, %474 : vector<16x32xf32>
    %477 = arith.addf %471, %476 : vector<16x32xf32>
    %478 = vector.extract_strided_slice %458 {offsets = [0, 3], sizes = [16, 1], strides = [1, 1]} : vector<16x32xf32> to vector<16x1xf32>
    %479 = vector.extract_strided_slice %21 {offsets = [0, 96], sizes = [16, 32], strides = [1, 1]} : vector<16x1024xbf16> to vector<16x32xbf16>
    %480 = arith.extf %479 : vector<16x32xbf16> to vector<16x32xf32>
    %481 = vector.broadcast %478 : vector<16x1xf32> to vector<16x32xf32>
    %482 = arith.mulf %481, %480 : vector<16x32xf32>
    %483 = arith.addf %477, %482 : vector<16x32xf32>
    %484 = vector.extract_strided_slice %458 {offsets = [0, 4], sizes = [16, 1], strides = [1, 1]} : vector<16x32xf32> to vector<16x1xf32>
    %485 = vector.extract_strided_slice %21 {offsets = [0, 128], sizes = [16, 32], strides = [1, 1]} : vector<16x1024xbf16> to vector<16x32xbf16>
    %486 = arith.extf %485 : vector<16x32xbf16> to vector<16x32xf32>
    %487 = vector.broadcast %484 : vector<16x1xf32> to vector<16x32xf32>
    %488 = arith.mulf %487, %486 : vector<16x32xf32>
    %489 = arith.addf %483, %488 : vector<16x32xf32>
    %490 = vector.extract_strided_slice %458 {offsets = [0, 5], sizes = [16, 1], strides = [1, 1]} : vector<16x32xf32> to vector<16x1xf32>
    %491 = vector.extract_strided_slice %21 {offsets = [0, 160], sizes = [16, 32], strides = [1, 1]} : vector<16x1024xbf16> to vector<16x32xbf16>
    %492 = arith.extf %491 : vector<16x32xbf16> to vector<16x32xf32>
    %493 = vector.broadcast %490 : vector<16x1xf32> to vector<16x32xf32>
    %494 = arith.mulf %493, %492 : vector<16x32xf32>
    %495 = arith.addf %489, %494 : vector<16x32xf32>
    %496 = vector.extract_strided_slice %458 {offsets = [0, 6], sizes = [16, 1], strides = [1, 1]} : vector<16x32xf32> to vector<16x1xf32>
    %497 = vector.extract_strided_slice %21 {offsets = [0, 192], sizes = [16, 32], strides = [1, 1]} : vector<16x1024xbf16> to vector<16x32xbf16>
    %498 = arith.extf %497 : vector<16x32xbf16> to vector<16x32xf32>
    %499 = vector.broadcast %496 : vector<16x1xf32> to vector<16x32xf32>
    %500 = arith.mulf %499, %498 : vector<16x32xf32>
    %501 = arith.addf %495, %500 : vector<16x32xf32>
    %502 = vector.extract_strided_slice %458 {offsets = [0, 7], sizes = [16, 1], strides = [1, 1]} : vector<16x32xf32> to vector<16x1xf32>
    %503 = vector.extract_strided_slice %21 {offsets = [0, 224], sizes = [16, 32], strides = [1, 1]} : vector<16x1024xbf16> to vector<16x32xbf16>
    %504 = arith.extf %503 : vector<16x32xbf16> to vector<16x32xf32>
    %505 = vector.broadcast %502 : vector<16x1xf32> to vector<16x32xf32>
    %506 = arith.mulf %505, %504 : vector<16x32xf32>
    %507 = arith.addf %501, %506 : vector<16x32xf32>
    %508 = vector.extract_strided_slice %458 {offsets = [0, 8], sizes = [16, 1], strides = [1, 1]} : vector<16x32xf32> to vector<16x1xf32>
    %509 = vector.extract_strided_slice %21 {offsets = [0, 256], sizes = [16, 32], strides = [1, 1]} : vector<16x1024xbf16> to vector<16x32xbf16>
    %510 = arith.extf %509 : vector<16x32xbf16> to vector<16x32xf32>
    %511 = vector.broadcast %508 : vector<16x1xf32> to vector<16x32xf32>
    %512 = arith.mulf %511, %510 : vector<16x32xf32>
    %513 = arith.addf %507, %512 : vector<16x32xf32>
    %514 = vector.extract_strided_slice %458 {offsets = [0, 9], sizes = [16, 1], strides = [1, 1]} : vector<16x32xf32> to vector<16x1xf32>
    %515 = vector.extract_strided_slice %21 {offsets = [0, 288], sizes = [16, 32], strides = [1, 1]} : vector<16x1024xbf16> to vector<16x32xbf16>
    %516 = arith.extf %515 : vector<16x32xbf16> to vector<16x32xf32>
    %517 = vector.broadcast %514 : vector<16x1xf32> to vector<16x32xf32>
    %518 = arith.mulf %517, %516 : vector<16x32xf32>
    %519 = arith.addf %513, %518 : vector<16x32xf32>
    %520 = vector.extract_strided_slice %458 {offsets = [0, 10], sizes = [16, 1], strides = [1, 1]} : vector<16x32xf32> to vector<16x1xf32>
    %521 = vector.extract_strided_slice %21 {offsets = [0, 320], sizes = [16, 32], strides = [1, 1]} : vector<16x1024xbf16> to vector<16x32xbf16>
    %522 = arith.extf %521 : vector<16x32xbf16> to vector<16x32xf32>
    %523 = vector.broadcast %520 : vector<16x1xf32> to vector<16x32xf32>
    %524 = arith.mulf %523, %522 : vector<16x32xf32>
    %525 = arith.addf %519, %524 : vector<16x32xf32>
    %526 = vector.extract_strided_slice %458 {offsets = [0, 11], sizes = [16, 1], strides = [1, 1]} : vector<16x32xf32> to vector<16x1xf32>
    %527 = vector.extract_strided_slice %21 {offsets = [0, 352], sizes = [16, 32], strides = [1, 1]} : vector<16x1024xbf16> to vector<16x32xbf16>
    %528 = arith.extf %527 : vector<16x32xbf16> to vector<16x32xf32>
    %529 = vector.broadcast %526 : vector<16x1xf32> to vector<16x32xf32>
    %530 = arith.mulf %529, %528 : vector<16x32xf32>
    %531 = arith.addf %525, %530 : vector<16x32xf32>
    %532 = vector.extract_strided_slice %458 {offsets = [0, 12], sizes = [16, 1], strides = [1, 1]} : vector<16x32xf32> to vector<16x1xf32>
    %533 = vector.extract_strided_slice %21 {offsets = [0, 384], sizes = [16, 32], strides = [1, 1]} : vector<16x1024xbf16> to vector<16x32xbf16>
    %534 = arith.extf %533 : vector<16x32xbf16> to vector<16x32xf32>
    %535 = vector.broadcast %532 : vector<16x1xf32> to vector<16x32xf32>
    %536 = arith.mulf %535, %534 : vector<16x32xf32>
    %537 = arith.addf %531, %536 : vector<16x32xf32>
    %538 = vector.extract_strided_slice %458 {offsets = [0, 13], sizes = [16, 1], strides = [1, 1]} : vector<16x32xf32> to vector<16x1xf32>
    %539 = vector.extract_strided_slice %21 {offsets = [0, 416], sizes = [16, 32], strides = [1, 1]} : vector<16x1024xbf16> to vector<16x32xbf16>
    %540 = arith.extf %539 : vector<16x32xbf16> to vector<16x32xf32>
    %541 = vector.broadcast %538 : vector<16x1xf32> to vector<16x32xf32>
    %542 = arith.mulf %541, %540 : vector<16x32xf32>
    %543 = arith.addf %537, %542 : vector<16x32xf32>
    %544 = vector.extract_strided_slice %458 {offsets = [0, 14], sizes = [16, 1], strides = [1, 1]} : vector<16x32xf32> to vector<16x1xf32>
    %545 = vector.extract_strided_slice %21 {offsets = [0, 448], sizes = [16, 32], strides = [1, 1]} : vector<16x1024xbf16> to vector<16x32xbf16>
    %546 = arith.extf %545 : vector<16x32xbf16> to vector<16x32xf32>
    %547 = vector.broadcast %544 : vector<16x1xf32> to vector<16x32xf32>
    %548 = arith.mulf %547, %546 : vector<16x32xf32>
    %549 = arith.addf %543, %548 : vector<16x32xf32>
    %550 = vector.extract_strided_slice %458 {offsets = [0, 15], sizes = [16, 1], strides = [1, 1]} : vector<16x32xf32> to vector<16x1xf32>
    %551 = vector.extract_strided_slice %21 {offsets = [0, 480], sizes = [16, 32], strides = [1, 1]} : vector<16x1024xbf16> to vector<16x32xbf16>
    %552 = arith.extf %551 : vector<16x32xbf16> to vector<16x32xf32>
    %553 = vector.broadcast %550 : vector<16x1xf32> to vector<16x32xf32>
    %554 = arith.mulf %553, %552 : vector<16x32xf32>
    %555 = arith.addf %549, %554 : vector<16x32xf32>
    %556 = vector.extract_strided_slice %458 {offsets = [0, 16], sizes = [16, 1], strides = [1, 1]} : vector<16x32xf32> to vector<16x1xf32>
    %557 = vector.extract_strided_slice %21 {offsets = [0, 512], sizes = [16, 32], strides = [1, 1]} : vector<16x1024xbf16> to vector<16x32xbf16>
    %558 = arith.extf %557 : vector<16x32xbf16> to vector<16x32xf32>
    %559 = vector.broadcast %556 : vector<16x1xf32> to vector<16x32xf32>
    %560 = arith.mulf %559, %558 : vector<16x32xf32>
    %561 = arith.addf %555, %560 : vector<16x32xf32>
    %562 = vector.extract_strided_slice %458 {offsets = [0, 17], sizes = [16, 1], strides = [1, 1]} : vector<16x32xf32> to vector<16x1xf32>
    %563 = vector.extract_strided_slice %21 {offsets = [0, 544], sizes = [16, 32], strides = [1, 1]} : vector<16x1024xbf16> to vector<16x32xbf16>
    %564 = arith.extf %563 : vector<16x32xbf16> to vector<16x32xf32>
    %565 = vector.broadcast %562 : vector<16x1xf32> to vector<16x32xf32>
    %566 = arith.mulf %565, %564 : vector<16x32xf32>
    %567 = arith.addf %561, %566 : vector<16x32xf32>
    %568 = vector.extract_strided_slice %458 {offsets = [0, 18], sizes = [16, 1], strides = [1, 1]} : vector<16x32xf32> to vector<16x1xf32>
    %569 = vector.extract_strided_slice %21 {offsets = [0, 576], sizes = [16, 32], strides = [1, 1]} : vector<16x1024xbf16> to vector<16x32xbf16>
    %570 = arith.extf %569 : vector<16x32xbf16> to vector<16x32xf32>
    %571 = vector.broadcast %568 : vector<16x1xf32> to vector<16x32xf32>
    %572 = arith.mulf %571, %570 : vector<16x32xf32>
    %573 = arith.addf %567, %572 : vector<16x32xf32>
    %574 = vector.extract_strided_slice %458 {offsets = [0, 19], sizes = [16, 1], strides = [1, 1]} : vector<16x32xf32> to vector<16x1xf32>
    %575 = vector.extract_strided_slice %21 {offsets = [0, 608], sizes = [16, 32], strides = [1, 1]} : vector<16x1024xbf16> to vector<16x32xbf16>
    %576 = arith.extf %575 : vector<16x32xbf16> to vector<16x32xf32>
    %577 = vector.broadcast %574 : vector<16x1xf32> to vector<16x32xf32>
    %578 = arith.mulf %577, %576 : vector<16x32xf32>
    %579 = arith.addf %573, %578 : vector<16x32xf32>
    %580 = vector.extract_strided_slice %458 {offsets = [0, 20], sizes = [16, 1], strides = [1, 1]} : vector<16x32xf32> to vector<16x1xf32>
    %581 = vector.extract_strided_slice %21 {offsets = [0, 640], sizes = [16, 32], strides = [1, 1]} : vector<16x1024xbf16> to vector<16x32xbf16>
    %582 = arith.extf %581 : vector<16x32xbf16> to vector<16x32xf32>
    %583 = vector.broadcast %580 : vector<16x1xf32> to vector<16x32xf32>
    %584 = arith.mulf %583, %582 : vector<16x32xf32>
    %585 = arith.addf %579, %584 : vector<16x32xf32>
    %586 = vector.extract_strided_slice %458 {offsets = [0, 21], sizes = [16, 1], strides = [1, 1]} : vector<16x32xf32> to vector<16x1xf32>
    %587 = vector.extract_strided_slice %21 {offsets = [0, 672], sizes = [16, 32], strides = [1, 1]} : vector<16x1024xbf16> to vector<16x32xbf16>
    %588 = arith.extf %587 : vector<16x32xbf16> to vector<16x32xf32>
    %589 = vector.broadcast %586 : vector<16x1xf32> to vector<16x32xf32>
    %590 = arith.mulf %589, %588 : vector<16x32xf32>
    %591 = arith.addf %585, %590 : vector<16x32xf32>
    %592 = vector.extract_strided_slice %458 {offsets = [0, 22], sizes = [16, 1], strides = [1, 1]} : vector<16x32xf32> to vector<16x1xf32>
    %593 = vector.extract_strided_slice %21 {offsets = [0, 704], sizes = [16, 32], strides = [1, 1]} : vector<16x1024xbf16> to vector<16x32xbf16>
    %594 = arith.extf %593 : vector<16x32xbf16> to vector<16x32xf32>
    %595 = vector.broadcast %592 : vector<16x1xf32> to vector<16x32xf32>
    %596 = arith.mulf %595, %594 : vector<16x32xf32>
    %597 = arith.addf %591, %596 : vector<16x32xf32>
    %598 = vector.extract_strided_slice %458 {offsets = [0, 23], sizes = [16, 1], strides = [1, 1]} : vector<16x32xf32> to vector<16x1xf32>
    %599 = vector.extract_strided_slice %21 {offsets = [0, 736], sizes = [16, 32], strides = [1, 1]} : vector<16x1024xbf16> to vector<16x32xbf16>
    %600 = arith.extf %599 : vector<16x32xbf16> to vector<16x32xf32>
    %601 = vector.broadcast %598 : vector<16x1xf32> to vector<16x32xf32>
    %602 = arith.mulf %601, %600 : vector<16x32xf32>
    %603 = arith.addf %597, %602 : vector<16x32xf32>
    %604 = vector.extract_strided_slice %458 {offsets = [0, 24], sizes = [16, 1], strides = [1, 1]} : vector<16x32xf32> to vector<16x1xf32>
    %605 = vector.extract_strided_slice %21 {offsets = [0, 768], sizes = [16, 32], strides = [1, 1]} : vector<16x1024xbf16> to vector<16x32xbf16>
    %606 = arith.extf %605 : vector<16x32xbf16> to vector<16x32xf32>
    %607 = vector.broadcast %604 : vector<16x1xf32> to vector<16x32xf32>
    %608 = arith.mulf %607, %606 : vector<16x32xf32>
    %609 = arith.addf %603, %608 : vector<16x32xf32>
    %610 = vector.extract_strided_slice %458 {offsets = [0, 25], sizes = [16, 1], strides = [1, 1]} : vector<16x32xf32> to vector<16x1xf32>
    %611 = vector.extract_strided_slice %21 {offsets = [0, 800], sizes = [16, 32], strides = [1, 1]} : vector<16x1024xbf16> to vector<16x32xbf16>
    %612 = arith.extf %611 : vector<16x32xbf16> to vector<16x32xf32>
    %613 = vector.broadcast %610 : vector<16x1xf32> to vector<16x32xf32>
    %614 = arith.mulf %613, %612 : vector<16x32xf32>
    %615 = arith.addf %609, %614 : vector<16x32xf32>
    %616 = vector.extract_strided_slice %458 {offsets = [0, 26], sizes = [16, 1], strides = [1, 1]} : vector<16x32xf32> to vector<16x1xf32>
    %617 = vector.extract_strided_slice %21 {offsets = [0, 832], sizes = [16, 32], strides = [1, 1]} : vector<16x1024xbf16> to vector<16x32xbf16>
    %618 = arith.extf %617 : vector<16x32xbf16> to vector<16x32xf32>
    %619 = vector.broadcast %616 : vector<16x1xf32> to vector<16x32xf32>
    %620 = arith.mulf %619, %618 : vector<16x32xf32>
    %621 = arith.addf %615, %620 : vector<16x32xf32>
    %622 = vector.extract_strided_slice %458 {offsets = [0, 27], sizes = [16, 1], strides = [1, 1]} : vector<16x32xf32> to vector<16x1xf32>
    %623 = vector.extract_strided_slice %21 {offsets = [0, 864], sizes = [16, 32], strides = [1, 1]} : vector<16x1024xbf16> to vector<16x32xbf16>
    %624 = arith.extf %623 : vector<16x32xbf16> to vector<16x32xf32>
    %625 = vector.broadcast %622 : vector<16x1xf32> to vector<16x32xf32>
    %626 = arith.mulf %625, %624 : vector<16x32xf32>
    %627 = arith.addf %621, %626 : vector<16x32xf32>
    %628 = vector.extract_strided_slice %458 {offsets = [0, 28], sizes = [16, 1], strides = [1, 1]} : vector<16x32xf32> to vector<16x1xf32>
    %629 = vector.extract_strided_slice %21 {offsets = [0, 896], sizes = [16, 32], strides = [1, 1]} : vector<16x1024xbf16> to vector<16x32xbf16>
    %630 = arith.extf %629 : vector<16x32xbf16> to vector<16x32xf32>
    %631 = vector.broadcast %628 : vector<16x1xf32> to vector<16x32xf32>
    %632 = arith.mulf %631, %630 : vector<16x32xf32>
    %633 = arith.addf %627, %632 : vector<16x32xf32>
    %634 = vector.extract_strided_slice %458 {offsets = [0, 29], sizes = [16, 1], strides = [1, 1]} : vector<16x32xf32> to vector<16x1xf32>
    %635 = vector.extract_strided_slice %21 {offsets = [0, 928], sizes = [16, 32], strides = [1, 1]} : vector<16x1024xbf16> to vector<16x32xbf16>
    %636 = arith.extf %635 : vector<16x32xbf16> to vector<16x32xf32>
    %637 = vector.broadcast %634 : vector<16x1xf32> to vector<16x32xf32>
    %638 = arith.mulf %637, %636 : vector<16x32xf32>
    %639 = arith.addf %633, %638 : vector<16x32xf32>
    %640 = vector.extract_strided_slice %458 {offsets = [0, 30], sizes = [16, 1], strides = [1, 1]} : vector<16x32xf32> to vector<16x1xf32>
    %641 = vector.extract_strided_slice %21 {offsets = [0, 960], sizes = [16, 32], strides = [1, 1]} : vector<16x1024xbf16> to vector<16x32xbf16>
    %642 = arith.extf %641 : vector<16x32xbf16> to vector<16x32xf32>
    %643 = vector.broadcast %640 : vector<16x1xf32> to vector<16x32xf32>
    %644 = arith.mulf %643, %642 : vector<16x32xf32>
    %645 = arith.addf %639, %644 : vector<16x32xf32>
    %646 = vector.extract_strided_slice %458 {offsets = [0, 31], sizes = [16, 1], strides = [1, 1]} : vector<16x32xf32> to vector<16x1xf32>
    %647 = vector.extract_strided_slice %21 {offsets = [0, 992], sizes = [16, 32], strides = [1, 1]} : vector<16x1024xbf16> to vector<16x32xbf16>
    %648 = arith.extf %647 : vector<16x32xbf16> to vector<16x32xf32>
    %649 = vector.broadcast %646 : vector<16x1xf32> to vector<16x32xf32>
    %650 = arith.mulf %649, %648 : vector<16x32xf32>
    %651 = arith.addf %645, %650 : vector<16x32xf32>
    %652 = arith.truncf %651 : vector<16x32xf32> to vector<16x32xbf16>
    %cst_49 = arith.constant dense<0.000000e+00> : vector<8x32xf32>
    %653 = tpu.matmul %23, %652, %cst_49 {dimension_numbers = #tpu.dot_dimension_numbers<[1], [0], [0], [1], [0, 0, 1, 1], [], []>} : vector<8x16xbf16>, vector<16x32xbf16>, vector<8x32xf32> -> vector<8x32xf32>
    %654 = arith.addf %653, %456 : vector<8x32xf32>
    %655 = vector.broadcast %24 : vector<1x32xf32> to vector<8x32xf32>
    %656 = arith.addf %654, %655 : vector<8x32xf32>
    %cst_50 = arith.constant 1.000000e-01 : f32
    %657 = vector.broadcast %cst_50 : f32 to vector<8x32xf32>
    %658 = arith.mulf %657, %656 : vector<8x32xf32>
    %cst_51 = arith.constant 0.899999976 : f32
    %659 = vector.broadcast %cst_51 : f32 to vector<8x32xf32>
    %660 = arith.mulf %659, %7 : vector<8x32xf32>
    %661 = arith.addf %658, %660 : vector<8x32xf32>
    %cst_52 = arith.constant dense<0.000000e+00> : vector<8x32xf32>
    %662 = tpu.matmul %661, %25, %cst_52 {dimension_numbers = #tpu.dot_dimension_numbers<[1], [0], [0], [1], [0, 0, 1, 1], [], []>} : vector<8x32xf32>, vector<32x32xf32>, vector<8x32xf32> -> vector<8x32xf32>
    %663 = vector.broadcast %26 : vector<1x32xf32> to vector<8x32xf32>
    %664 = arith.addf %662, %663 : vector<8x32xf32>
    %cst_53 = arith.constant 0.333333343 : f32
    %665 = vector.broadcast %cst_53 : f32 to vector<8x32xf32>
    %666 = arith.mulf %665, %664 : vector<8x32xf32>
    %cst_54 = arith.constant 0.666666686 : f32
    %667 = vector.broadcast %cst_54 : f32 to vector<8x32xf32>
    %668 = arith.mulf %667, %661 : vector<8x32xf32>
    %669 = arith.addf %666, %668 : vector<8x32xf32>
    %cst_55 = arith.constant 0.000000e+00 : f32
    %670 = vector.broadcast %cst_55 : f32 to vector<8x32xf32>
    %671 = arith.maximumf %669, %670 : vector<8x32xf32>
    %c0_56 = arith.constant 0 : index
    %c0_57 = arith.constant 0 : index
    %672 = vector.load %arg13[%c0_56, %c0_57] : memref<32x4xf32, #tpu.memory_space<vmem>>, vector<32x4xf32>
    %cst_58 = arith.constant dense<0.000000e+00> : vector<8x4xf32>
    %673 = tpu.matmul %671, %672, %cst_58 {dimension_numbers = #tpu.dot_dimension_numbers<[1], [0], [0], [1], [0, 0, 1, 1], [], []>} : vector<8x32xf32>, vector<32x4xf32>, vector<8x4xf32> -> vector<8x4xf32>
    %c0_59 = arith.constant 0 : index
    %c0_60 = arith.constant 0 : index
    %674 = vector.load %arg14[%c0_59, %c0_60] : memref<1x4xf32, #tpu.memory_space<vmem>>, vector<1x4xf32>
    %675 = vector.broadcast %674 : vector<1x4xf32> to vector<8x4xf32>
    %676 = arith.addf %673, %675 : vector<8x4xf32>
    %677 = arith.negf %676 : vector<8x4xf32>
    %678 = math.exp %677 : vector<8x4xf32>
    %cst_61 = arith.constant 1.000000e+00 : f32
    %679 = vector.broadcast %cst_61 : f32 to vector<8x4xf32>
    %680 = arith.addf %679, %678 : vector<8x4xf32>
    %681 = arith.divf %679, %680 : vector<8x4xf32>
    %c0_62 = arith.constant 0 : index
    %c0_63 = arith.constant 0 : index
    %682 = vector.load %arg15[%c0_62, %c0_63] : memref<8x4xf32, #tpu.memory_space<vmem>>, vector<8x4xf32>
    tpu.vector_store %arg15[%c0_62, %c0_63], %681 {strides = array<i32>} : memref<8x4xf32, #tpu.memory_space<vmem>>, vector<8x4xf32>,
    return
  }
}

</mosaic_0001>

<llo_original>
// kernel: mpnn_forward.1
$region0: #{mpnn_forward.1}
  #allocation0 [shape = 'u32[]', space=smem, size = 0x4, offset = 0x4, fixed_abs, tag = 'smem constant byte address 0x4 - core index']
  #allocation1 [shape = 'u32[72,128]{1,0:T(1,128)}', space=vmem, size = 0x9000, scoped, tag = 'internal scratch']
  %s0 = inlined_call_operand.vmem [shape: f32[8,16], index: 0, kind: input, shape index: {}]
  %s1 = inlined_call_operand.vmem [shape: f32[16,8], index: 1, kind: input, shape index: {}]
  %s2 = inlined_call_operand.vmem [shape: bf16[16,8], index: 2, kind: input, shape index: {}]
  %s3 = inlined_call_operand.vmem [shape: bf16[8,16], index: 3, kind: input, shape index: {}]
  %s4 = inlined_call_operand.hbm [shape: f32[16,32], index: 4, kind: input, shape index: {}]
  %s5 = inlined_call_operand.vmem [shape: f32[1,32], index: 5, kind: input, shape index: {}]
  %s6 = inlined_call_operand.hbm [shape: f32[8,16], index: 6, kind: input, shape index: {}]
  %s7 = inlined_call_operand.vmem [shape: f32[1,16], index: 7, kind: input, shape index: {}]
  %s8 = inlined_call_operand.vmem [shape: f32[16,1024], index: 8, kind: input, shape index: {}]
  %s9 = inlined_call_operand.hbm [shape: f32[1,1024], index: 9, kind: input, shape index: {}]
  %s10 = inlined_call_operand.vmem [shape: f32[1,32], index: 10, kind: input, shape index: {}]
  %s11 = inlined_call_operand.hbm [shape: f32[32,32], index: 11, kind: input, shape index: {}]
  %s12 = inlined_call_operand.vmem [shape: f32[1,32], index: 12, kind: input, shape index: {}]
  %s13 = inlined_call_operand.vmem [shape: f32[32,4], index: 13, kind: input, shape index: {}]
  %s14 = inlined_call_operand.vmem [shape: f32[1,4], index: 14, kind: input, shape index: {}]
  %s15 = inlined_call_operand.vmem [shape: f32[8,4], index: 15, kind: output, shape index: {}]
  %s16 = sld [smem:[#allocation0]]
  $region86: #{mpnn_forward.1} parent=0
    _
  %s18 = ssub.s32 1, %s16
  %s19 = scalar_select 0, %s18, %s16
  $region1: #{mpnn_forward.1} parent=0
    #allocation2 [shape = 'u8[8192]{0}', space=vmem, size = 0x2000, scoped, tag = 'input window, operand 4, single buffered']
    #allocation3 [shape = 's32[1]{0}', space=sflag, size = 0x4, scoped, tag = 'scoped memory for mpnn_forward.1']
    #allocation4 [shape = 'u8[4096]{0}', space=vmem, size = 0x1000, scoped, tag = 'input window, operand 6, single buffered']
    #allocation5 [shape = 's32[1]{0}', space=sflag, size = 0x4, scoped, tag = 'scoped memory for mpnn_forward.1']
    #allocation6 [shape = 'u8[4096]{0}', space=vmem, size = 0x1000, scoped, tag = 'input window, operand 9, single buffered']
    #allocation7 [shape = 'u8[16384]{0}', space=vmem, size = 0x4000, scoped, tag = 'input window, operand 11, single buffered']
    #allocation8 [shape = 's32[1]{0}', space=sflag, size = 0x4, scoped, tag = 'scoped memory for mpnn_forward.1']
    %20 = vsyncpa [#allocation3], 0
    %21 = vsyncpa [#allocation5], 0
    %22 = vsyncpa [#allocation8], 0
    // Predicated region
    $region2: #{mpnn_forward.1} parent=1 // pred_check
      _
    $region3: #{mpnn_forward.1} parent=1 // pred_check_branch
      %24 = sbr.rel (0) target = $region5
    $region4: #{mpnn_forward.1} parent=1 // pred_region
      _
    $region5: #{mpnn_forward.1} parent=1 // pred_fallthru
      _
    // Predicated region
    $region6: #{mpnn_forward.1} parent=1 // pred_check
      _
    $region7: #{mpnn_forward.1} parent=1 // pred_check_branch
      %26 = sbr.rel (0) target = $region9
    $region8: #{mpnn_forward.1} parent=1 // pred_region
      _
    $region9: #{mpnn_forward.1} parent=1 // pred_fallthru
      _
    // Predicated region
    $region10: #{mpnn_forward.1} parent=1 // pred_check
      _
    $region11: #{mpnn_forward.1} parent=1 // pred_check_branch
      %28 = sbr.rel (0) target = $region13
    $region12: #{mpnn_forward.1} parent=1 // pred_region
      _
    $region13: #{mpnn_forward.1} parent=1 // pred_fallthru
      _
    // Predicated region
    $region14: #{mpnn_forward.1} parent=1 // pred_check
      _
    $region15: #{mpnn_forward.1} parent=1 // pred_check_branch
      %30 = sbr.rel (0) target = $region17
    $region16: #{mpnn_forward.1} parent=1 // pred_region
      _
    $region17: #{mpnn_forward.1} parent=1 // pred_fallthru
      _
    // Predicated region
    $region18: #{mpnn_forward.1} parent=1 // pred_check
      _
    $region19: #{mpnn_forward.1} parent=1 // pred_check_branch
      %32 = sbr.rel (0) target = $region21
    $region20: #{mpnn_forward.1} parent=1 // pred_region
      %34 = vsyncadd [#allocation3], 0
      %s35 = sshll.u32 %s4, 4
      %s36 = int_to_ptr.hbm [resolvable:$true] %s35
      %s37 = sshll.u32 [#allocation2], 4
      %s38 = int_to_ptr.vmem [resolvable:$true] %s37
      %43 = dma.hbm_to_vmem [thread:$0]  %s36, 256, %s38, [#allocation3], 128, 128, 8
    $region21: #{mpnn_forward.1} parent=1 // pred_fallthru
      _
    // Predicated region
    $region22: #{mpnn_forward.1} parent=1 // pred_check
      _
    $region23: #{mpnn_forward.1} parent=1 // pred_check_branch
      %45 = sbr.rel (0) target = $region25
    $region24: #{mpnn_forward.1} parent=1 // pred_region
      _
    $region25: #{mpnn_forward.1} parent=1 // pred_fallthru
      _
    // Predicated region
    $region26: #{mpnn_forward.1} parent=1 // pred_check
      _
    $region27: #{mpnn_forward.1} parent=1 // pred_check_branch
      %47 = sbr.rel (0) target = $region29
    $region28: #{mpnn_forward.1} parent=1 // pred_region
      %49 = vsyncadd [#allocation5], 0
      %s51 = sshll.u32 %s6, 4
      %s52 = int_to_ptr.hbm [resolvable:$true] %s51
      %s53 = sshll.u32 [#allocation4], 4
      %s54 = int_to_ptr.vmem [resolvable:$true] %s53
      %56 = dma.hbm_to_vmem [thread:$0]  %s52, 128, %s54, [#allocation5]
    $region29: #{mpnn_forward.1} parent=1 // pred_fallthru
      _
    // Predicated region
    $region30: #{mpnn_forward.1} parent=1 // pred_check
      _
    $region31: #{mpnn_forward.1} parent=1 // pred_check_branch
      %58 = sbr.rel (0) target = $region33
    $region32: #{mpnn_forward.1} parent=1 // pred_region
      _
    $region33: #{mpnn_forward.1} parent=1 // pred_fallthru
      _
    // Predicated region
    $region34: #{mpnn_forward.1} parent=1 // pred_check
      _
    $region35: #{mpnn_forward.1} parent=1 // pred_check_branch
      %60 = sbr.rel (0) target = $region37
    $region36: #{mpnn_forward.1} parent=1 // pred_region
      _
    $region37: #{mpnn_forward.1} parent=1 // pred_fallthru
      _
    // Predicated region
    $region38: #{mpnn_forward.1} parent=1 // pred_check
      _
    $region39: #{mpnn_forward.1} parent=1 // pred_check_branch
      %62 = sbr.rel (0) target = $region41
    $region40: #{mpnn_forward.1} parent=1 // pred_region
      %64 = vsyncadd [#allocation5], 0
      %s66 = sshll.u32 %s9, 4
      %s67 = int_to_ptr.hbm [resolvable:$true] %s66
      %s68 = sshll.u32 [#allocation6], 4
      %s69 = int_to_ptr.vmem [resolvable:$true] %s68
      %71 = dma.hbm_to_vmem [thread:$0]  %s67, 128, %s69, [#allocation5]
    $region41: #{mpnn_forward.1} parent=1 // pred_fallthru
      _
    // Predicated region
    $region42: #{mpnn_forward.1} parent=1 // pred_check
      _
    $region43: #{mpnn_forward.1} parent=1 // pred_check_branch
      %73 = sbr.rel (0) target = $region45
    $region44: #{mpnn_forward.1} parent=1 // pred_region
      _
    $region45: #{mpnn_forward.1} parent=1 // pred_fallthru
      _
    // Predicated region
    $region46: #{mpnn_forward.1} parent=1 // pred_check
      _
    $region47: #{mpnn_forward.1} parent=1 // pred_check_branch
      %75 = sbr.rel (0) target = $region49
    $region48: #{mpnn_forward.1} parent=1 // pred_region
      %77 = vsyncadd [#allocation8], 0
      %s78 = sshll.u32 %s11, 4
      %s79 = int_to_ptr.hbm [resolvable:$true] %s78
      %s80 = sshll.u32 [#allocation7], 4
      %s81 = int_to_ptr.vmem [resolvable:$true] %s80
      %86 = dma.hbm_to_vmem [thread:$0]  %s79, 512, %s81, [#allocation8], 128, 128, 8
    $region49: #{mpnn_forward.1} parent=1 // pred_fallthru
      _
    // Predicated region
    $region50: #{mpnn_forward.1} parent=1 // pred_check
      _
    $region51: #{mpnn_forward.1} parent=1 // pred_check_branch
      %88 = sbr.rel (0) target = $region53
    $region52: #{mpnn_forward.1} parent=1 // pred_region
      _
    $region53: #{mpnn_forward.1} parent=1 // pred_fallthru
      _
    // Predicated region
    $region54: #{mpnn_forward.1} parent=1 // pred_check
      _
    $region55: #{mpnn_forward.1} parent=1 // pred_check_branch
      %90 = sbr.rel (0) target = $region57
    $region56: #{mpnn_forward.1} parent=1 // pred_region
      _
    $region57: #{mpnn_forward.1} parent=1 // pred_fallthru
      _
    // Predicated region
    $region58: #{mpnn_forward.1} parent=1 // pred_check
      _
    $region59: #{mpnn_forward.1} parent=1 // pred_check_branch
      %92 = sbr.rel (0) target = $region61
    $region60: #{mpnn_forward.1} parent=1 // pred_region
      _
    $region61: #{mpnn_forward.1} parent=1 // pred_fallthru
      _
    // Predicated region
    $region62: #{mpnn_forward.1} parent=1 // pred_check
      _
    $region63: #{mpnn_forward.1} parent=1 // pred_check_branch
      %94 = sbr.rel (0) target = $region65
    $region64: #{mpnn_forward.1} parent=1 // pred_region
      %96 = dma.done [#allocation3], 256
    $region65: #{mpnn_forward.1} parent=1 // pred_fallthru
      _
    // Predicated region
    $region66: #{mpnn_forward.1} parent=1 // pred_check
      _
    $region67: #{mpnn_forward.1} parent=1 // pred_check_branch
      %98 = sbr.rel (0) target = $region69
    $region68: #{mpnn_forward.1} parent=1 // pred_region
      %100 = dma.done [#allocation5], 128
    $region69: #{mpnn_forward.1} parent=1 // pred_fallthru
      _
    // Predicated region
    $region70: #{mpnn_forward.1} parent=1 // pred_check
      _
    $region71: #{mpnn_forward.1} parent=1 // pred_check_branch
      %102 = sbr.rel (0) target = $region73
    $region72: #{mpnn_forward.1} parent=1 // pred_region
      %104 = dma.done [#allocation5], 128
    $region73: #{mpnn_forward.1} parent=1 // pred_fallthru
      _
    // Predicated region
    $region74: #{mpnn_forward.1} parent=1 // pred_check
      _
    $region75: #{mpnn_forward.1} parent=1 // pred_check_branch
      %106 = sbr.rel (0) target = $region77
    $region76: #{mpnn_forward.1} parent=1 // pred_region
      %108 = dma.done [#allocation8], 512
    $region77: #{mpnn_forward.1} parent=1 // pred_fallthru
      _
    %v110 = vld [vmem:[%s0] sm:$0xff]
    %v111 = vld [vmem:[#allocation2] sm:$0xff]
    %v112 = vld [vmem:[#allocation2 + $0x8] sm:$0xff]
    %v113 = vld [vmem:[%s5] sm:$0x1]
    %v115 = vperm.slane %v113, 0
    %vm117 = vcmask 130048
    %v119 = vsel %vm117, %v110, 0
    %121 = vmatpush.msra.mxu0 0.0
    %122 = vmatpush.msra.mxu0 0.0
    %123 = vmatpush.msra.mxu0 0.0
    %124 = vmatpush.msra.mxu0 0.0
    %125 = vmatpush.msra.mxu0 0.0
    %126 = vmatpush.msra.mxu0 0.0
    %127 = vmatpush.msra.mxu0 0.0
    %128 = vmatpush.msra.mxu0 0.0
    %129 = vmatpush.msra.mxu0 0.0
    %130 = vmatpush.msra.mxu0 0.0
    %131 = vmatpush.msra.mxu0 0.0
    %132 = vmatpush.msra.mxu0 0.0
    %133 = vmatpush.msra.mxu0 0.0
    %134 = vmatpush.msra.mxu0 0.0
    %135 = vmatpush.msra.mxu0 %v112
    %136 = vmatpush.msra.mxu0 %v111
    %137 = vmatmul.f32.gmra.mxu0 %v119
    %v138 = vpop.f32.mrf.mxu0
    %v139 = vadd.f32 %v115, %v138
    %140 = vdwg.mxu0
    %v141 = vmax.f32 %v139, 0.0
    %v142 = vld [vmem:[%s1] sm:$0xff]
    %v143 = vld [vmem:[%s1 + $0x8] sm:$0xff]
    %v144 = vld [vmem:[#allocation4] sm:$0xff]
    %v145 = vld [vmem:[%s7] sm:$0x1]
    %v147 = vperm.slane %v145, 0
    %vm149 = vcmask 64512
    %v151 = vsel %vm149, %v142, 0
    %v154 = vsel %vm149, %v143, 0
    %156 = vmatpush.msra.mxu0 0.0
    %157 = vmatpush.msra.mxu0 0.0
    %158 = vmatpush.msra.mxu0 0.0
    %159 = vmatpush.msra.mxu0 0.0
    %160 = vmatpush.msra.mxu0 0.0
    %161 = vmatpush.msra.mxu0 0.0
    %162 = vmatpush.msra.mxu0 0.0
    %163 = vmatpush.msra.mxu0 0.0
    %164 = vmatpush.msra.mxu0 0.0
    %165 = vmatpush.msra.mxu0 0.0
    %166 = vmatpush.msra.mxu0 0.0
    %167 = vmatpush.msra.mxu0 0.0
    %168 = vmatpush.msra.mxu0 0.0
    %169 = vmatpush.msra.mxu0 0.0
    %170 = vmatpush.msra.mxu0 0.0
    %171 = vmatpush.msra.mxu0 %v144
    %172 = vmatmul.f32.gmra.mxu0 %v151
    %v173 = vpop.f32.mrf.mxu0
    %v174 = vadd.f32 %v147, %v173
    %175 = vmatmul.f32.gmra.mxu0 %v154
    %v176 = vpop.f32.mrf.mxu0
    %v177 = vadd.f32 %v147, %v176
    %178 = vdwg.mxu0
    %v179 = vmax.f32 %v174, 0.0
    %v180 = vmax.f32 %v177, 0.0
    %v181 = vld [vmem:[%s8] sm:$0xff]
    %v182 = vld [vmem:[%s8 + $0x8] sm:$0xff]
    %v183 = vld [vmem:[%s8 + $0x10] sm:$0xff]
    %v184 = vld [vmem:[%s8 + $0x18] sm:$0xff]
    %v185 = vld [vmem:[%s8 + $0x20] sm:$0xff]
    %v186 = vld [vmem:[%s8 + $0x28] sm:$0xff]
    %v187 = vld [vmem:[%s8 + $0x30] sm:$0xff]
    %v188 = vld [vmem:[%s8 + $0x38] sm:$0xff]
    %v189 = vld [vmem:[%s8 + $0x40] sm:$0xff]
    %v190 = vld [vmem:[%s8 + $0x48] sm:$0xff]
    %v191 = vld [vmem:[%s8 + $0x50] sm:$0xff]
    %v192 = vld [vmem:[%s8 + $0x58] sm:$0xff]
    %v193 = vld [vmem:[%s8 + $0x60] sm:$0xff]
    %v194 = vld [vmem:[%s8 + $0x68] sm:$0xff]
    %v195 = vld [vmem:[%s8 + $0x70] sm:$0xff]
    %v196 = vld [vmem:[%s8 + $0x78] sm:$0xff]
    %v197 = vld [vmem:[#allocation6] sm:$0xff]
    %v199 = vperm.slane %v197, 0
    %v200 = vperm.slane %v197, 1
    %v201 = vperm.slane %v197, 2
    %v202 = vperm.slane %v197, 3
    %v203 = vperm.slane %v197, 4
    %v204 = vperm.slane %v197, 5
    %v205 = vperm.slane %v197, 6
    %v206 = vperm.slane %v197, 7
    %v216 = vsel %vm117, %v179, 0
    %v219 = vsel %vm117, %v180, 0
    %221 = vmatpush.msra.mxu0 0.0
    %222 = vmatpush.msra.mxu0 0.0
    %223 = vmatpush.msra.mxu0 0.0
    %224 = vmatpush.msra.mxu0 0.0
    %225 = vmatpush.msra.mxu0 0.0
    %226 = vmatpush.msra.mxu0 0.0
    %227 = vmatpush.msra.mxu0 0.0
    %228 = vmatpush.msra.mxu0 0.0
    %229 = vmatpush.msra.mxu0 0.0
    %230 = vmatpush.msra.mxu0 0.0
    %231 = vmatpush.msra.mxu0 0.0
    %232 = vmatpush.msra.mxu0 0.0
    %233 = vmatpush.msra.mxu0 0.0
    %234 = vmatpush.msra.mxu0 0.0
    %235 = vmatpush.msra.mxu0 %v189
    %236 = vmatpush.msra.mxu0 %v181
    %237 = vmatmul.f32.gmra.mxu0 %v216
    %v238 = vpop.f32.mrf.mxu0
    %v239 = vadd.f32 %v199, %v238
    %240 = vmatmul.f32.gmra.mxu0 %v219
    %v241 = vpop.f32.mrf.mxu0
    %v242 = vadd.f32 %v199, %v241
    %243 = vdwg.mxu0
    %244 = vmatpush.msra.mxu0 0.0
    %245 = vmatpush.msra.mxu0 0.0
    %246 = vmatpush.msra.mxu0 0.0
    %247 = vmatpush.msra.mxu0 0.0
    %248 = vmatpush.msra.mxu0 0.0
    %249 = vmatpush.msra.mxu0 0.0
    %250 = vmatpush.msra.mxu0 0.0
    %251 = vmatpush.msra.mxu0 0.0
    %252 = vmatpush.msra.mxu0 0.0
    %253 = vmatpush.msra.mxu0 0.0
    %254 = vmatpush.msra.mxu0 0.0
    %255 = vmatpush.msra.mxu0 0.0
    %256 = vmatpush.msra.mxu0 0.0
    %257 = vmatpush.msra.mxu0 0.0
    %258 = vmatpush.msra.mxu0 %v190
    %259 = vmatpush.msra.mxu0 %v182
    %260 = vmatmul.f32.gmra.mxu0 %v216
    %v261 = vpop.f32.mrf.mxu0
    %v262 = vadd.f32 %v200, %v261
    %263 = vmatmul.f32.gmra.mxu0 %v219
    %v264 = vpop.f32.mrf.mxu0
    %v265 = vadd.f32 %v200, %v264
    %266 = vdwg.mxu0
    %267 = vmatpush.msra.mxu0 0.0
    %268 = vmatpush.msra.mxu0 0.0
    %269 = vmatpush.msra.mxu0 0.0
    %270 = vmatpush.msra.mxu0 0.0
    %271 = vmatpush.msra.mxu0 0.0
    %272 = vmatpush.msra.mxu0 0.0
    %273 = vmatpush.msra.mxu0 0.0
    %274 = vmatpush.msra.mxu0 0.0
    %275 = vmatpush.msra.mxu0 0.0
    %276 = vmatpush.msra.mxu0 0.0
    %277 = vmatpush.msra.mxu0 0.0
    %278 = vmatpush.msra.mxu0 0.0
    %279 = vmatpush.msra.mxu0 0.0
    %280 = vmatpush.msra.mxu0 0.0
    %281 = vmatpush.msra.mxu0 %v191
    %282 = vmatpush.msra.mxu0 %v183
    %283 = vmatmul.f32.gmra.mxu0 %v216
    %v284 = vpop.f32.mrf.mxu0
    %v285 = vadd.f32 %v201, %v284
    %286 = vmatmul.f32.gmra.mxu0 %v219
    %v287 = vpop.f32.mrf.mxu0
    %v288 = vadd.f32 %v201, %v287
    %289 = vdwg.mxu0
    %290 = vmatpush.msra.mxu0 0.0
    %291 = vmatpush.msra.mxu0 0.0
    %292 = vmatpush.msra.mxu0 0.0
    %293 = vmatpush.msra.mxu0 0.0
    %294 = vmatpush.msra.mxu0 0.0
    %295 = vmatpush.msra.mxu0 0.0
    %296 = vmatpush.msra.mxu0 0.0
    %297 = vmatpush.msra.mxu0 0.0
    %298 = vmatpush.msra.mxu0 0.0
    %299 = vmatpush.msra.mxu0 0.0
    %300 = vmatpush.msra.mxu0 0.0
    %301 = vmatpush.msra.mxu0 0.0
    %302 = vmatpush.msra.mxu0 0.0
    %303 = vmatpush.msra.mxu0 0.0
    %304 = vmatpush.msra.mxu0 %v192
    %305 = vmatpush.msra.mxu0 %v184
    %306 = vmatmul.f32.gmra.mxu0 %v216
    %v307 = vpop.f32.mrf.mxu0
    %v308 = vadd.f32 %v202, %v307
    %309 = vmatmul.f32.gmra.mxu0 %v219
    %v310 = vpop.f32.mrf.mxu0
    %v311 = vadd.f32 %v202, %v310
    %312 = vdwg.mxu0
    %313 = vmatpush.msra.mxu0 0.0
    %314 = vmatpush.msra.mxu0 0.0
    %315 = vmatpush.msra.mxu0 0.0
    %316 = vmatpush.msra.mxu0 0.0
    %317 = vmatpush.msra.mxu0 0.0
    %318 = vmatpush.msra.mxu0 0.0
    %319 = vmatpush.msra.mxu0 0.0
    %320 = vmatpush.msra.mxu0 0.0
    %321 = vmatpush.msra.mxu0 0.0
    %322 = vmatpush.msra.mxu0 0.0
    %323 = vmatpush.msra.mxu0 0.0
    %324 = vmatpush.msra.mxu0 0.0
    %325 = vmatpush.msra.mxu0 0.0
    %326 = vmatpush.msra.mxu0 0.0
    %327 = vmatpush.msra.mxu0 %v193
    %328 = vmatpush.msra.mxu0 %v185
    %329 = vmatmul.f32.gmra.mxu0 %v216
    %v330 = vpop.f32.mrf.mxu0
    %v331 = vadd.f32 %v203, %v330
    %332 = vmatmul.f32.gmra.mxu0 %v219
    %v333 = vpop.f32.mrf.mxu0
    %v334 = vadd.f32 %v203, %v333
    %335 = vdwg.mxu0
    %336 = vmatpush.msra.mxu0 0.0
    %337 = vmatpush.msra.mxu0 0.0
    %338 = vmatpush.msra.mxu0 0.0
    %339 = vmatpush.msra.mxu0 0.0
    %340 = vmatpush.msra.mxu0 0.0
    %341 = vmatpush.msra.mxu0 0.0
    %342 = vmatpush.msra.mxu0 0.0
    %343 = vmatpush.msra.mxu0 0.0
    %344 = vmatpush.msra.mxu0 0.0
    %345 = vmatpush.msra.mxu0 0.0
    %346 = vmatpush.msra.mxu0 0.0
    %347 = vmatpush.msra.mxu0 0.0
    %348 = vmatpush.msra.mxu0 0.0
    %349 = vmatpush.msra.mxu0 0.0
    %350 = vmatpush.msra.mxu0 %v194
    %351 = vmatpush.msra.mxu0 %v186
    %352 = vmatmul.f32.gmra.mxu0 %v216
    %v353 = vpop.f32.mrf.mxu0
    %v354 = vadd.f32 %v204, %v353
    %355 = vmatmul.f32.gmra.mxu0 %v219
    %v356 = vpop.f32.mrf.mxu0
    %v357 = vadd.f32 %v204, %v356
    %358 = vdwg.mxu0
    %359 = vmatpush.msra.mxu0 0.0
    %360 = vmatpush.msra.mxu0 0.0
    %361 = vmatpush.msra.mxu0 0.0
    %362 = vmatpush.msra.mxu0 0.0
    %363 = vmatpush.msra.mxu0 0.0
    %364 = vmatpush.msra.mxu0 0.0
    %365 = vmatpush.msra.mxu0 0.0
    %366 = vmatpush.msra.mxu0 0.0
    %367 = vmatpush.msra.mxu0 0.0
    %368 = vmatpush.msra.mxu0 0.0
    %369 = vmatpush.msra.mxu0 0.0
    %370 = vmatpush.msra.mxu0 0.0
    %371 = vmatpush.msra.mxu0 0.0
    %372 = vmatpush.msra.mxu0 0.0
    %373 = vmatpush.msra.mxu0 %v195
    %374 = vmatpush.msra.mxu0 %v187
    %375 = vmatmul.f32.gmra.mxu0 %v216
    %v376 = vpop.f32.mrf.mxu0
    %v377 = vadd.f32 %v205, %v376
    %378 = vmatmul.f32.gmra.mxu0 %v219
    %v379 = vpop.f32.mrf.mxu0
    %v380 = vadd.f32 %v205, %v379
    %381 = vdwg.mxu0
    %382 = vmatpush.msra.mxu0 0.0
    %383 = vmatpush.msra.mxu0 0.0
    %384 = vmatpush.msra.mxu0 0.0
    %385 = vmatpush.msra.mxu0 0.0
    %386 = vmatpush.msra.mxu0 0.0
    %387 = vmatpush.msra.mxu0 0.0
    %388 = vmatpush.msra.mxu0 0.0
    %389 = vmatpush.msra.mxu0 0.0
    %390 = vmatpush.msra.mxu0 0.0
    %391 = vmatpush.msra.mxu0 0.0
    %392 = vmatpush.msra.mxu0 0.0
    %393 = vmatpush.msra.mxu0 0.0
    %394 = vmatpush.msra.mxu0 0.0
    %395 = vmatpush.msra.mxu0 0.0
    %396 = vmatpush.msra.mxu0 %v196
    %397 = vmatpush.msra.mxu0 %v188
    %398 = vmatmul.f32.gmra.mxu0 %v216
    %v399 = vpop.f32.mrf.mxu0
    %v400 = vadd.f32 %v206, %v399
    %401 = vmatmul.f32.gmra.mxu0 %v219
    %v402 = vpop.f32.mrf.mxu0
    %v403 = vadd.f32 %v206, %v402
    %404 = vdwg.mxu0
    %v405 = vpack.c.bf16 %v262, %v239
    %v406 = vpack.c.bf16 %v308, %v285
    %v407 = vpack.c.bf16 %v354, %v331
    %v408 = vpack.c.bf16 %v400, %v377
    %v409 = vpack.c.bf16 %v265, %v242
    %v410 = vpack.c.bf16 %v311, %v288
    %v411 = vpack.c.bf16 %v357, %v334
    %v412 = vpack.c.bf16 %v403, %v380
    %v413 = vld [vmem:[%s2] sm:$0xf]
    %v414 = vld [vmem:[%s2 + $0x4] sm:$0xf]
    %v415 = vld [vmem:[%s3] sm:$0xf]
    %v416 = vld [vmem:[%s10] sm:$0x1]
    %v417 = vld [vmem:[#allocation7] sm:$0xff]
    %v418 = vld [vmem:[#allocation7 + $0x8] sm:$0xff]
    %v419 = vld [vmem:[#allocation7 + $0x10] sm:$0xff]
    %v420 = vld [vmem:[#allocation7 + $0x18] sm:$0xff]
    %v421 = vld [vmem:[%s12] sm:$0x1]
    %v422 = vpack.c.bf16 %v141, %v141
    %v425 = vunpack.c.l.b16 %v413
    %v426 = vunpack.c.l.b16 %v414
    %v427 = vpack.c.b16 %v426, %v425
    %v429 = vsel %vm149, %v427, 0
    %vm431 = vcmask 1043456
    %v433 = vsel %vm431, %v422, 0
    %435 = vmatpush.bf16.msra.mxu0 0
    %436 = vmatpush.bf16.msra.mxu0 0
    %437 = vmatpush.bf16.msra.mxu0 0
    %438 = vmatpush.bf16.msra.mxu0 0
    %439 = vmatpush.bf16.msra.mxu0 0
    %440 = vmatpush.bf16.msra.mxu0 0
    %441 = vmatpush.bf16.msra.mxu0 0
    %442 = vmatpush.bf16.msra.mxu0 %v433
    %443 = vmatmul.bf16.gmra.mxu0 %v429
    %v444 = vpop.f32.mrf.mxu0
    %v445 = vadd.f32 0.0, %v444
    %v446 = vpop.f32.mrf.mxu0
    %v447 = vadd.f32 0.0, %v446
    %448 = vdwg.mxu0
    %v449 = vunpack.c.l.bf16 %v405
    %v450 = vunpack.c.l.bf16 %v409
    %452 = vset.pattern.permute.xlu0 0
    %453 = vperm.xlu0 %452, %v445
    %v454 = vpop.permute.xlu0 %453
    %457 = vset.pattern.permute.xlu0 0
    %458 = vperm.xlu0 %457, %v447
    %v459 = vpop.permute.xlu0 %458
    %v461 = vmul.f32 %v454, %v449
    %v462 = vmul.f32 %v459, %v450
    %v463 = vadd.f32 %v461, 0.0
    %v464 = vadd.f32 %v462, 0.0
    %465 = vset.pattern.permute.xlu0 1
    %466 = vperm.xlu0 %465, %v445
    %v467 = vpop.permute.xlu0 %466
    %469 = vset.pattern.permute.xlu0 1
    %470 = vperm.xlu0 %469, %v447
    %v471 = vpop.permute.xlu0 %470
    %v473 = vmul.f32 %v467, %v449
    %v474 = vmul.f32 %v471, %v450
    %477 = vrot.lane.b32.xlu0 %v473, 96
    %v478 = vpop.permute.xlu0 %477
    %479 = vrot.lane.b32.xlu0 %v474, 96
    %v480 = vpop.permute.xlu0 %479
    %v483 = vadd.f32 %v463, %v478
    %v484 = vadd.f32 %v464, %v480
    %485 = vset.pattern.permute.xlu0 2
    %486 = vperm.xlu0 %485, %v445
    %v487 = vpop.permute.xlu0 %486
    %489 = vset.pattern.permute.xlu0 2
    %490 = vperm.xlu0 %489, %v447
    %v491 = vpop.permute.xlu0 %490
    %v493 = vmul.f32 %v487, %v449
    %v494 = vmul.f32 %v491, %v450
    %497 = vrot.lane.b32.xlu0 %v493, 64
    %v498 = vpop.permute.xlu0 %497
    %499 = vrot.lane.b32.xlu0 %v494, 64
    %v500 = vpop.permute.xlu0 %499
    %v503 = vadd.f32 %v483, %v498
    %v504 = vadd.f32 %v484, %v500
    %505 = vset.pattern.permute.xlu0 3
    %506 = vperm.xlu0 %505, %v445
    %v507 = vpop.permute.xlu0 %506
    %509 = vset.pattern.permute.xlu0 3
    %510 = vperm.xlu0 %509, %v447
    %v511 = vpop.permute.xlu0 %510
    %v513 = vmul.f32 %v507, %v449
    %v514 = vmul.f32 %v511, %v450
    %517 = vrot.lane.b32.xlu0 %v513, 32
    %v518 = vpop.permute.xlu0 %517
    %519 = vrot.lane.b32.xlu0 %v514, 32
    %v520 = vpop.permute.xlu0 %519
    %v523 = vadd.f32 %v503, %v518
    %v524 = vadd.f32 %v504, %v520
    %v527 = vrot.slane %v405, 4
    %v528 = vrot.slane %v409, 4
    %v531 = vunpack.c.l.bf16 %v527
    %v532 = vunpack.c.l.bf16 %v528
    %533 = vset.pattern.permute.xlu0 4
    %534 = vperm.xlu0 %533, %v445
    %v535 = vpop.permute.xlu0 %534
    %537 = vset.pattern.permute.xlu0 4
    %538 = vperm.xlu0 %537, %v447
    %v539 = vpop.permute.xlu0 %538
    %v541 = vmul.f32 %v535, %v531
    %v542 = vmul.f32 %v539, %v532
    %v543 = vadd.f32 %v523, %v541
    %v544 = vadd.f32 %v524, %v542
    %545 = vrot.lane.b32.xlu0 %v405, 96
    %v546 = vpop.permute.xlu0 %545
    %547 = vrot.lane.b32.xlu0 %v409, 96
    %v548 = vpop.permute.xlu0 %547
    %v549 = vrot.slane %v546, 4
    %v550 = vrot.slane %v548, 4
    %v553 = vunpack.c.l.bf16 %v549
    %v554 = vunpack.c.l.bf16 %v550
    %555 = vset.pattern.permute.xlu0 5
    %556 = vperm.xlu0 %555, %v445
    %v557 = vpop.permute.xlu0 %556
    %559 = vset.pattern.permute.xlu0 5
    %560 = vperm.xlu0 %559, %v447
    %v561 = vpop.permute.xlu0 %560
    %v563 = vmul.f32 %v557, %v553
    %v564 = vmul.f32 %v561, %v554
    %v565 = vadd.f32 %v543, %v563
    %v566 = vadd.f32 %v544, %v564
    %567 = vrot.lane.b32.xlu0 %v405, 64
    %v568 = vpop.permute.xlu0 %567
    %569 = vrot.lane.b32.xlu0 %v409, 64
    %v570 = vpop.permute.xlu0 %569
    %v571 = vrot.slane %v568, 4
    %v572 = vrot.slane %v570, 4
    %v575 = vunpack.c.l.bf16 %v571
    %v576 = vunpack.c.l.bf16 %v572
    %577 = vset.pattern.permute.xlu0 6
    %578 = vperm.xlu0 %577, %v445
    %v579 = vpop.permute.xlu0 %578
    %581 = vset.pattern.permute.xlu0 6
    %582 = vperm.xlu0 %581, %v447
    %v583 = vpop.permute.xlu0 %582
    %v585 = vmul.f32 %v579, %v575
    %v586 = vmul.f32 %v583, %v576
    %v587 = vadd.f32 %v565, %v585
    %v588 = vadd.f32 %v566, %v586
    %589 = vrot.lane.b32.xlu0 %v405, 32
    %v590 = vpop.permute.xlu0 %589
    %591 = vrot.lane.b32.xlu0 %v409, 32
    %v592 = vpop.permute.xlu0 %591
    %v593 = vrot.slane %v590, 4
    %v594 = vrot.slane %v592, 4
    %v597 = vunpack.c.l.bf16 %v593
    %v598 = vunpack.c.l.bf16 %v594
    %599 = vset.pattern.permute.xlu0 7
    %600 = vperm.xlu0 %599, %v445
    %v601 = vpop.permute.xlu0 %600
    %603 = vset.pattern.permute.xlu0 7
    %604 = vperm.xlu0 %603, %v447
    %v605 = vpop.permute.xlu0 %604
    %v607 = vmul.f32 %v601, %v597
    %v608 = vmul.f32 %v605, %v598
    %v609 = vadd.f32 %v587, %v607
    %v610 = vadd.f32 %v588, %v608
    %v611 = vunpack.c.l.bf16 %v406
    %v612 = vunpack.c.l.bf16 %v410
    %613 = vset.pattern.permute.xlu0 8
    %614 = vperm.xlu0 %613, %v445
    %v615 = vpop.permute.xlu0 %614
    %617 = vset.pattern.permute.xlu0 8
    %618 = vperm.xlu0 %617, %v447
    %v619 = vpop.permute.xlu0 %618
    %v621 = vmul.f32 %v615, %v611
    %v622 = vmul.f32 %v619, %v612
    %v623 = vadd.f32 %v609, %v621
    %v624 = vadd.f32 %v610, %v622
    %625 = vset.pattern.permute.xlu0 9
    %626 = vperm.xlu0 %625, %v445
    %v627 = vpop.permute.xlu0 %626
    %629 = vset.pattern.permute.xlu0 9
    %630 = vperm.xlu0 %629, %v447
    %v631 = vpop.permute.xlu0 %630
    %v633 = vmul.f32 %v627, %v611
    %v634 = vmul.f32 %v631, %v612
    %637 = vrot.lane.b32.xlu0 %v633, 96
    %v638 = vpop.permute.xlu0 %637
    %639 = vrot.lane.b32.xlu0 %v634, 96
    %v640 = vpop.permute.xlu0 %639
    %v643 = vadd.f32 %v623, %v638
    %v644 = vadd.f32 %v624, %v640
    %645 = vset.pattern.permute.xlu0 10
    %646 = vperm.xlu0 %645, %v445
    %v647 = vpop.permute.xlu0 %646
    %649 = vset.pattern.permute.xlu0 10
    %650 = vperm.xlu0 %649, %v447
    %v651 = vpop.permute.xlu0 %650
    %v653 = vmul.f32 %v647, %v611
    %v654 = vmul.f32 %v651, %v612
    %657 = vrot.lane.b32.xlu0 %v653, 64
    %v658 = vpop.permute.xlu0 %657
    %659 = vrot.lane.b32.xlu0 %v654, 64
    %v660 = vpop.permute.xlu0 %659
    %v663 = vadd.f32 %v643, %v658
    %v664 = vadd.f32 %v644, %v660
    %665 = vset.pattern.permute.xlu0 11
    %666 = vperm.xlu0 %665, %v445
    %v667 = vpop.permute.xlu0 %666
    %669 = vset.pattern.permute.xlu0 11
    %670 = vperm.xlu0 %669, %v447
    %v671 = vpop.permute.xlu0 %670
    %v673 = vmul.f32 %v667, %v611
    %v674 = vmul.f32 %v671, %v612
    %677 = vrot.lane.b32.xlu0 %v673, 32
    %v678 = vpop.permute.xlu0 %677
    %679 = vrot.lane.b32.xlu0 %v674, 32
    %v680 = vpop.permute.xlu0 %679
    %v683 = vadd.f32 %v663, %v678
    %v684 = vadd.f32 %v664, %v680
    %v687 = vrot.slane %v406, 4
    %v688 = vrot.slane %v410, 4
    %v691 = vunpack.c.l.bf16 %v687
    %v692 = vunpack.c.l.bf16 %v688
    %693 = vset.pattern.permute.xlu0 12
    %694 = vperm.xlu0 %693, %v445
    %v695 = vpop.permute.xlu0 %694
    %697 = vset.pattern.permute.xlu0 12
    %698 = vperm.xlu0 %697, %v447
    %v699 = vpop.permute.xlu0 %698
    %v701 = vmul.f32 %v695, %v691
    %v702 = vmul.f32 %v699, %v692
    %v703 = vadd.f32 %v683, %v701
    %v704 = vadd.f32 %v684, %v702
    %705 = vrot.lane.b32.xlu0 %v406, 96
    %v706 = vpop.permute.xlu0 %705
    %707 = vrot.lane.b32.xlu0 %v410, 96
    %v708 = vpop.permute.xlu0 %707
    %v709 = vrot.slane %v706, 4
    %v710 = vrot.slane %v708, 4
    %v713 = vunpack.c.l.bf16 %v709
    %v714 = vunpack.c.l.bf16 %v710
    %715 = vset.pattern.permute.xlu0 13
    %716 = vperm.xlu0 %715, %v445
    %v717 = vpop.permute.xlu0 %716
    %719 = vset.pattern.permute.xlu0 13
    %720 = vperm.xlu0 %719, %v447
    %v721 = vpop.permute.xlu0 %720
    %v723 = vmul.f32 %v717, %v713
    %v724 = vmul.f32 %v721, %v714
    %v725 = vadd.f32 %v703, %v723
    %v726 = vadd.f32 %v704, %v724
    %727 = vrot.lane.b32.xlu0 %v406, 64
    %v728 = vpop.permute.xlu0 %727
    %729 = vrot.lane.b32.xlu0 %v410, 64
    %v730 = vpop.permute.xlu0 %729
    %v731 = vrot.slane %v728, 4
    %v732 = vrot.slane %v730, 4
    %v735 = vunpack.c.l.bf16 %v731
    %v736 = vunpack.c.l.bf16 %v732
    %737 = vset.pattern.permute.xlu0 14
    %738 = vperm.xlu0 %737, %v445
    %v739 = vpop.permute.xlu0 %738
    %741 = vset.pattern.permute.xlu0 14
    %742 = vperm.xlu0 %741, %v447
    %v743 = vpop.permute.xlu0 %742
    %v745 = vmul.f32 %v739, %v735
    %v746 = vmul.f32 %v743, %v736
    %v747 = vadd.f32 %v725, %v745
    %v748 = vadd.f32 %v726, %v746
    %749 = vrot.lane.b32.xlu0 %v406, 32
    %v750 = vpop.permute.xlu0 %749
    %751 = vrot.lane.b32.xlu0 %v410, 32
    %v752 = vpop.permute.xlu0 %751
    %v753 = vrot.slane %v750, 4
    %v754 = vrot.slane %v752, 4
    %v757 = vunpack.c.l.bf16 %v753
    %v758 = vunpack.c.l.bf16 %v754
    %759 = vset.pattern.permute.xlu0 15
    %760 = vperm.xlu0 %759, %v445
    %v761 = vpop.permute.xlu0 %760
    %763 = vset.pattern.permute.xlu0 15
    %764 = vperm.xlu0 %763, %v447
    %v765 = vpop.permute.xlu0 %764
    %v767 = vmul.f32 %v761, %v757
    %v768 = vmul.f32 %v765, %v758
    %v769 = vadd.f32 %v747, %v767
    %v770 = vadd.f32 %v748, %v768
    %v771 = vunpack.c.l.bf16 %v407
    %v772 = vunpack.c.l.bf16 %v411
    %773 = vset.pattern.permute.xlu0 16
    %774 = vperm.xlu0 %773, %v445
    %v775 = vpop.permute.xlu0 %774
    %777 = vset.pattern.permute.xlu0 16
    %778 = vperm.xlu0 %777, %v447
    %v779 = vpop.permute.xlu0 %778
    %v781 = vmul.f32 %v775, %v771
    %v782 = vmul.f32 %v779, %v772
    %v783 = vadd.f32 %v769, %v781
    %v784 = vadd.f32 %v770, %v782
    %785 = vset.pattern.permute.xlu0 17
    %786 = vperm.xlu0 %785, %v445
    %v787 = vpop.permute.xlu0 %786
    %789 = vset.pattern.permute.xlu0 17
    %790 = vperm.xlu0 %789, %v447
    %v791 = vpop.permute.xlu0 %790
    %v793 = vmul.f32 %v787, %v771
    %v794 = vmul.f32 %v791, %v772
    %797 = vrot.lane.b32.xlu0 %v793, 96
    %v798 = vpop.permute.xlu0 %797
    %799 = vrot.lane.b32.xlu0 %v794, 96
    %v800 = vpop.permute.xlu0 %799
    %v803 = vadd.f32 %v783, %v798
    %v804 = vadd.f32 %v784, %v800
    %805 = vset.pattern.permute.xlu0 18
    %806 = vperm.xlu0 %805, %v445
    %v807 = vpop.permute.xlu0 %806
    %809 = vset.pattern.permute.xlu0 18
    %810 = vperm.xlu0 %809, %v447
    %v811 = vpop.permute.xlu0 %810
    %v813 = vmul.f32 %v807, %v771
    %v814 = vmul.f32 %v811, %v772
    %817 = vrot.lane.b32.xlu0 %v813, 64
    %v818 = vpop.permute.xlu0 %817
    %819 = vrot.lane.b32.xlu0 %v814, 64
    %v820 = vpop.permute.xlu0 %819
    %v823 = vadd.f32 %v803, %v818
    %v824 = vadd.f32 %v804, %v820
    %825 = vset.pattern.permute.xlu0 19
    %826 = vperm.xlu0 %825, %v445
    %v827 = vpop.permute.xlu0 %826
    %829 = vset.pattern.permute.xlu0 19
    %830 = vperm.xlu0 %829, %v447
    %v831 = vpop.permute.xlu0 %830
    %v833 = vmul.f32 %v827, %v771
    %v834 = vmul.f32 %v831, %v772
    %837 = vrot.lane.b32.xlu0 %v833, 32
    %v838 = vpop.permute.xlu0 %837
    %839 = vrot.lane.b32.xlu0 %v834, 32
    %v840 = vpop.permute.xlu0 %839
    %v843 = vadd.f32 %v823, %v838
    %v844 = vadd.f32 %v824, %v840
    %v847 = vrot.slane %v407, 4
    %v848 = vrot.slane %v411, 4
    %v851 = vunpack.c.l.bf16 %v847
    %v852 = vunpack.c.l.bf16 %v848
    %853 = vset.pattern.permute.xlu0 20
    %854 = vperm.xlu0 %853, %v445
    %v855 = vpop.permute.xlu0 %854
    %857 = vset.pattern.permute.xlu0 20
    %858 = vperm.xlu0 %857, %v447
    %v859 = vpop.permute.xlu0 %858
    %v861 = vmul.f32 %v855, %v851
    %v862 = vmul.f32 %v859, %v852
    %v863 = vadd.f32 %v843, %v861
    %v864 = vadd.f32 %v844, %v862
    %865 = vrot.lane.b32.xlu0 %v407, 96
    %v866 = vpop.permute.xlu0 %865
    %867 = vrot.lane.b32.xlu0 %v411, 96
    %v868 = vpop.permute.xlu0 %867
    %v869 = vrot.slane %v866, 4
    %v870 = vrot.slane %v868, 4
    %v873 = vunpack.c.l.bf16 %v869
    %v874 = vunpack.c.l.bf16 %v870
    %875 = vset.pattern.permute.xlu0 21
    %876 = vperm.xlu0 %875, %v445
    %v877 = vpop.permute.xlu0 %876
    %879 = vset.pattern.permute.xlu0 21
    %880 = vperm.xlu0 %879, %v447
    %v881 = vpop.permute.xlu0 %880
    %v883 = vmul.f32 %v877, %v873
    %v884 = vmul.f32 %v881, %v874
    %v885 = vadd.f32 %v863, %v883
    %v886 = vadd.f32 %v864, %v884
    %887 = vrot.lane.b32.xlu0 %v407, 64
    %v888 = vpop.permute.xlu0 %887
    %889 = vrot.lane.b32.xlu0 %v411, 64
    %v890 = vpop.permute.xlu0 %889
    %v891 = vrot.slane %v888, 4
    %v892 = vrot.slane %v890, 4
    %v895 = vunpack.c.l.bf16 %v891
    %v896 = vunpack.c.l.bf16 %v892
    %897 = vset.pattern.permute.xlu0 22
    %898 = vperm.xlu0 %897, %v445
    %v899 = vpop.permute.xlu0 %898
    %901 = vset.pattern.permute.xlu0 22
    %902 = vperm.xlu0 %901, %v447
    %v903 = vpop.permute.xlu0 %902
    %v905 = vmul.f32 %v899, %v895
    %v906 = vmul.f32 %v903, %v896
    %v907 = vadd.f32 %v885, %v905
    %v908 = vadd.f32 %v886, %v906
    %909 = vrot.lane.b32.xlu0 %v407, 32
    %v910 = vpop.permute.xlu0 %909
    %911 = vrot.lane.b32.xlu0 %v411, 32
    %v912 = vpop.permute.xlu0 %911
    %v913 = vrot.slane %v910, 4
    %v914 = vrot.slane %v912, 4
    %v917 = vunpack.c.l.bf16 %v913
    %v918 = vunpack.c.l.bf16 %v914
    %919 = vset.pattern.permute.xlu0 23
    %920 = vperm.xlu0 %919, %v445
    %v921 = vpop.permute.xlu0 %920
    %923 = vset.pattern.permute.xlu0 23
    %924 = vperm.xlu0 %923, %v447
    %v925 = vpop.permute.xlu0 %924
    %v927 = vmul.f32 %v921, %v917
    %v928 = vmul.f32 %v925, %v918
    %v929 = vadd.f32 %v907, %v927
    %v930 = vadd.f32 %v908, %v928
    %v931 = vunpack.c.l.bf16 %v408
    %v932 = vunpack.c.l.bf16 %v412
    %933 = vset.pattern.permute.xlu0 24
    %934 = vperm.xlu0 %933, %v445
    %v935 = vpop.permute.xlu0 %934
    %937 = vset.pattern.permute.xlu0 24
    %938 = vperm.xlu0 %937, %v447
    %v939 = vpop.permute.xlu0 %938
    %v941 = vmul.f32 %v935, %v931
    %v942 = vmul.f32 %v939, %v932
    %v943 = vadd.f32 %v929, %v941
    %v944 = vadd.f32 %v930, %v942
    %945 = vset.pattern.permute.xlu0 25
    %946 = vperm.xlu0 %945, %v445
    %v947 = vpop.permute.xlu0 %946
    %949 = vset.pattern.permute.xlu0 25
    %950 = vperm.xlu0 %949, %v447
    %v951 = vpop.permute.xlu0 %950
    %v953 = vmul.f32 %v947, %v931
    %v954 = vmul.f32 %v951, %v932
    %957 = vrot.lane.b32.xlu0 %v953, 96
    %v958 = vpop.permute.xlu0 %957
    %959 = vrot.lane.b32.xlu0 %v954, 96
    %v960 = vpop.permute.xlu0 %959
    %v963 = vadd.f32 %v943, %v958
    %v964 = vadd.f32 %v944, %v960
    %965 = vset.pattern.permute.xlu0 26
    %966 = vperm.xlu0 %965, %v445
    %v967 = vpop.permute.xlu0 %966
    %969 = vset.pattern.permute.xlu0 26
    %970 = vperm.xlu0 %969, %v447
    %v971 = vpop.permute.xlu0 %970
    %v973 = vmul.f32 %v967, %v931
    %v974 = vmul.f32 %v971, %v932
    %977 = vrot.lane.b32.xlu0 %v973, 64
    %v978 = vpop.permute.xlu0 %977
    %979 = vrot.lane.b32.xlu0 %v974, 64
    %v980 = vpop.permute.xlu0 %979
    %v983 = vadd.f32 %v963, %v978
    %v984 = vadd.f32 %v964, %v980
    %985 = vset.pattern.permute.xlu0 27
    %986 = vperm.xlu0 %985, %v445
    %v987 = vpop.permute.xlu0 %986
    %989 = vset.pattern.permute.xlu0 27
    %990 = vperm.xlu0 %989, %v447
    %v991 = vpop.permute.xlu0 %990
    %v993 = vmul.f32 %v987, %v931
    %v994 = vmul.f32 %v991, %v932
    %997 = vrot.lane.b32.xlu0 %v993, 32
    %v998 = vpop.permute.xlu0 %997
    %999 = vrot.lane.b32.xlu0 %v994, 32
    %v1000 = vpop.permute.xlu0 %999
    %v1003 = vadd.f32 %v983, %v998
    %v1004 = vadd.f32 %v984, %v1000
    %v1007 = vrot.slane %v408, 4
    %v1008 = vrot.slane %v412, 4
    %v1011 = vunpack.c.l.bf16 %v1007
    %v1012 = vunpack.c.l.bf16 %v1008
    %1013 = vset.pattern.permute.xlu0 28
    %1014 = vperm.xlu0 %1013, %v445
    %v1015 = vpop.permute.xlu0 %1014
    %1017 = vset.pattern.permute.xlu0 28
    %1018 = vperm.xlu0 %1017, %v447
    %v1019 = vpop.permute.xlu0 %1018
    %v1021 = vmul.f32 %v1015, %v1011
    %v1022 = vmul.f32 %v1019, %v1012
    %v1023 = vadd.f32 %v1003, %v1021
    %v1024 = vadd.f32 %v1004, %v1022
    %1025 = vrot.lane.b32.xlu0 %v408, 96
    %v1026 = vpop.permute.xlu0 %1025
    %1027 = vrot.lane.b32.xlu0 %v412, 96
    %v1028 = vpop.permute.xlu0 %1027
    %v1029 = vrot.slane %v1026, 4
    %v1030 = vrot.slane %v1028, 4
    %v1033 = vunpack.c.l.bf16 %v1029
    %v1034 = vunpack.c.l.bf16 %v1030
    %1035 = vset.pattern.permute.xlu0 29
    %1036 = vperm.xlu0 %1035, %v445
    %v1037 = vpop.permute.xlu0 %1036
    %1039 = vset.pattern.permute.xlu0 29
    %1040 = vperm.xlu0 %1039, %v447
    %v1041 = vpop.permute.xlu0 %1040
    %v1043 = vmul.f32 %v1037, %v1033
    %v1044 = vmul.f32 %v1041, %v1034
    %v1045 = vadd.f32 %v1023, %v1043
    %v1046 = vadd.f32 %v1024, %v1044
    %1047 = vrot.lane.b32.xlu0 %v408, 64
    %v1048 = vpop.permute.xlu0 %1047
    %1049 = vrot.lane.b32.xlu0 %v412, 64
    %v1050 = vpop.permute.xlu0 %1049
    %v1051 = vrot.slane %v1048, 4
    %v1052 = vrot.slane %v1050, 4
    %v1055 = vunpack.c.l.bf16 %v1051
    %v1056 = vunpack.c.l.bf16 %v1052
    %1057 = vset.pattern.permute.xlu0 30
    %1058 = vperm.xlu0 %1057, %v445
    %v1059 = vpop.permute.xlu0 %1058
    %1061 = vset.pattern.permute.xlu0 30
    %1062 = vperm.xlu0 %1061, %v447
    %v1063 = vpop.permute.xlu0 %1062
    %v1065 = vmul.f32 %v1059, %v1055
    %v1066 = vmul.f32 %v1063, %v1056
    %v1067 = vadd.f32 %v1045, %v1065
    %v1068 = vadd.f32 %v1046, %v1066
    %1069 = vrot.lane.b32.xlu0 %v408, 32
    %v1070 = vpop.permute.xlu0 %1069
    %1071 = vrot.lane.b32.xlu0 %v412, 32
    %v1072 = vpop.permute.xlu0 %1071
    %v1073 = vrot.slane %v1070, 4
    %v1074 = vrot.slane %v1072, 4
    %v1077 = vunpack.c.l.bf16 %v1073
    %v1078 = vunpack.c.l.bf16 %v1074
    %1079 = vset.pattern.permute.xlu0 31
    %1080 = vperm.xlu0 %1079, %v445
    %v1081 = vpop.permute.xlu0 %1080
    %1083 = vset.pattern.permute.xlu0 31
    %1084 = vperm.xlu0 %1083, %v447
    %v1085 = vpop.permute.xlu0 %1084
    %v1087 = vmul.f32 %v1081, %v1077
    %v1088 = vmul.f32 %v1085, %v1078
    %v1089 = vadd.f32 %v1067, %v1087
    %v1090 = vadd.f32 %v1068, %v1088
    %v1091 = vpack.c.bf16 %v1090, %v1089
    %v1093 = vsel %vm117, %v415, 0
    %1095 = vmatpush.bf16.msra.mxu0 0
    %1096 = vmatpush.bf16.msra.mxu0 0
    %1097 = vmatpush.bf16.msra.mxu0 0
    %1098 = vmatpush.bf16.msra.mxu0 0
    %1099 = vmatpush.bf16.msra.mxu0 0
    %1100 = vmatpush.bf16.msra.mxu0 0
    %1101 = vmatpush.bf16.msra.mxu0 0
    %1102 = vmatpush.bf16.msra.mxu0 %v1091
    %1103 = vmatmul.bf16.gmra.mxu0 %v1093
    %v1104 = vpop.f32.mrf.mxu0
    %v1105 = vadd.f32 %v141, %v1104
    %v1106 = vpop.f32.mrf.mxu0
    %1107 = vdwg.mxu0
    %v1109 = vperm.slane %v416, 0
    %v1111 = vadd.f32 %v1105, %v1109
    %v1112 = vmul.f32 %v1111, 0.1
    %v1113 = vmul.f32 %v141, 0.9
    %v1114 = vadd.f32 %v1112, %v1113
    %v1116 = vperm.slane %v421, 0
    %vm1118 = vcmask 261120
    %v1120 = vsel %vm1118, %v1114, 0
    %1122 = vmatpush.msra.mxu0 0.0
    %1123 = vmatpush.msra.mxu0 0.0
    %1124 = vmatpush.msra.mxu0 0.0
    %1125 = vmatpush.msra.mxu0 0.0
    %1126 = vmatpush.msra.mxu0 0.0
    %1127 = vmatpush.msra.mxu0 0.0
    %1128 = vmatpush.msra.mxu0 0.0
    %1129 = vmatpush.msra.mxu0 0.0
    %1130 = vmatpush.msra.mxu0 0.0
    %1131 = vmatpush.msra.mxu0 0.0
    %1132 = vmatpush.msra.mxu0 0.0
    %1133 = vmatpush.msra.mxu0 0.0
    %1134 = vmatpush.msra.mxu0 %v420
    %1135 = vmatpush.msra.mxu0 %v419
    %1136 = vmatpush.msra.mxu0 %v418
    %1137 = vmatpush.msra.mxu0 %v417
    %1138 = vmatmul.f32.gmra.mxu0 %v1120
    %v1139 = vpop.f32.mrf.mxu0
    %v1140 = vadd.f32 %v1116, %v1139
    %1141 = vdwg.mxu0
    %v1142 = vmul.f32 %v1140, 0.33333334
    %v1143 = vmul.f32 %v1114, 0.6666667
    %v1144 = vadd.f32 %v1142, %v1143
    %v1145 = vmax.f32 %v1144, 0.0
    %v1146 = vpack.c.bf16 %v1145, %v1145
    %v1148 = vsel %vm431, %v1146, 0
    %1150 = vmatpush.bf16.msra.mxu0 0
    %1151 = vmatpush.bf16.msra.mxu0 0
    %1152 = vmatpush.bf16.msra.mxu0 0
    %1153 = vmatpush.bf16.msra.mxu0 0
    %1154 = vmatpush.bf16.msra.mxu0 0
    %1155 = vmatpush.bf16.msra.mxu0 0
    %1156 = vmatpush.bf16.msra.mxu0 0
    %1157 = vmatpush.bf16.msra.mxu0 %v1148
    %1158 = vmatmul.bf16.gmra.mxu0 %v429
    %v1159 = vpop.f32.mrf.mxu0
    %v1160 = vadd.f32 0.0, %v1159
    %v1161 = vpop.f32.mrf.mxu0
    %v1162 = vadd.f32 0.0, %v1161
    %1163 = vdwg.mxu0
    %1165 = vset.pattern.permute.xlu0 0
    %1166 = vperm.xlu0 %1165, %v1160
    %v1167 = vpop.permute.xlu0 %1166
    %1170 = vset.pattern.permute.xlu0 0
    %1171 = vperm.xlu0 %1170, %v1162
    %v1172 = vpop.permute.xlu0 %1171
    %v1174 = vmul.f32 %v1167, %v449
    %v1175 = vmul.f32 %v1172, %v450
    %v1176 = vadd.f32 %v1174, 0.0
    %v1177 = vadd.f32 %v1175, 0.0
    %1178 = vset.pattern.permute.xlu0 1
    %1179 = vperm.xlu0 %1178, %v1160
    %v1180 = vpop.permute.xlu0 %1179
    %1182 = vset.pattern.permute.xlu0 1
    %1183 = vperm.xlu0 %1182, %v1162
    %v1184 = vpop.permute.xlu0 %1183
    %v1186 = vmul.f32 %v1180, %v449
    %v1187 = vmul.f32 %v1184, %v450
    %1190 = vrot.lane.b32.xlu0 %v1186, 96
    %v1191 = vpop.permute.xlu0 %1190
    %1192 = vrot.lane.b32.xlu0 %v1187, 96
    %v1193 = vpop.permute.xlu0 %1192
    %v1196 = vadd.f32 %v1176, %v1191
    %v1197 = vadd.f32 %v1177, %v1193
    %1198 = vset.pattern.permute.xlu0 2
    %1199 = vperm.xlu0 %1198, %v1160
    %v1200 = vpop.permute.xlu0 %1199
    %1202 = vset.pattern.permute.xlu0 2
    %1203 = vperm.xlu0 %1202, %v1162
    %v1204 = vpop.permute.xlu0 %1203
    %v1206 = vmul.f32 %v1200, %v449
    %v1207 = vmul.f32 %v1204, %v450
    %1210 = vrot.lane.b32.xlu0 %v1206, 64
    %v1211 = vpop.permute.xlu0 %1210
    %1212 = vrot.lane.b32.xlu0 %v1207, 64
    %v1213 = vpop.permute.xlu0 %1212
    %v1216 = vadd.f32 %v1196, %v1211
    %v1217 = vadd.f32 %v1197, %v1213
    %1218 = vset.pattern.permute.xlu0 3
    %1219 = vperm.xlu0 %1218, %v1160
    %v1220 = vpop.permute.xlu0 %1219
    %1222 = vset.pattern.permute.xlu0 3
    %1223 = vperm.xlu0 %1222, %v1162
    %v1224 = vpop.permute.xlu0 %1223
    %v1226 = vmul.f32 %v1220, %v449
    %v1227 = vmul.f32 %v1224, %v450
    %1230 = vrot.lane.b32.xlu0 %v1226, 32
    %v1231 = vpop.permute.xlu0 %1230
    %1232 = vrot.lane.b32.xlu0 %v1227, 32
    %v1233 = vpop.permute.xlu0 %1232
    %v1236 = vadd.f32 %v1216, %v1231
    %v1237 = vadd.f32 %v1217, %v1233
    %1238 = vset.pattern.permute.xlu0 4
    %1239 = vperm.xlu0 %1238, %v1160
    %v1240 = vpop.permute.xlu0 %1239
    %1242 = vset.pattern.permute.xlu0 4
    %1243 = vperm.xlu0 %1242, %v1162
    %v1244 = vpop.permute.xlu0 %1243
    %v1246 = vmul.f32 %v1240, %v531
    %v1247 = vmul.f32 %v1244, %v532
    %v1248 = vadd.f32 %v1236, %v1246
    %v1249 = vadd.f32 %v1237, %v1247
    %1250 = vset.pattern.permute.xlu0 5
    %1251 = vperm.xlu0 %1250, %v1160
    %v1252 = vpop.permute.xlu0 %1251
    %1254 = vset.pattern.permute.xlu0 5
    %1255 = vperm.xlu0 %1254, %v1162
    %v1256 = vpop.permute.xlu0 %1255
    %v1258 = vmul.f32 %v1252, %v553
    %v1259 = vmul.f32 %v1256, %v554
    %v1260 = vadd.f32 %v1248, %v1258
    %v1261 = vadd.f32 %v1249, %v1259
    %1262 = vset.pattern.permute.xlu0 6
    %1263 = vperm.xlu0 %1262, %v1160
    %v1264 = vpop.permute.xlu0 %1263
    %1266 = vset.pattern.permute.xlu0 6
    %1267 = vperm.xlu0 %1266, %v1162
    %v1268 = vpop.permute.xlu0 %1267
    %v1270 = vmul.f32 %v1264, %v575
    %v1271 = vmul.f32 %v1268, %v576
    %v1272 = vadd.f32 %v1260, %v1270
    %v1273 = vadd.f32 %v1261, %v1271
    %1274 = vset.pattern.permute.xlu0 7
    %1275 = vperm.xlu0 %1274, %v1160
    %v1276 = vpop.permute.xlu0 %1275
    %1278 = vset.pattern.permute.xlu0 7
    %1279 = vperm.xlu0 %1278, %v1162
    %v1280 = vpop.permute.xlu0 %1279
    %v1282 = vmul.f32 %v1276, %v597
    %v1283 = vmul.f32 %v1280, %v598
    %v1284 = vadd.f32 %v1272, %v1282
    %v1285 = vadd.f32 %v1273, %v1283
    %1286 = vset.pattern.permute.xlu0 8
    %1287 = vperm.xlu0 %1286, %v1160
    %v1288 = vpop.permute.xlu0 %1287
    %1290 = vset.pattern.permute.xlu0 8
    %1291 = vperm.xlu0 %1290, %v1162
    %v1292 = vpop.permute.xlu0 %1291
    %v1294 = vmul.f32 %v1288, %v611
    %v1295 = vmul.f32 %v1292, %v612
    %v1296 = vadd.f32 %v1284, %v1294
    %v1297 = vadd.f32 %v1285, %v1295
    %1298 = vset.pattern.permute.xlu0 9
    %1299 = vperm.xlu0 %1298, %v1160
    %v1300 = vpop.permute.xlu0 %1299
    %1302 = vset.pattern.permute.xlu0 9
    %1303 = vperm.xlu0 %1302, %v1162
    %v1304 = vpop.permute.xlu0 %1303
    %v1306 = vmul.f32 %v1300, %v611
    %v1307 = vmul.f32 %v1304, %v612
    %1310 = vrot.lane.b32.xlu0 %v1306, 96
    %v1311 = vpop.permute.xlu0 %1310
    %1312 = vrot.lane.b32.xlu0 %v1307, 96
    %v1313 = vpop.permute.xlu0 %1312
    %v1316 = vadd.f32 %v1296, %v1311
    %v1317 = vadd.f32 %v1297, %v1313
    %1318 = vset.pattern.permute.xlu0 10
    %1319 = vperm.xlu0 %1318, %v1160
    %v1320 = vpop.permute.xlu0 %1319
    %1322 = vset.pattern.permute.xlu0 10
    %1323 = vperm.xlu0 %1322, %v1162
    %v1324 = vpop.permute.xlu0 %1323
    %v1326 = vmul.f32 %v1320, %v611
    %v1327 = vmul.f32 %v1324, %v612
    %1330 = vrot.lane.b32.xlu0 %v1326, 64
    %v1331 = vpop.permute.xlu0 %1330
    %1332 = vrot.lane.b32.xlu0 %v1327, 64
    %v1333 = vpop.permute.xlu0 %1332
    %v1336 = vadd.f32 %v1316, %v1331
    %v1337 = vadd.f32 %v1317, %v1333
    %1338 = vset.pattern.permute.xlu0 11
    %1339 = vperm.xlu0 %1338, %v1160
    %v1340 = vpop.permute.xlu0 %1339
    %1342 = vset.pattern.permute.xlu0 11
    %1343 = vperm.xlu0 %1342, %v1162
    %v1344 = vpop.permute.xlu0 %1343
    %v1346 = vmul.f32 %v1340, %v611
    %v1347 = vmul.f32 %v1344, %v612
    %1350 = vrot.lane.b32.xlu0 %v1346, 32
    %v1351 = vpop.permute.xlu0 %1350
    %1352 = vrot.lane.b32.xlu0 %v1347, 32
    %v1353 = vpop.permute.xlu0 %1352
    %v1356 = vadd.f32 %v1336, %v1351
    %v1357 = vadd.f32 %v1337, %v1353
    %1358 = vset.pattern.permute.xlu0 12
    %1359 = vperm.xlu0 %1358, %v1160
    %v1360 = vpop.permute.xlu0 %1359
    %1362 = vset.pattern.permute.xlu0 12
    %1363 = vperm.xlu0 %1362, %v1162
    %v1364 = vpop.permute.xlu0 %1363
    %v1366 = vmul.f32 %v1360, %v691
    %v1367 = vmul.f32 %v1364, %v692
    %v1368 = vadd.f32 %v1356, %v1366
    %v1369 = vadd.f32 %v1357, %v1367
    %1370 = vset.pattern.permute.xlu0 13
    %1371 = vperm.xlu0 %1370, %v1160
    %v1372 = vpop.permute.xlu0 %1371
    %1374 = vset.pattern.permute.xlu0 13
    %1375 = vperm.xlu0 %1374, %v1162
    %v1376 = vpop.permute.xlu0 %1375
    %v1378 = vmul.f32 %v1372, %v713
    %v1379 = vmul.f32 %v1376, %v714
    %v1380 = vadd.f32 %v1368, %v1378
    %v1381 = vadd.f32 %v1369, %v1379
    %1382 = vset.pattern.permute.xlu0 14
    %1383 = vperm.xlu0 %1382, %v1160
    %v1384 = vpop.permute.xlu0 %1383
    %1386 = vset.pattern.permute.xlu0 14
    %1387 = vperm.xlu0 %1386, %v1162
    %v1388 = vpop.permute.xlu0 %1387
    %v1390 = vmul.f32 %v1384, %v735
    %v1391 = vmul.f32 %v1388, %v736
    %v1392 = vadd.f32 %v1380, %v1390
    %v1393 = vadd.f32 %v1381, %v1391
    %1394 = vset.pattern.permute.xlu0 15
    %1395 = vperm.xlu0 %1394, %v1160
    %v1396 = vpop.permute.xlu0 %1395
    %1398 = vset.pattern.permute.xlu0 15
    %1399 = vperm.xlu0 %1398, %v1162
    %v1400 = vpop.permute.xlu0 %1399
    %v1402 = vmul.f32 %v1396, %v757
    %v1403 = vmul.f32 %v1400, %v758
    %v1404 = vadd.f32 %v1392, %v1402
    %v1405 = vadd.f32 %v1393, %v1403
    %1406 = vset.pattern.permute.xlu0 16
    %1407 = vperm.xlu0 %1406, %v1160
    %v1408 = vpop.permute.xlu0 %1407
    %1410 = vset.pattern.permute.xlu0 16
    %1411 = vperm.xlu0 %1410, %v1162
    %v1412 = vpop.permute.xlu0 %1411
    %v1414 = vmul.f32 %v1408, %v771
    %v1415 = vmul.f32 %v1412, %v772
    %v1416 = vadd.f32 %v1404, %v1414
    %v1417 = vadd.f32 %v1405, %v1415
    %1418 = vset.pattern.permute.xlu0 17
    %1419 = vperm.xlu0 %1418, %v1160
    %v1420 = vpop.permute.xlu0 %1419
    %1422 = vset.pattern.permute.xlu0 17
    %1423 = vperm.xlu0 %1422, %v1162
    %v1424 = vpop.permute.xlu0 %1423
    %v1426 = vmul.f32 %v1420, %v771
    %v1427 = vmul.f32 %v1424, %v772
    %1430 = vrot.lane.b32.xlu0 %v1426, 96
    %v1431 = vpop.permute.xlu0 %1430
    %1432 = vrot.lane.b32.xlu0 %v1427, 96
    %v1433 = vpop.permute.xlu0 %1432
    %v1436 = vadd.f32 %v1416, %v1431
    %v1437 = vadd.f32 %v1417, %v1433
    %1438 = vset.pattern.permute.xlu0 18
    %1439 = vperm.xlu0 %1438, %v1160
    %v1440 = vpop.permute.xlu0 %1439
    %1442 = vset.pattern.permute.xlu0 18
    %1443 = vperm.xlu0 %1442, %v1162
    %v1444 = vpop.permute.xlu0 %1443
    %v1446 = vmul.f32 %v1440, %v771
    %v1447 = vmul.f32 %v1444, %v772
    %1450 = vrot.lane.b32.xlu0 %v1446, 64
    %v1451 = vpop.permute.xlu0 %1450
    %1452 = vrot.lane.b32.xlu0 %v1447, 64
    %v1453 = vpop.permute.xlu0 %1452
    %v1456 = vadd.f32 %v1436, %v1451
    %v1457 = vadd.f32 %v1437, %v1453
    %1458 = vset.pattern.permute.xlu0 19
    %1459 = vperm.xlu0 %1458, %v1160
    %v1460 = vpop.permute.xlu0 %1459
    %1462 = vset.pattern.permute.xlu0 19
    %1463 = vperm.xlu0 %1462, %v1162
    %v1464 = vpop.permute.xlu0 %1463
    %v1466 = vmul.f32 %v1460, %v771
    %v1467 = vmul.f32 %v1464, %v772
    %1470 = vrot.lane.b32.xlu0 %v1466, 32
    %v1471 = vpop.permute.xlu0 %1470
    %1472 = vrot.lane.b32.xlu0 %v1467, 32
    %v1473 = vpop.permute.xlu0 %1472
    %v1476 = vadd.f32 %v1456, %v1471
    %v1477 = vadd.f32 %v1457, %v1473
    %1478 = vset.pattern.permute.xlu0 20
    %1479 = vperm.xlu0 %1478, %v1160
    %v1480 = vpop.permute.xlu0 %1479
    %1482 = vset.pattern.permute.xlu0 20
    %1483 = vperm.xlu0 %1482, %v1162
    %v1484 = vpop.permute.xlu0 %1483
    %v1486 = vmul.f32 %v1480, %v851
    %v1487 = vmul.f32 %v1484, %v852
    %v1488 = vadd.f32 %v1476, %v1486
    %v1489 = vadd.f32 %v1477, %v1487
    %1490 = vset.pattern.permute.xlu0 21
    %1491 = vperm.xlu0 %1490, %v1160
    %v1492 = vpop.permute.xlu0 %1491
    %1494 = vset.pattern.permute.xlu0 21
    %1495 = vperm.xlu0 %1494, %v1162
    %v1496 = vpop.permute.xlu0 %1495
    %v1498 = vmul.f32 %v1492, %v873
    %v1499 = vmul.f32 %v1496, %v874
    %v1500 = vadd.f32 %v1488, %v1498
    %v1501 = vadd.f32 %v1489, %v1499
    %1502 = vset.pattern.permute.xlu0 22
    %1503 = vperm.xlu0 %1502, %v1160
    %v1504 = vpop.permute.xlu0 %1503
    %1506 = vset.pattern.permute.xlu0 22
    %1507 = vperm.xlu0 %1506, %v1162
    %v1508 = vpop.permute.xlu0 %1507
    %v1510 = vmul.f32 %v1504, %v895
    %v1511 = vmul.f32 %v1508, %v896
    %v1512 = vadd.f32 %v1500, %v1510
    %v1513 = vadd.f32 %v1501, %v1511
    %1514 = vset.pattern.permute.xlu0 23
    %1515 = vperm.xlu0 %1514, %v1160
    %v1516 = vpop.permute.xlu0 %1515
    %1518 = vset.pattern.permute.xlu0 23
    %1519 = vperm.xlu0 %1518, %v1162
    %v1520 = vpop.permute.xlu0 %1519
    %v1522 = vmul.f32 %v1516, %v917
    %v1523 = vmul.f32 %v1520, %v918
    %v1524 = vadd.f32 %v1512, %v1522
    %v1525 = vadd.f32 %v1513, %v1523
    %1526 = vset.pattern.permute.xlu0 24
    %1527 = vperm.xlu0 %1526, %v1160
    %v1528 = vpop.permute.xlu0 %1527
    %1530 = vset.pattern.permute.xlu0 24
    %1531 = vperm.xlu0 %1530, %v1162
    %v1532 = vpop.permute.xlu0 %1531
    %v1534 = vmul.f32 %v1528, %v931
    %v1535 = vmul.f32 %v1532, %v932
    %v1536 = vadd.f32 %v1524, %v1534
    %v1537 = vadd.f32 %v1525, %v1535
    %1538 = vset.pattern.permute.xlu0 25
    %1539 = vperm.xlu0 %1538, %v1160
    %v1540 = vpop.permute.xlu0 %1539
    %1542 = vset.pattern.permute.xlu0 25
    %1543 = vperm.xlu0 %1542, %v1162
    %v1544 = vpop.permute.xlu0 %1543
    %v1546 = vmul.f32 %v1540, %v931
    %v1547 = vmul.f32 %v1544, %v932
    %1550 = vrot.lane.b32.xlu0 %v1546, 96
    %v1551 = vpop.permute.xlu0 %1550
    %1552 = vrot.lane.b32.xlu0 %v1547, 96
    %v1553 = vpop.permute.xlu0 %1552
    %v1556 = vadd.f32 %v1536, %v1551
    %v1557 = vadd.f32 %v1537, %v1553
    %1558 = vset.pattern.permute.xlu0 26
    %1559 = vperm.xlu0 %1558, %v1160
    %v1560 = vpop.permute.xlu0 %1559
    %1562 = vset.pattern.permute.xlu0 26
    %1563 = vperm.xlu0 %1562, %v1162
    %v1564 = vpop.permute.xlu0 %1563
    %v1566 = vmul.f32 %v1560, %v931
    %v1567 = vmul.f32 %v1564, %v932
    %1570 = vrot.lane.b32.xlu0 %v1566, 64
    %v1571 = vpop.permute.xlu0 %1570
    %1572 = vrot.lane.b32.xlu0 %v1567, 64
    %v1573 = vpop.permute.xlu0 %1572
    %v1576 = vadd.f32 %v1556, %v1571
    %v1577 = vadd.f32 %v1557, %v1573
    %1578 = vset.pattern.permute.xlu0 27
    %1579 = vperm.xlu0 %1578, %v1160
    %v1580 = vpop.permute.xlu0 %1579
    %1582 = vset.pattern.permute.xlu0 27
    %1583 = vperm.xlu0 %1582, %v1162
    %v1584 = vpop.permute.xlu0 %1583
    %v1586 = vmul.f32 %v1580, %v931
    %v1587 = vmul.f32 %v1584, %v932
    %1590 = vrot.lane.b32.xlu0 %v1586, 32
    %v1591 = vpop.permute.xlu0 %1590
    %1592 = vrot.lane.b32.xlu0 %v1587, 32
    %v1593 = vpop.permute.xlu0 %1592
    %v1596 = vadd.f32 %v1576, %v1591
    %v1597 = vadd.f32 %v1577, %v1593
    %1598 = vset.pattern.permute.xlu0 28
    %1599 = vperm.xlu0 %1598, %v1160
    %v1600 = vpop.permute.xlu0 %1599
    %1602 = vset.pattern.permute.xlu0 28
    %1603 = vperm.xlu0 %1602, %v1162
    %v1604 = vpop.permute.xlu0 %1603
    %v1606 = vmul.f32 %v1600, %v1011
    %v1607 = vmul.f32 %v1604, %v1012
    %v1608 = vadd.f32 %v1596, %v1606
    %v1609 = vadd.f32 %v1597, %v1607
    %1610 = vset.pattern.permute.xlu0 29
    %1611 = vperm.xlu0 %1610, %v1160
    %v1612 = vpop.permute.xlu0 %1611
    %1614 = vset.pattern.permute.xlu0 29
    %1615 = vperm.xlu0 %1614, %v1162
    %v1616 = vpop.permute.xlu0 %1615
    %v1618 = vmul.f32 %v1612, %v1033
    %v1619 = vmul.f32 %v1616, %v1034
    %v1620 = vadd.f32 %v1608, %v1618
    %v1621 = vadd.f32 %v1609, %v1619
    %1622 = vset.pattern.permute.xlu0 30
    %1623 = vperm.xlu0 %1622, %v1160
    %v1624 = vpop.permute.xlu0 %1623
    %1626 = vset.pattern.permute.xlu0 30
    %1627 = vperm.xlu0 %1626, %v1162
    %v1628 = vpop.permute.xlu0 %1627
    %v1630 = vmul.f32 %v1624, %v1055
    %v1631 = vmul.f32 %v1628, %v1056
    %v1632 = vadd.f32 %v1620, %v1630
    %v1633 = vadd.f32 %v1621, %v1631
    %1634 = vset.pattern.permute.xlu0 31
    %1635 = vperm.xlu0 %1634, %v1160
    %v1636 = vpop.permute.xlu0 %1635
    %1638 = vset.pattern.permute.xlu0 31
    %1639 = vperm.xlu0 %1638, %v1162
    %v1640 = vpop.permute.xlu0 %1639
    %v1642 = vmul.f32 %v1636, %v1077
    %v1643 = vmul.f32 %v1640, %v1078
    %v1644 = vadd.f32 %v1632, %v1642
    %v1645 = vadd.f32 %v1633, %v1643
    %v1646 = vpack.c.bf16 %v1645, %v1644
    %1647 = vmatpush.bf16.msra.mxu0 0
    %1648 = vmatpush.bf16.msra.mxu0 0
    %1649 = vmatpush.bf16.msra.mxu0 0
    %1650 = vmatpush.bf16.msra.mxu0 0
    %1651 = vmatpush.bf16.msra.mxu0 0
    %1652 = vmatpush.bf16.msra.mxu0 0
    %1653 = vmatpush.bf16.msra.mxu0 0
    %1654 = vmatpush.bf16.msra.mxu0 %v1646
    %1655 = vmatmul.bf16.gmra.mxu0 %v1093
    %v1656 = vpop.f32.mrf.mxu0
    %v1657 = vadd.f32 %v1145, %v1656
    %v1658 = vpop.f32.mrf.mxu0
    %1659 = vdwg.mxu0
    %v1660 = vadd.f32 %v1657, %v1109
    %v1661 = vmul.f32 %v1660, 0.1
    %v1662 = vadd.f32 %v1661, %v1113
    %v1664 = vsel %vm1118, %v1662, 0
    %1666 = vmatpush.msra.mxu0 0.0
    %1667 = vmatpush.msra.mxu0 0.0
    %1668 = vmatpush.msra.mxu0 0.0
    %1669 = vmatpush.msra.mxu0 0.0
    %1670 = vmatpush.msra.mxu0 0.0
    %1671 = vmatpush.msra.mxu0 0.0
    %1672 = vmatpush.msra.mxu0 0.0
    %1673 = vmatpush.msra.mxu0 0.0
    %1674 = vmatpush.msra.mxu0 0.0
    %1675 = vmatpush.msra.mxu0 0.0
    %1676 = vmatpush.msra.mxu0 0.0
    %1677 = vmatpush.msra.mxu0 0.0
    %1678 = vmatpush.msra.mxu0 %v420
    %1679 = vmatpush.msra.mxu0 %v419
    %1680 = vmatpush.msra.mxu0 %v418
    %1681 = vmatpush.msra.mxu0 %v417
    %1682 = vmatmul.f32.gmra.mxu0 %v1664
    %v1683 = vpop.f32.mrf.mxu0
    %v1684 = vadd.f32 %v1116, %v1683
    %1685 = vdwg.mxu0
    %v1686 = vmul.f32 %v1684, 0.33333334
    %v1687 = vmul.f32 %v1662, 0.6666667
    %v1688 = vadd.f32 %v1686, %v1687
    %v1689 = vmax.f32 %v1688, 0.0
    %v1690 = vpack.c.bf16 %v1689, %v1689
    %v1692 = vsel %vm431, %v1690, 0
    %1694 = vmatpush.bf16.msra.mxu0 0
    %1695 = vmatpush.bf16.msra.mxu0 0
    %1696 = vmatpush.bf16.msra.mxu0 0
    %1697 = vmatpush.bf16.msra.mxu0 0
    %1698 = vmatpush.bf16.msra.mxu0 0
    %1699 = vmatpush.bf16.msra.mxu0 0
    %1700 = vmatpush.bf16.msra.mxu0 0
    %1701 = vmatpush.bf16.msra.mxu0 %v1692
    %1702 = vmatmul.bf16.gmra.mxu0 %v429
    %v1703 = vpop.f32.mrf.mxu0
    %v1704 = vadd.f32 0.0, %v1703
    %v1705 = vpop.f32.mrf.mxu0
    %v1706 = vadd.f32 0.0, %v1705
    %1707 = vdwg.mxu0
    %1709 = vset.pattern.permute.xlu0 0
    %1710 = vperm.xlu0 %1709, %v1704
    %v1711 = vpop.permute.xlu0 %1710
    %1714 = vset.pattern.permute.xlu0 0
    %1715 = vperm.xlu0 %1714, %v1706
    %v1716 = vpop.permute.xlu0 %1715
    %v1718 = vmul.f32 %v1711, %v449
    %v1719 = vmul.f32 %v1716, %v450
    %v1720 = vadd.f32 %v1718, 0.0
    %v1721 = vadd.f32 %v1719, 0.0
    %1722 = vset.pattern.permute.xlu0 1
    %1723 = vperm.xlu0 %1722, %v1704
    %v1724 = vpop.permute.xlu0 %1723
    %1726 = vset.pattern.permute.xlu0 1
    %1727 = vperm.xlu0 %1726, %v1706
    %v1728 = vpop.permute.xlu0 %1727
    %v1730 = vmul.f32 %v1724, %v449
    %v1731 = vmul.f32 %v1728, %v450
    %1734 = vrot.lane.b32.xlu0 %v1730, 96
    %v1735 = vpop.permute.xlu0 %1734
    %1736 = vrot.lane.b32.xlu0 %v1731, 96
    %v1737 = vpop.permute.xlu0 %1736
    %v1740 = vadd.f32 %v1720, %v1735
    %v1741 = vadd.f32 %v1721, %v1737
    %1742 = vset.pattern.permute.xlu0 2
    %1743 = vperm.xlu0 %1742, %v1704
    %v1744 = vpop.permute.xlu0 %1743
    %1746 = vset.pattern.permute.xlu0 2
    %1747 = vperm.xlu0 %1746, %v1706
    %v1748 = vpop.permute.xlu0 %1747
    %v1750 = vmul.f32 %v1744, %v449
    %v1751 = vmul.f32 %v1748, %v450
    %1754 = vrot.lane.b32.xlu0 %v1750, 64
    %v1755 = vpop.permute.xlu0 %1754
    %1756 = vrot.lane.b32.xlu0 %v1751, 64
    %v1757 = vpop.permute.xlu0 %1756
    %v1760 = vadd.f32 %v1740, %v1755
    %v1761 = vadd.f32 %v1741, %v1757
    %1762 = vset.pattern.permute.xlu0 3
    %1763 = vperm.xlu0 %1762, %v1704
    %v1764 = vpop.permute.xlu0 %1763
    %1766 = vset.pattern.permute.xlu0 3
    %1767 = vperm.xlu0 %1766, %v1706
    %v1768 = vpop.permute.xlu0 %1767
    %v1770 = vmul.f32 %v1764, %v449
    %v1771 = vmul.f32 %v1768, %v450
    %1774 = vrot.lane.b32.xlu0 %v1770, 32
    %v1775 = vpop.permute.xlu0 %1774
    %1776 = vrot.lane.b32.xlu0 %v1771, 32
    %v1777 = vpop.permute.xlu0 %1776
    %v1780 = vadd.f32 %v1760, %v1775
    %v1781 = vadd.f32 %v1761, %v1777
    %1782 = vset.pattern.permute.xlu0 4
    %1783 = vperm.xlu0 %1782, %v1704
    %v1784 = vpop.permute.xlu0 %1783
    %1786 = vset.pattern.permute.xlu0 4
    %1787 = vperm.xlu0 %1786, %v1706
    %v1788 = vpop.permute.xlu0 %1787
    %v1790 = vmul.f32 %v1784, %v531
    %v1791 = vmul.f32 %v1788, %v532
    %v1792 = vadd.f32 %v1780, %v1790
    %v1793 = vadd.f32 %v1781, %v1791
    %1794 = vset.pattern.permute.xlu0 5
    %1795 = vperm.xlu0 %1794, %v1704
    %v1796 = vpop.permute.xlu0 %1795
    %1798 = vset.pattern.permute.xlu0 5
    %1799 = vperm.xlu0 %1798, %v1706
    %v1800 = vpop.permute.xlu0 %1799
    %v1802 = vmul.f32 %v1796, %v553
    %v1803 = vmul.f32 %v1800, %v554
    %v1804 = vadd.f32 %v1792, %v1802
    %v1805 = vadd.f32 %v1793, %v1803
    %1806 = vset.pattern.permute.xlu0 6
    %1807 = vperm.xlu0 %1806, %v1704
    %v1808 = vpop.permute.xlu0 %1807
    %1810 = vset.pattern.permute.xlu0 6
    %1811 = vperm.xlu0 %1810, %v1706
    %v1812 = vpop.permute.xlu0 %1811
    %v1814 = vmul.f32 %v1808, %v575
    %v1815 = vmul.f32 %v1812, %v576
    %v1816 = vadd.f32 %v1804, %v1814
    %v1817 = vadd.f32 %v1805, %v1815
    %1818 = vset.pattern.permute.xlu0 7
    %1819 = vperm.xlu0 %1818, %v1704
    %v1820 = vpop.permute.xlu0 %1819
    %1822 = vset.pattern.permute.xlu0 7
    %1823 = vperm.xlu0 %1822, %v1706
    %v1824 = vpop.permute.xlu0 %1823
    %v1826 = vmul.f32 %v1820, %v597
    %v1827 = vmul.f32 %v1824, %v598
    %v1828 = vadd.f32 %v1816, %v1826
    %v1829 = vadd.f32 %v1817, %v1827
    %1830 = vset.pattern.permute.xlu0 8
    %1831 = vperm.xlu0 %1830, %v1704
    %v1832 = vpop.permute.xlu0 %1831
    %1834 = vset.pattern.permute.xlu0 8
    %1835 = vperm.xlu0 %1834, %v1706
    %v1836 = vpop.permute.xlu0 %1835
    %v1838 = vmul.f32 %v1832, %v611
    %v1839 = vmul.f32 %v1836, %v612
    %v1840 = vadd.f32 %v1828, %v1838
    %v1841 = vadd.f32 %v1829, %v1839
    %1842 = vset.pattern.permute.xlu0 9
    %1843 = vperm.xlu0 %1842, %v1704
    %v1844 = vpop.permute.xlu0 %1843
    %1846 = vset.pattern.permute.xlu0 9
    %1847 = vperm.xlu0 %1846, %v1706
    %v1848 = vpop.permute.xlu0 %1847
    %v1850 = vmul.f32 %v1844, %v611
    %v1851 = vmul.f32 %v1848, %v612
    %1854 = vrot.lane.b32.xlu0 %v1850, 96
    %v1855 = vpop.permute.xlu0 %1854
    %1856 = vrot.lane.b32.xlu0 %v1851, 96
    %v1857 = vpop.permute.xlu0 %1856
    %v1860 = vadd.f32 %v1840, %v1855
    %v1861 = vadd.f32 %v1841, %v1857
    %1862 = vset.pattern.permute.xlu0 10
    %1863 = vperm.xlu0 %1862, %v1704
    %v1864 = vpop.permute.xlu0 %1863
    %1866 = vset.pattern.permute.xlu0 10
    %1867 = vperm.xlu0 %1866, %v1706
    %v1868 = vpop.permute.xlu0 %1867
    %v1870 = vmul.f32 %v1864, %v611
    %v1871 = vmul.f32 %v1868, %v612
    %1874 = vrot.lane.b32.xlu0 %v1870, 64
    %v1875 = vpop.permute.xlu0 %1874
    %1876 = vrot.lane.b32.xlu0 %v1871, 64
    %v1877 = vpop.permute.xlu0 %1876
    %v1880 = vadd.f32 %v1860, %v1875
    %v1881 = vadd.f32 %v1861, %v1877
    %1882 = vset.pattern.permute.xlu0 11
    %1883 = vperm.xlu0 %1882, %v1704
    %v1884 = vpop.permute.xlu0 %1883
    %1886 = vset.pattern.permute.xlu0 11
    %1887 = vperm.xlu0 %1886, %v1706
    %v1888 = vpop.permute.xlu0 %1887
    %v1890 = vmul.f32 %v1884, %v611
    %v1891 = vmul.f32 %v1888, %v612
    %1894 = vrot.lane.b32.xlu0 %v1890, 32
    %v1895 = vpop.permute.xlu0 %1894
    %1896 = vrot.lane.b32.xlu0 %v1891, 32
    %v1897 = vpop.permute.xlu0 %1896
    %v1900 = vadd.f32 %v1880, %v1895
    %v1901 = vadd.f32 %v1881, %v1897
    %1902 = vset.pattern.permute.xlu0 12
    %1903 = vperm.xlu0 %1902, %v1704
    %v1904 = vpop.permute.xlu0 %1903
    %1906 = vset.pattern.permute.xlu0 12
    %1907 = vperm.xlu0 %1906, %v1706
    %v1908 = vpop.permute.xlu0 %1907
    %v1910 = vmul.f32 %v1904, %v691
    %v1911 = vmul.f32 %v1908, %v692
    %v1912 = vadd.f32 %v1900, %v1910
    %v1913 = vadd.f32 %v1901, %v1911
    %1914 = vset.pattern.permute.xlu0 13
    %1915 = vperm.xlu0 %1914, %v1704
    %v1916 = vpop.permute.xlu0 %1915
    %1918 = vset.pattern.permute.xlu0 13
    %1919 = vperm.xlu0 %1918, %v1706
    %v1920 = vpop.permute.xlu0 %1919
    %v1922 = vmul.f32 %v1916, %v713
    %v1923 = vmul.f32 %v1920, %v714
    %v1924 = vadd.f32 %v1912, %v1922
    %v1925 = vadd.f32 %v1913, %v1923
    %1926 = vset.pattern.permute.xlu0 14
    %1927 = vperm.xlu0 %1926, %v1704
    %v1928 = vpop.permute.xlu0 %1927
    %1930 = vset.pattern.permute.xlu0 14
    %1931 = vperm.xlu0 %1930, %v1706
    %v1932 = vpop.permute.xlu0 %1931
    %v1934 = vmul.f32 %v1928, %v735
    %v1935 = vmul.f32 %v1932, %v736
    %v1936 = vadd.f32 %v1924, %v1934
    %v1937 = vadd.f32 %v1925, %v1935
    %1938 = vset.pattern.permute.xlu0 15
    %1939 = vperm.xlu0 %1938, %v1704
    %v1940 = vpop.permute.xlu0 %1939
    %1942 = vset.pattern.permute.xlu0 15
    %1943 = vperm.xlu0 %1942, %v1706
    %v1944 = vpop.permute.xlu0 %1943
    %v1946 = vmul.f32 %v1940, %v757
    %v1947 = vmul.f32 %v1944, %v758
    %v1948 = vadd.f32 %v1936, %v1946
    %v1949 = vadd.f32 %v1937, %v1947
    %1950 = vset.pattern.permute.xlu0 16
    %1951 = vperm.xlu0 %1950, %v1704
    %v1952 = vpop.permute.xlu0 %1951
    %1954 = vset.pattern.permute.xlu0 16
    %1955 = vperm.xlu0 %1954, %v1706
    %v1956 = vpop.permute.xlu0 %1955
    %v1958 = vmul.f32 %v1952, %v771
    %v1959 = vmul.f32 %v1956, %v772
    %v1960 = vadd.f32 %v1948, %v1958
    %v1961 = vadd.f32 %v1949, %v1959
    %1962 = vset.pattern.permute.xlu0 17
    %1963 = vperm.xlu0 %1962, %v1704
    %v1964 = vpop.permute.xlu0 %1963
    %1966 = vset.pattern.permute.xlu0 17
    %1967 = vperm.xlu0 %1966, %v1706
    %v1968 = vpop.permute.xlu0 %1967
    %v1970 = vmul.f32 %v1964, %v771
    %v1971 = vmul.f32 %v1968, %v772
    %1974 = vrot.lane.b32.xlu0 %v1970, 96
    %v1975 = vpop.permute.xlu0 %1974
    %1976 = vrot.lane.b32.xlu0 %v1971, 96
    %v1977 = vpop.permute.xlu0 %1976
    %v1980 = vadd.f32 %v1960, %v1975
    %v1981 = vadd.f32 %v1961, %v1977
    %1982 = vset.pattern.permute.xlu0 18
    %1983 = vperm.xlu0 %1982, %v1704
    %v1984 = vpop.permute.xlu0 %1983
    %1986 = vset.pattern.permute.xlu0 18
    %1987 = vperm.xlu0 %1986, %v1706
    %v1988 = vpop.permute.xlu0 %1987
    %v1990 = vmul.f32 %v1984, %v771
    %v1991 = vmul.f32 %v1988, %v772
    %1994 = vrot.lane.b32.xlu0 %v1990, 64
    %v1995 = vpop.permute.xlu0 %1994
    %1996 = vrot.lane.b32.xlu0 %v1991, 64
    %v1997 = vpop.permute.xlu0 %1996
    %v2000 = vadd.f32 %v1980, %v1995
    %v2001 = vadd.f32 %v1981, %v1997
    %2002 = vset.pattern.permute.xlu0 19
    %2003 = vperm.xlu0 %2002, %v1704
    %v2004 = vpop.permute.xlu0 %2003
    %2006 = vset.pattern.permute.xlu0 19
    %2007 = vperm.xlu0 %2006, %v1706
    %v2008 = vpop.permute.xlu0 %2007
    %v2010 = vmul.f32 %v2004, %v771
    %v2011 = vmul.f32 %v2008, %v772
    %2014 = vrot.lane.b32.xlu0 %v2010, 32
    %v2015 = vpop.permute.xlu0 %2014
    %2016 = vrot.lane.b32.xlu0 %v2011, 32
    %v2017 = vpop.permute.xlu0 %2016
    %v2020 = vadd.f32 %v2000, %v2015
    %v2021 = vadd.f32 %v2001, %v2017
    %2022 = vset.pattern.permute.xlu0 20
    %2023 = vperm.xlu0 %2022, %v1704
    %v2024 = vpop.permute.xlu0 %2023
    %2026 = vset.pattern.permute.xlu0 20
    %2027 = vperm.xlu0 %2026, %v1706
    %v2028 = vpop.permute.xlu0 %2027
    %v2030 = vmul.f32 %v2024, %v851
    %v2031 = vmul.f32 %v2028, %v852
    %v2032 = vadd.f32 %v2020, %v2030
    %v2033 = vadd.f32 %v2021, %v2031
    %2034 = vset.pattern.permute.xlu0 21
    %2035 = vperm.xlu0 %2034, %v1704
    %v2036 = vpop.permute.xlu0 %2035
    %2038 = vset.pattern.permute.xlu0 21
    %2039 = vperm.xlu0 %2038, %v1706
    %v2040 = vpop.permute.xlu0 %2039
    %v2042 = vmul.f32 %v2036, %v873
    %v2043 = vmul.f32 %v2040, %v874
    %v2044 = vadd.f32 %v2032, %v2042
    %v2045 = vadd.f32 %v2033, %v2043
    %2046 = vset.pattern.permute.xlu0 22
    %2047 = vperm.xlu0 %2046, %v1704
    %v2048 = vpop.permute.xlu0 %2047
    %2050 = vset.pattern.permute.xlu0 22
    %2051 = vperm.xlu0 %2050, %v1706
    %v2052 = vpop.permute.xlu0 %2051
    %v2054 = vmul.f32 %v2048, %v895
    %v2055 = vmul.f32 %v2052, %v896
    %v2056 = vadd.f32 %v2044, %v2054
    %v2057 = vadd.f32 %v2045, %v2055
    %2058 = vset.pattern.permute.xlu0 23
    %2059 = vperm.xlu0 %2058, %v1704
    %v2060 = vpop.permute.xlu0 %2059
    %2062 = vset.pattern.permute.xlu0 23
    %2063 = vperm.xlu0 %2062, %v1706
    %v2064 = vpop.permute.xlu0 %2063
    %v2066 = vmul.f32 %v2060, %v917
    %v2067 = vmul.f32 %v2064, %v918
    %v2068 = vadd.f32 %v2056, %v2066
    %v2069 = vadd.f32 %v2057, %v2067
    %2070 = vset.pattern.permute.xlu0 24
    %2071 = vperm.xlu0 %2070, %v1704
    %v2072 = vpop.permute.xlu0 %2071
    %2074 = vset.pattern.permute.xlu0 24
    %2075 = vperm.xlu0 %2074, %v1706
    %v2076 = vpop.permute.xlu0 %2075
    %v2078 = vmul.f32 %v2072, %v931
    %v2079 = vmul.f32 %v2076, %v932
    %v2080 = vadd.f32 %v2068, %v2078
    %v2081 = vadd.f32 %v2069, %v2079
    %2082 = vset.pattern.permute.xlu0 25
    %2083 = vperm.xlu0 %2082, %v1704
    %v2084 = vpop.permute.xlu0 %2083
    %2086 = vset.pattern.permute.xlu0 25
    %2087 = vperm.xlu0 %2086, %v1706
    %v2088 = vpop.permute.xlu0 %2087
    %v2090 = vmul.f32 %v2084, %v931
    %v2091 = vmul.f32 %v2088, %v932
    %2094 = vrot.lane.b32.xlu0 %v2090, 96
    %v2095 = vpop.permute.xlu0 %2094
    %2096 = vrot.lane.b32.xlu0 %v2091, 96
    %v2097 = vpop.permute.xlu0 %2096
    %v2100 = vadd.f32 %v2080, %v2095
    %v2101 = vadd.f32 %v2081, %v2097
    %2102 = vset.pattern.permute.xlu0 26
    %2103 = vperm.xlu0 %2102, %v1704
    %v2104 = vpop.permute.xlu0 %2103
    %2106 = vset.pattern.permute.xlu0 26
    %2107 = vperm.xlu0 %2106, %v1706
    %v2108 = vpop.permute.xlu0 %2107
    %v2110 = vmul.f32 %v2104, %v931
    %v2111 = vmul.f32 %v2108, %v932
    %2114 = vrot.lane.b32.xlu0 %v2110, 64
    %v2115 = vpop.permute.xlu0 %2114
    %2116 = vrot.lane.b32.xlu0 %v2111, 64
    %v2117 = vpop.permute.xlu0 %2116
    %v2120 = vadd.f32 %v2100, %v2115
    %v2121 = vadd.f32 %v2101, %v2117
    %2122 = vset.pattern.permute.xlu0 27
    %2123 = vperm.xlu0 %2122, %v1704
    %v2124 = vpop.permute.xlu0 %2123
    %2126 = vset.pattern.permute.xlu0 27
    %2127 = vperm.xlu0 %2126, %v1706
    %v2128 = vpop.permute.xlu0 %2127
    %v2130 = vmul.f32 %v2124, %v931
    %v2131 = vmul.f32 %v2128, %v932
    %2134 = vrot.lane.b32.xlu0 %v2130, 32
    %v2135 = vpop.permute.xlu0 %2134
    %2136 = vrot.lane.b32.xlu0 %v2131, 32
    %v2137 = vpop.permute.xlu0 %2136
    %v2140 = vadd.f32 %v2120, %v2135
    %v2141 = vadd.f32 %v2121, %v2137
    %2142 = vset.pattern.permute.xlu0 28
    %2143 = vperm.xlu0 %2142, %v1704
    %v2144 = vpop.permute.xlu0 %2143
    %2146 = vset.pattern.permute.xlu0 28
    %2147 = vperm.xlu0 %2146, %v1706
    %v2148 = vpop.permute.xlu0 %2147
    %v2150 = vmul.f32 %v2144, %v1011
    %v2151 = vmul.f32 %v2148, %v1012
    %v2152 = vadd.f32 %v2140, %v2150
    %v2153 = vadd.f32 %v2141, %v2151
    %2154 = vset.pattern.permute.xlu0 29
    %2155 = vperm.xlu0 %2154, %v1704
    %v2156 = vpop.permute.xlu0 %2155
    %2158 = vset.pattern.permute.xlu0 29
    %2159 = vperm.xlu0 %2158, %v1706
    %v2160 = vpop.permute.xlu0 %2159
    %v2162 = vmul.f32 %v2156, %v1033
    %v2163 = vmul.f32 %v2160, %v1034
    %v2164 = vadd.f32 %v2152, %v2162
    %v2165 = vadd.f32 %v2153, %v2163
    %2166 = vset.pattern.permute.xlu0 30
    %2167 = vperm.xlu0 %2166, %v1704
    %v2168 = vpop.permute.xlu0 %2167
    %2170 = vset.pattern.permute.xlu0 30
    %2171 = vperm.xlu0 %2170, %v1706
    %v2172 = vpop.permute.xlu0 %2171
    %v2174 = vmul.f32 %v2168, %v1055
    %v2175 = vmul.f32 %v2172, %v1056
    %v2176 = vadd.f32 %v2164, %v2174
    %v2177 = vadd.f32 %v2165, %v2175
    %2178 = vset.pattern.permute.xlu0 31
    %2179 = vperm.xlu0 %2178, %v1704
    %v2180 = vpop.permute.xlu0 %2179
    %2182 = vset.pattern.permute.xlu0 31
    %2183 = vperm.xlu0 %2182, %v1706
    %v2184 = vpop.permute.xlu0 %2183
    %v2186 = vmul.f32 %v2180, %v1077
    %v2187 = vmul.f32 %v2184, %v1078
    %v2188 = vadd.f32 %v2176, %v2186
    %v2189 = vadd.f32 %v2177, %v2187
    %v2190 = vpack.c.bf16 %v2189, %v2188
    %2191 = vmatpush.bf16.msra.mxu0 0
    %2192 = vmatpush.bf16.msra.mxu0 0
    %2193 = vmatpush.bf16.msra.mxu0 0
    %2194 = vmatpush.bf16.msra.mxu0 0
    %2195 = vmatpush.bf16.msra.mxu0 0
    %2196 = vmatpush.bf16.msra.mxu0 0
    %2197 = vmatpush.bf16.msra.mxu0 0
    %2198 = vmatpush.bf16.msra.mxu0 %v2190
    %2199 = vmatmul.bf16.gmra.mxu0 %v1093
    %v2200 = vpop.f32.mrf.mxu0
    %v2201 = vadd.f32 %v1689, %v2200
    %v2202 = vpop.f32.mrf.mxu0
    %2203 = vdwg.mxu0
    %v2204 = vadd.f32 %v2201, %v1109
    %v2205 = vmul.f32 %v2204, 0.1
    %v2206 = vadd.f32 %v2205, %v1113
    %v2208 = vsel %vm1118, %v2206, 0
    %2210 = vmatpush.msra.mxu0 0.0
    %2211 = vmatpush.msra.mxu0 0.0
    %2212 = vmatpush.msra.mxu0 0.0
    %2213 = vmatpush.msra.mxu0 0.0
    %2214 = vmatpush.msra.mxu0 0.0
    %2215 = vmatpush.msra.mxu0 0.0
    %2216 = vmatpush.msra.mxu0 0.0
    %2217 = vmatpush.msra.mxu0 0.0
    %2218 = vmatpush.msra.mxu0 0.0
    %2219 = vmatpush.msra.mxu0 0.0
    %2220 = vmatpush.msra.mxu0 0.0
    %2221 = vmatpush.msra.mxu0 0.0
    %2222 = vmatpush.msra.mxu0 %v420
    %2223 = vmatpush.msra.mxu0 %v419
    %2224 = vmatpush.msra.mxu0 %v418
    %2225 = vmatpush.msra.mxu0 %v417
    %2226 = vmatmul.f32.gmra.mxu0 %v2208
    %v2227 = vpop.f32.mrf.mxu0
    %v2228 = vadd.f32 %v1116, %v2227
    %2229 = vdwg.mxu0
    %v2230 = vmul.f32 %v2228, 0.33333334
    %v2231 = vmul.f32 %v2206, 0.6666667
    %v2232 = vadd.f32 %v2230, %v2231
    %v2233 = vmax.f32 %v2232, 0.0
    %v2234 = vld [vmem:[%s13] sm:$0xff]
    %v2235 = vld [vmem:[%s13 + $0x8] sm:$0xff]
    %v2236 = vld [vmem:[%s13 + $0x10] sm:$0xff]
    %v2237 = vld [vmem:[%s13 + $0x18] sm:$0xff]
    %v2238 = vld [vmem:[%s14] sm:$0x1]
    %v2240 = vperm.slane %v2238, 0
    %v2243 = vsel %vm1118, %v2233, 0
    %2245 = vmatpush.msra.mxu0 0.0
    %2246 = vmatpush.msra.mxu0 0.0
    %2247 = vmatpush.msra.mxu0 0.0
    %2248 = vmatpush.msra.mxu0 0.0
    %2249 = vmatpush.msra.mxu0 0.0
    %2250 = vmatpush.msra.mxu0 0.0
    %2251 = vmatpush.msra.mxu0 0.0
    %2252 = vmatpush.msra.mxu0 0.0
    %2253 = vmatpush.msra.mxu0 0.0
    %2254 = vmatpush.msra.mxu0 0.0
    %2255 = vmatpush.msra.mxu0 0.0
    %2256 = vmatpush.msra.mxu0 0.0
    %2257 = vmatpush.msra.mxu0 %v2237
    %2258 = vmatpush.msra.mxu0 %v2236
    %2259 = vmatpush.msra.mxu0 %v2235
    %2260 = vmatpush.msra.mxu0 %v2234
    %2261 = vmatmul.f32.gmra.mxu0 %v2243
    %v2262 = vpop.f32.mrf.mxu0
    %v2263 = vadd.f32 %v2240, %v2262
    %2264 = vdwg.mxu0
    %v2265 = vxor.u32 %v2263, 2147483648
    %v2266 = vmul.f32 %v2265, 1.442695
    %v2267 = vpow.pop %v2266
    %v2268 = vadd.f32 %v2267, 1.0
    %v2269 = vrcp.pop %v2268
    %v2270 = vmul.f32 %v2268, %v2269
    %v2271 = vsub.f32 1.0, %v2270
    %v2272 = vmul.f32 %v2269, %v2271
    %v2273 = vadd.f32 %v2269, %v2272
    %vm2274 = vweird.f32 %v2268
    %vm2275 = vweird.f32 %v2269
    %vm2276 = vmor %vm2274, %vm2275
    %v2277 = vsel %vm2276, %v2269, %v2273
    %v2278 = vand.u32 2147483647, %v2268
    %vm2279 = vcmp.eq.f32.partialorder %v2278, 8.507059e+37
    %v2280 = vand.u32 %v2268, 2147483648
    %v2281 = vor.u32 1.1754944e-38, %v2280
    %v2282 = vsel %vm2279, %v2281, %v2277
    %v2283 = vmul.f32 1.0, %v2282
    %vm2284 = vcmask 31744
    %2285 = vst.msk [vmem:[%s15] sm:$0xff] %vm2284, %v2283
    // Predicated region
    $region78: #{mpnn_forward.1} parent=1 // pred_check
      _
    $region79: #{mpnn_forward.1} parent=1 // pred_check_branch
      %2287 = sbr.rel (0) target = $region81
    $region80: #{mpnn_forward.1} parent=1 // pred_region
      _
    $region81: #{mpnn_forward.1} parent=1 // pred_fallthru
      _
    // Predicated region
    $region82: #{mpnn_forward.1} parent=1 // pred_check
      _
    $region83: #{mpnn_forward.1} parent=1 // pred_check_branch
      %2289 = sbr.rel (0) target = $region85
    $region84: #{mpnn_forward.1} parent=1 // pred_region
      _
    $region85: #{mpnn_forward.1} parent=1 // pred_fallthru
      _
    %2290 = vsyncpa [#allocation3], 1
    %2291 = vsyncpa [#allocation5], 1
    %2292 = vsyncpa [#allocation8], 1

</llo_original>
